<compile_context>
chip_gen: v7x
topology: tpu7x:2x2x1
jax: 0.10.0
libtpu: 0.0.40
codegen_flags: <defaults>
</compile_context>

<pallas_src>
import functools

import jax
import jax.numpy as jnp
from jax import lax
from jax.experimental import pallas as pl
from jax.experimental.pallas import tpu as pltpu

GP = 128  # padded lane width of one (fwd|bwd) gate block


def bilstm_logsoftmax_kernel(wid_ref, pid_ref, wemb_ref, pemb_ref,
                             h0_ref, c0_ref,
                             wxwf_ref, wxpf_ref, wxwb_ref, wxpb_ref,
                             whh_ref, bg_ref,
                             woutf_ref, woutb_ref, bout_ref,
                             o_ref):
    """Fused embeddings + BiLSTM recurrence + hidden2tag + log_softmax.

    wid/pid_ref : (T, 1) int32   word / pos token ids
    wemb/pemb   : (Vw, We)/(Vp, Pe) embedding tables
    h0/c0_ref   : (1, 128)       lane-stacked initial state [fwd | bwd | 0]
    wxw*/wxp*   : (We, 512)/(Pe, 512) input->gates weights, gate g's columns at
                                  [g*128 + dir_off : g*128 + dir_off + H]
    whh_ref     : (128, 512)     block-diagonal recurrent weights (fwd rows 0:H,
                                  bwd rows H:2H), same gate/lane layout
    bg_ref      : (1, 512)       combined gate biases in the same layout
    wout*_ref   : (128, Kp)      hidden2tag, fwd rows 0:H / bwd rows H:2H, rest 0
    bout_ref    : (1, Kp)        output bias; padded tag lanes hold -1e30
    o_ref       : (T, Kp)        log-softmax class scores (padded lanes junk)
    """
    T = wid_ref.shape[0]
    NW = wemb_ref.shape[0]
    NP = pemb_ref.shape[0]
    f32 = jnp.float32

    # ---- in-kernel embedding gather via one-hot MXU matmuls ------------------
    wid = wid_ref[...]                                            # (T, 1) int32
    pid = pid_ref[...]
    iw = lax.broadcasted_iota(jnp.int32, (T, NW), 1)
    ip = lax.broadcasted_iota(jnp.int32, (T, NP), 1)
    onehot_w = jnp.where(iw == wid, 1.0, 0.0).astype(f32)         # (T, Vw)
    onehot_p = jnp.where(ip == pid, 1.0, 0.0).astype(f32)         # (T, Vp)
    word_e = jnp.dot(onehot_w, wemb_ref[...], preferred_element_type=f32)
    pos_e = jnp.dot(onehot_p, pemb_ref[...], preferred_element_type=f32)

    # ---- hoisted input->gates projection for BOTH directions -----------------
    gx_f = (jnp.dot(word_e, wxwf_ref[...], preferred_element_type=f32)
            + jnp.dot(pos_e, wxpf_ref[...], preferred_element_type=f32))   # (T, 4GP)
    gx_b = (jnp.dot(word_e, wxwb_ref[...], preferred_element_type=f32)
            + jnp.dot(pos_e, wxpb_ref[...], preferred_element_type=f32))   # (T, 4GP)

    # Time-reverse the backward-direction contributions with an anti-identity
    # matmul so the per-step read below is a single aligned row fetch.
    ri = lax.broadcasted_iota(jnp.int32, (T, T), 0)
    rj = lax.broadcasted_iota(jnp.int32, (T, T), 1)
    rev = jnp.where(ri + rj == T - 1, 1.0, 0.0).astype(f32)                 # (T, T)
    gx = gx_f + jnp.dot(rev, gx_b, preferred_element_type=f32) + bg_ref[...]

    whh = whh_ref[...]                                            # (GP, 4GP)
    h = h0_ref[...]                                               # (1, GP)
    c = c0_ref[...]

    # ---- fused fwd/bwd recurrence: ONE block-diag matmul + ONE gate pass/step
    # Statically unrolled; the hidden history stays in vregs (no scratch stores).
    hist = []
    for t in range(T):
        gsum = jnp.dot(h, whh, preferred_element_type=f32) + gx[t:t + 1, :]  # (1, 4GP)
        i_g = jax.nn.sigmoid(gsum[:, 0 * GP:1 * GP])
        f_g = jax.nn.sigmoid(gsum[:, 1 * GP:2 * GP])
        g_g = jnp.tanh(gsum[:, 2 * GP:3 * GP])
        o_g = jax.nn.sigmoid(gsum[:, 3 * GP:4 * GP])
        c = f_g * c + i_g * g_g
        h = o_g * jnp.tanh(c)
        hist.append(h)          # row t holds [h_fwd(t) | h_bwd(T-1-t) | 0]

    hist_f = jnp.concatenate(hist, axis=0)          # (T, GP) fwd-aligned rows
    hist_b = jnp.concatenate(hist[::-1], axis=0)    # (T, GP) bwd-aligned rows

    # ---- split hidden2tag projection (no lane concat) + log_softmax ----------
    logits = (jnp.dot(hist_f, woutf_ref[...], preferred_element_type=f32)
              + jnp.dot(hist_b, woutb_ref[...], preferred_element_type=f32)
              + bout_ref[...])                                               # (T, Kp)
    m = jnp.max(logits, axis=-1, keepdims=True)
    lse = jnp.log(jnp.sum(jnp.exp(logits - m), axis=-1, keepdims=True)) + m
    o_ref[...] = logits - lse


def _place_gates(w, h, dir_off):
    """(rows, 4H) -> (rows, 4*GP): gate g's H columns land at g*GP + dir_off."""
    rows = w.shape[0]
    out = jnp.zeros((rows, 4 * GP), jnp.float32)
    for g in range(4):
        out = out.at[:, g * GP + dir_off: g * GP + dir_off + h].set(
            w[:, g * h:(g + 1) * h])
    return out


@functools.partial(jax.jit, static_argnames=())
def nn_model_forward(input_seq, pos_seq, hidden, targets, params):
    """JAX/Pallas equivalent of NNModel.forward (crf_layer == False)."""
    del targets  # unused when crf_layer is False

    h0, c0 = hidden                                   # each (2, H)
    T = input_seq.shape[0]
    WE = params["word_emb"].shape[1]
    PE = params["pos_emb"].shape[1]
    H = params["whh_f"].shape[0]
    K = params["wout"].shape[1]
    assert 2 * H <= GP, "both direction hidden states must fit in one 128-lane block"
    K_pad = max(128, ((K + 127) // 128) * 128)        # lane-dense output width

    # ---- pre-pack weights (XLA-side glue; in production pack once offline) ---
    # NOTE: params are (E,4H)/(H,4H) layouts (transposed vs PyTorch's (4H,E));
    # when loading real checkpoints also sum bias_ih + bias_hh per direction.
    wxw_f = _place_gates(params["wih_f"][:WE], H, 0)            # (We, 4GP)
    wxp_f = _place_gates(params["wih_f"][WE:], H, 0)            # (Pe, 4GP)
    wxw_b = _place_gates(params["wih_b"][:WE], H, H)
    wxp_b = _place_gates(params["wih_b"][WE:], H, H)
    b_comb = _place_gates(params["b_f"], H, 0) + _place_gates(params["b_b"], H, H)

    whh_bd = jnp.zeros((GP, 4 * GP), jnp.float32)
    whh_bd = whh_bd.at[0:H].set(_place_gates(params["whh_f"], H, 0))
    whh_bd = whh_bd.at[H:2 * H].set(_place_gates(params["whh_b"], H, H))

    wout_f = jnp.zeros((GP, K_pad), jnp.float32).at[0:H, 0:K].set(params["wout"][:H])
    wout_b = jnp.zeros((GP, K_pad), jnp.float32).at[H:2 * H, 0:K].set(params["wout"][H:])
    bout = jnp.full((1, K_pad), -1e30, jnp.float32).at[0, 0:K].set(params["bout"][0])

    h0c = jnp.zeros((1, GP), jnp.float32).at[0, 0:H].set(h0[0]).at[0, H:2 * H].set(h0[1])
    c0c = jnp.zeros((1, GP), jnp.float32).at[0, 0:H].set(c0[0]).at[0, H:2 * H].set(c0[1])

    wid = input_seq.astype(jnp.int32).reshape(T, 1)
    pid = pos_seq.astype(jnp.int32).reshape(T, 1)

    vmem = pl.BlockSpec(memory_space=pltpu.MemorySpace.VMEM)
    out = pl.pallas_call(
        bilstm_logsoftmax_kernel,
        out_shape=jax.ShapeDtypeStruct((T, K_pad), jnp.float32),
        in_specs=[vmem] * 15,
        out_specs=vmem,
    )(wid, pid,
      params["word_emb"].astype(jnp.float32), params["pos_emb"].astype(jnp.float32),
      h0c, c0c,
      wxw_f, wxp_f, wxw_b, wxp_b,
      whh_bd, b_comb,
      wout_f, wout_b, bout)
    return out[:, :K]


def _reference_forward(input_seq, pos_seq, hidden, params):
    """Pure-JAX reference (mirrors PyTorch BiLSTM + hidden2tag + log_softmax)."""
    word_e = params["word_emb"][input_seq]
    pos_e = params["pos_emb"][pos_seq]
    x = jnp.concatenate([word_e, pos_e], axis=1).astype(jnp.float32)
    h0, c0 = hidden
    H = params["whh_f"].shape[0]

    def step(x_t, h, c, wih, whh, b):
        g = x_t @ wih + h @ whh + b
        i = jax.nn.sigmoid(g[:, 0 * H:1 * H])
        f = jax.nn.sigmoid(g[:, 1 * H:2 * H])
        gg = jnp.tanh(g[:, 2 * H:3 * H])
        o = jax.nn.sigmoid(g[:, 3 * H:4 * H])
        c = f * c + i * gg
        h = o * jnp.tanh(c)
        return h, c

    T = x.shape[0]
    h, c = h0[0:1], c0[0:1]
    hf = []
    for t in range(T):
        h, c = step(x[t:t + 1], h, c, params["wih_f"], params["whh_f"], params["b_f"])
        hf.append(h)
    h, c = h0[1:2], c0[1:2]
    hb = [None] * T
    for t in range(T - 1, -1, -1):
        h, c = step(x[t:t + 1], h, c, params["wih_b"], params["whh_b"], params["b_b"])
        hb[t] = h
    lstm_out = jnp.concatenate([jnp.concatenate(hf, 0), jnp.concatenate(hb, 0)], -1)
    logits = lstm_out @ params["wout"] + params["bout"]
    return jax.nn.log_softmax(logits, axis=1)


if __name__ == "__main__":
    # Small, deterministic problem sizes.
    T = 8            # sequence length
    VOCAB = 50       # word vocabulary size
    POS_VOCAB = 12   # POS-tag vocabulary size
    WE = 16          # word embedding dim
    PE = 16          # pos embedding dim
    E = WE + PE      # LSTM input dim
    H = 32           # LSTM hidden dim (per direction)
    K = 5            # tagset size

    key = jax.random.PRNGKey(0)
    ks = jax.random.split(key, 12)
    scale = 0.1
    params = {
        "word_emb": scale * jax.random.normal(ks[0], (VOCAB, WE), jnp.float32),
        "pos_emb":  scale * jax.random.normal(ks[1], (POS_VOCAB, PE), jnp.float32),
        # Already transposed to (E,4H)/(H,4H) relative to PyTorch's (4H,E)/(4H,H).
        "wih_f":    scale * jax.random.normal(ks[2], (E, 4 * H), jnp.float32),
        "whh_f":    scale * jax.random.normal(ks[3], (H, 4 * H), jnp.float32),
        "b_f":      scale * jax.random.normal(ks[4], (1, 4 * H), jnp.float32),
        "wih_b":    scale * jax.random.normal(ks[5], (E, 4 * H), jnp.float32),
        "whh_b":    scale * jax.random.normal(ks[6], (H, 4 * H), jnp.float32),
        "b_b":      scale * jax.random.normal(ks[7], (1, 4 * H), jnp.float32),
        "wout":     scale * jax.random.normal(ks[8], (2 * H, K), jnp.float32),
        "bout":     scale * jax.random.normal(ks[9], (1, K), jnp.float32),
    }

    input_seq = jax.random.randint(ks[10], (T,), 0, VOCAB, dtype=jnp.int32)
    pos_seq = jax.random.randint(ks[11], (T,), 0, POS_VOCAB, dtype=jnp.int32)
    targets = jnp.zeros((T, 1), dtype=jnp.int32)        # unused (no CRF)
    hidden = (jnp.zeros((2, H), jnp.float32),            # init_hidden(): zeros
              jnp.zeros((2, H), jnp.float32))

    class_scores = nn_model_forward(input_seq, pos_seq, hidden, targets, params)
    class_scores = jax.block_until_ready(class_scores)

    ref = _reference_forward(input_seq, pos_seq, hidden, params)
    assert class_scores.shape == (T, K)
    assert jnp.allclose(class_scores, ref, rtol=1e-3, atol=1e-4), "mismatch vs reference"

    print("KERNEL_OK")
</pallas_src>

<mosaic_0001>
module attributes {stable_mosaic.version = 11 : i64} {
  func.func @bilstm_logsoftmax_kernel(%arg0: memref<8x1xi32, #tpu.memory_space<vmem>>, %arg1: memref<8x1xi32, #tpu.memory_space<vmem>>, %arg2: memref<50x16xf32, #tpu.memory_space<vmem>>, %arg3: memref<12x16xf32, #tpu.memory_space<vmem>>, %arg4: memref<1x128xf32, #tpu.memory_space<vmem>>, %arg5: memref<1x128xf32, #tpu.memory_space<vmem>>, %arg6: memref<16x512xf32, #tpu.memory_space<vmem>>, %arg7: memref<16x512xf32, #tpu.memory_space<vmem>>, %arg8: memref<16x512xf32, #tpu.memory_space<vmem>>, %arg9: memref<16x512xf32, #tpu.memory_space<vmem>>, %arg10: memref<128x512xf32, #tpu.memory_space<vmem>>, %arg11: memref<1x512xf32, #tpu.memory_space<vmem>>, %arg12: memref<128x128xf32, #tpu.memory_space<vmem>>, %arg13: memref<128x128xf32, #tpu.memory_space<vmem>>, %arg14: memref<1x128xf32, #tpu.memory_space<vmem>>, %arg15: memref<8x128xf32, #tpu.memory_space<vmem>>) attributes {dimension_semantics = [], scalar_prefetch = 0 : i64, scratch_operands = 0 : i64, tpu.core_type = #tpu.core_type<tc>} {
    %c0 = arith.constant 0 : index
    %c0_0 = arith.constant 0 : index
    %0 = vector.load %arg0[%c0, %c0_0] : memref<8x1xi32, #tpu.memory_space<vmem>>, vector<8x1xi32>
    %c0_1 = arith.constant 0 : index
    %c0_2 = arith.constant 0 : index
    %1 = vector.load %arg1[%c0_1, %c0_2] : memref<8x1xi32, #tpu.memory_space<vmem>>, vector<8x1xi32>
    %2 = tpu.iota {dimensions = array<i32: 1>} : vector<8x50xi32>
    %3 = tpu.iota {dimensions = array<i32: 1>} : vector<8x12xi32>
    %4 = vector.broadcast %0 : vector<8x1xi32> to vector<8x50xi32>
    %5 = arith.cmpi eq, %2, %4 : vector<8x50xi32>
    %cst = arith.constant 1.000000e+00 : f32
    %cst_3 = arith.constant 0.000000e+00 : f32
    %6 = vector.broadcast %cst : f32 to vector<8x50xf32>
    %7 = vector.broadcast %cst_3 : f32 to vector<8x50xf32>
    %8 = arith.select %5, %6, %7 : vector<8x50xi1>, vector<8x50xf32>
    %9 = vector.broadcast %1 : vector<8x1xi32> to vector<8x12xi32>
    %10 = arith.cmpi eq, %3, %9 : vector<8x12xi32>
    %cst_4 = arith.constant 1.000000e+00 : f32
    %cst_5 = arith.constant 0.000000e+00 : f32
    %11 = vector.broadcast %cst_4 : f32 to vector<8x12xf32>
    %12 = vector.broadcast %cst_5 : f32 to vector<8x12xf32>
    %13 = arith.select %10, %11, %12 : vector<8x12xi1>, vector<8x12xf32>
    %c0_6 = arith.constant 0 : index
    %c0_7 = arith.constant 0 : index
    %14 = vector.load %arg2[%c0_6, %c0_7] : memref<50x16xf32, #tpu.memory_space<vmem>>, vector<50x16xf32>
    %cst_8 = arith.constant dense<0.000000e+00> : vector<8x16xf32>
    %15 = tpu.matmul %8, %14, %cst_8 {dimension_numbers = #tpu.dot_dimension_numbers<[1], [0], [0], [1], [0, 0, 1, 1], [], []>} : vector<8x50xf32>, vector<50x16xf32>, vector<8x16xf32> -> vector<8x16xf32>
    %c0_9 = arith.constant 0 : index
    %c0_10 = arith.constant 0 : index
    %16 = vector.load %arg3[%c0_9, %c0_10] : memref<12x16xf32, #tpu.memory_space<vmem>>, vector<12x16xf32>
    %cst_11 = arith.constant dense<0.000000e+00> : vector<8x16xf32>
    %17 = tpu.matmul %13, %16, %cst_11 {dimension_numbers = #tpu.dot_dimension_numbers<[1], [0], [0], [1], [0, 0, 1, 1], [], []>} : vector<8x12xf32>, vector<12x16xf32>, vector<8x16xf32> -> vector<8x16xf32>
    %c0_12 = arith.constant 0 : index
    %c0_13 = arith.constant 0 : index
    %18 = vector.load %arg6[%c0_12, %c0_13] : memref<16x512xf32, #tpu.memory_space<vmem>>, vector<16x512xf32>
    %cst_14 = arith.constant dense<0.000000e+00> : vector<8x512xf32>
    %19 = tpu.matmul %15, %18, %cst_14 {dimension_numbers = #tpu.dot_dimension_numbers<[1], [0], [0], [1], [0, 0, 1, 1], [], []>} : vector<8x16xf32>, vector<16x512xf32>, vector<8x512xf32> -> vector<8x512xf32>
    %c0_15 = arith.constant 0 : index
    %c0_16 = arith.constant 0 : index
    %20 = vector.load %arg7[%c0_15, %c0_16] : memref<16x512xf32, #tpu.memory_space<vmem>>, vector<16x512xf32>
    %cst_17 = arith.constant dense<0.000000e+00> : vector<8x512xf32>
    %21 = tpu.matmul %17, %20, %cst_17 {dimension_numbers = #tpu.dot_dimension_numbers<[1], [0], [0], [1], [0, 0, 1, 1], [], []>} : vector<8x16xf32>, vector<16x512xf32>, vector<8x512xf32> -> vector<8x512xf32>
    %22 = arith.addf %19, %21 : vector<8x512xf32>
    %c0_18 = arith.constant 0 : index
    %c0_19 = arith.constant 0 : index
    %23 = vector.load %arg8[%c0_18, %c0_19] : memref<16x512xf32, #tpu.memory_space<vmem>>, vector<16x512xf32>
    %cst_20 = arith.constant dense<0.000000e+00> : vector<8x512xf32>
    %24 = tpu.matmul %15, %23, %cst_20 {dimension_numbers = #tpu.dot_dimension_numbers<[1], [0], [0], [1], [0, 0, 1, 1], [], []>} : vector<8x16xf32>, vector<16x512xf32>, vector<8x512xf32> -> vector<8x512xf32>
    %c0_21 = arith.constant 0 : index
    %c0_22 = arith.constant 0 : index
    %25 = vector.load %arg9[%c0_21, %c0_22] : memref<16x512xf32, #tpu.memory_space<vmem>>, vector<16x512xf32>
    %cst_23 = arith.constant dense<0.000000e+00> : vector<8x512xf32>
    %26 = tpu.matmul %17, %25, %cst_23 {dimension_numbers = #tpu.dot_dimension_numbers<[1], [0], [0], [1], [0, 0, 1, 1], [], []>} : vector<8x16xf32>, vector<16x512xf32>, vector<8x512xf32> -> vector<8x512xf32>
    %27 = arith.addf %24, %26 : vector<8x512xf32>
    %28 = tpu.iota {dimensions = array<i32: 0>} : vector<8x8xi32>
    %29 = tpu.iota {dimensions = array<i32: 1>} : vector<8x8xi32>
    %30 = arith.addi %28, %29 : vector<8x8xi32>
    %c7_i32 = arith.constant 7 : i32
    %31 = vector.broadcast %c7_i32 : i32 to vector<8x8xi32>
    %32 = arith.cmpi eq, %30, %31 : vector<8x8xi32>
    %cst_24 = arith.constant 1.000000e+00 : f32
    %cst_25 = arith.constant 0.000000e+00 : f32
    %33 = vector.broadcast %cst_24 : f32 to vector<8x8xf32>
    %34 = vector.broadcast %cst_25 : f32 to vector<8x8xf32>
    %35 = arith.select %32, %33, %34 : vector<8x8xi1>, vector<8x8xf32>
    %cst_26 = arith.constant dense<0.000000e+00> : vector<8x512xf32>
    %36 = tpu.matmul %35, %27, %cst_26 {dimension_numbers = #tpu.dot_dimension_numbers<[1], [0], [0], [1], [0, 0, 1, 1], [], []>} : vector<8x8xf32>, vector<8x512xf32>, vector<8x512xf32> -> vector<8x512xf32>
    %37 = arith.addf %22, %36 : vector<8x512xf32>
    %c0_27 = arith.constant 0 : index
    %c0_28 = arith.constant 0 : index
    %38 = vector.load %arg11[%c0_27, %c0_28] : memref<1x512xf32, #tpu.memory_space<vmem>>, vector<1x512xf32>
    %39 = vector.broadcast %38 : vector<1x512xf32> to vector<8x512xf32>
    %40 = arith.addf %37, %39 : vector<8x512xf32>
    %c0_29 = arith.constant 0 : index
    %c0_30 = arith.constant 0 : index
    %41 = vector.load %arg10[%c0_29, %c0_30] : memref<128x512xf32, #tpu.memory_space<vmem>>, vector<128x512xf32>
    %c0_31 = arith.constant 0 : index
    %c0_32 = arith.constant 0 : index
    %42 = vector.load %arg4[%c0_31, %c0_32] : memref<1x128xf32, #tpu.memory_space<vmem>>, vector<1x128xf32>
    %c0_33 = arith.constant 0 : index
    %c0_34 = arith.constant 0 : index
    %43 = vector.load %arg5[%c0_33, %c0_34] : memref<1x128xf32, #tpu.memory_space<vmem>>, vector<1x128xf32>
    %cst_35 = arith.constant dense<0.000000e+00> : vector<1x512xf32>
    %44 = tpu.matmul %42, %41, %cst_35 {dimension_numbers = #tpu.dot_dimension_numbers<[1], [0], [0], [1], [0, 0, 1, 1], [], []>} : vector<1x128xf32>, vector<128x512xf32>, vector<1x512xf32> -> vector<1x512xf32>
    %45 = vector.extract_strided_slice %40 {offsets = [0, 0], sizes = [1, 512], strides = [1, 1]} : vector<8x512xf32> to vector<1x512xf32>
    %46 = arith.addf %44, %45 : vector<1x512xf32>
    %47 = vector.extract_strided_slice %46 {offsets = [0, 0], sizes = [1, 128], strides = [1, 1]} : vector<1x512xf32> to vector<1x128xf32>
    %48 = arith.negf %47 : vector<1x128xf32>
    %49 = math.exp %48 : vector<1x128xf32>
    %cst_36 = arith.constant 1.000000e+00 : f32
    %50 = vector.broadcast %cst_36 : f32 to vector<1x128xf32>
    %51 = arith.addf %50, %49 : vector<1x128xf32>
    %52 = arith.divf %50, %51 : vector<1x128xf32>
    %53 = vector.extract_strided_slice %46 {offsets = [0, 128], sizes = [1, 128], strides = [1, 1]} : vector<1x512xf32> to vector<1x128xf32>
    %54 = arith.negf %53 : vector<1x128xf32>
    %55 = math.exp %54 : vector<1x128xf32>
    %cst_37 = arith.constant 1.000000e+00 : f32
    %56 = vector.broadcast %cst_37 : f32 to vector<1x128xf32>
    %57 = arith.addf %56, %55 : vector<1x128xf32>
    %58 = arith.divf %56, %57 : vector<1x128xf32>
    %59 = vector.extract_strided_slice %46 {offsets = [0, 256], sizes = [1, 128], strides = [1, 1]} : vector<1x512xf32> to vector<1x128xf32>
    %60 = math.tanh %59 : vector<1x128xf32>
    %61 = vector.extract_strided_slice %46 {offsets = [0, 384], sizes = [1, 128], strides = [1, 1]} : vector<1x512xf32> to vector<1x128xf32>
    %62 = arith.negf %61 : vector<1x128xf32>
    %63 = math.exp %62 : vector<1x128xf32>
    %cst_38 = arith.constant 1.000000e+00 : f32
    %64 = vector.broadcast %cst_38 : f32 to vector<1x128xf32>
    %65 = arith.addf %64, %63 : vector<1x128xf32>
    %66 = arith.divf %64, %65 : vector<1x128xf32>
    %67 = arith.mulf %58, %43 : vector<1x128xf32>
    %68 = arith.mulf %52, %60 : vector<1x128xf32>
    %69 = arith.addf %67, %68 : vector<1x128xf32>
    %70 = math.tanh %69 : vector<1x128xf32>
    %71 = arith.mulf %66, %70 : vector<1x128xf32>
    %cst_39 = arith.constant dense<0.000000e+00> : vector<1x512xf32>
    %72 = tpu.matmul %71, %41, %cst_39 {dimension_numbers = #tpu.dot_dimension_numbers<[1], [0], [0], [1], [0, 0, 1, 1], [], []>} : vector<1x128xf32>, vector<128x512xf32>, vector<1x512xf32> -> vector<1x512xf32>
    %73 = vector.extract_strided_slice %40 {offsets = [1, 0], sizes = [1, 512], strides = [1, 1]} : vector<8x512xf32> to vector<1x512xf32>
    %74 = arith.addf %72, %73 : vector<1x512xf32>
    %75 = vector.extract_strided_slice %74 {offsets = [0, 0], sizes = [1, 128], strides = [1, 1]} : vector<1x512xf32> to vector<1x128xf32>
    %76 = arith.negf %75 : vector<1x128xf32>
    %77 = math.exp %76 : vector<1x128xf32>
    %cst_40 = arith.constant 1.000000e+00 : f32
    %78 = vector.broadcast %cst_40 : f32 to vector<1x128xf32>
    %79 = arith.addf %78, %77 : vector<1x128xf32>
    %80 = arith.divf %78, %79 : vector<1x128xf32>
    %81 = vector.extract_strided_slice %74 {offsets = [0, 128], sizes = [1, 128], strides = [1, 1]} : vector<1x512xf32> to vector<1x128xf32>
    %82 = arith.negf %81 : vector<1x128xf32>
    %83 = math.exp %82 : vector<1x128xf32>
    %cst_41 = arith.constant 1.000000e+00 : f32
    %84 = vector.broadcast %cst_41 : f32 to vector<1x128xf32>
    %85 = arith.addf %84, %83 : vector<1x128xf32>
    %86 = arith.divf %84, %85 : vector<1x128xf32>
    %87 = vector.extract_strided_slice %74 {offsets = [0, 256], sizes = [1, 128], strides = [1, 1]} : vector<1x512xf32> to vector<1x128xf32>
    %88 = math.tanh %87 : vector<1x128xf32>
    %89 = vector.extract_strided_slice %74 {offsets = [0, 384], sizes = [1, 128], strides = [1, 1]} : vector<1x512xf32> to vector<1x128xf32>
    %90 = arith.negf %89 : vector<1x128xf32>
    %91 = math.exp %90 : vector<1x128xf32>
    %cst_42 = arith.constant 1.000000e+00 : f32
    %92 = vector.broadcast %cst_42 : f32 to vector<1x128xf32>
    %93 = arith.addf %92, %91 : vector<1x128xf32>
    %94 = arith.divf %92, %93 : vector<1x128xf32>
    %95 = arith.mulf %86, %69 : vector<1x128xf32>
    %96 = arith.mulf %80, %88 : vector<1x128xf32>
    %97 = arith.addf %95, %96 : vector<1x128xf32>
    %98 = math.tanh %97 : vector<1x128xf32>
    %99 = arith.mulf %94, %98 : vector<1x128xf32>
    %cst_43 = arith.constant dense<0.000000e+00> : vector<1x512xf32>
    %100 = tpu.matmul %99, %41, %cst_43 {dimension_numbers = #tpu.dot_dimension_numbers<[1], [0], [0], [1], [0, 0, 1, 1], [], []>} : vector<1x128xf32>, vector<128x512xf32>, vector<1x512xf32> -> vector<1x512xf32>
    %101 = vector.extract_strided_slice %40 {offsets = [2, 0], sizes = [1, 512], strides = [1, 1]} : vector<8x512xf32> to vector<1x512xf32>
    %102 = arith.addf %100, %101 : vector<1x512xf32>
    %103 = vector.extract_strided_slice %102 {offsets = [0, 0], sizes = [1, 128], strides = [1, 1]} : vector<1x512xf32> to vector<1x128xf32>
    %104 = arith.negf %103 : vector<1x128xf32>
    %105 = math.exp %104 : vector<1x128xf32>
    %cst_44 = arith.constant 1.000000e+00 : f32
    %106 = vector.broadcast %cst_44 : f32 to vector<1x128xf32>
    %107 = arith.addf %106, %105 : vector<1x128xf32>
    %108 = arith.divf %106, %107 : vector<1x128xf32>
    %109 = vector.extract_strided_slice %102 {offsets = [0, 128], sizes = [1, 128], strides = [1, 1]} : vector<1x512xf32> to vector<1x128xf32>
    %110 = arith.negf %109 : vector<1x128xf32>
    %111 = math.exp %110 : vector<1x128xf32>
    %cst_45 = arith.constant 1.000000e+00 : f32
    %112 = vector.broadcast %cst_45 : f32 to vector<1x128xf32>
    %113 = arith.addf %112, %111 : vector<1x128xf32>
    %114 = arith.divf %112, %113 : vector<1x128xf32>
    %115 = vector.extract_strided_slice %102 {offsets = [0, 256], sizes = [1, 128], strides = [1, 1]} : vector<1x512xf32> to vector<1x128xf32>
    %116 = math.tanh %115 : vector<1x128xf32>
    %117 = vector.extract_strided_slice %102 {offsets = [0, 384], sizes = [1, 128], strides = [1, 1]} : vector<1x512xf32> to vector<1x128xf32>
    %118 = arith.negf %117 : vector<1x128xf32>
    %119 = math.exp %118 : vector<1x128xf32>
    %cst_46 = arith.constant 1.000000e+00 : f32
    %120 = vector.broadcast %cst_46 : f32 to vector<1x128xf32>
    %121 = arith.addf %120, %119 : vector<1x128xf32>
    %122 = arith.divf %120, %121 : vector<1x128xf32>
    %123 = arith.mulf %114, %97 : vector<1x128xf32>
    %124 = arith.mulf %108, %116 : vector<1x128xf32>
    %125 = arith.addf %123, %124 : vector<1x128xf32>
    %126 = math.tanh %125 : vector<1x128xf32>
    %127 = arith.mulf %122, %126 : vector<1x128xf32>
    %cst_47 = arith.constant dense<0.000000e+00> : vector<1x512xf32>
    %128 = tpu.matmul %127, %41, %cst_47 {dimension_numbers = #tpu.dot_dimension_numbers<[1], [0], [0], [1], [0, 0, 1, 1], [], []>} : vector<1x128xf32>, vector<128x512xf32>, vector<1x512xf32> -> vector<1x512xf32>
    %129 = vector.extract_strided_slice %40 {offsets = [3, 0], sizes = [1, 512], strides = [1, 1]} : vector<8x512xf32> to vector<1x512xf32>
    %130 = arith.addf %128, %129 : vector<1x512xf32>
    %131 = vector.extract_strided_slice %130 {offsets = [0, 0], sizes = [1, 128], strides = [1, 1]} : vector<1x512xf32> to vector<1x128xf32>
    %132 = arith.negf %131 : vector<1x128xf32>
    %133 = math.exp %132 : vector<1x128xf32>
    %cst_48 = arith.constant 1.000000e+00 : f32
    %134 = vector.broadcast %cst_48 : f32 to vector<1x128xf32>
    %135 = arith.addf %134, %133 : vector<1x128xf32>
    %136 = arith.divf %134, %135 : vector<1x128xf32>
    %137 = vector.extract_strided_slice %130 {offsets = [0, 128], sizes = [1, 128], strides = [1, 1]} : vector<1x512xf32> to vector<1x128xf32>
    %138 = arith.negf %137 : vector<1x128xf32>
    %139 = math.exp %138 : vector<1x128xf32>
    %cst_49 = arith.constant 1.000000e+00 : f32
    %140 = vector.broadcast %cst_49 : f32 to vector<1x128xf32>
    %141 = arith.addf %140, %139 : vector<1x128xf32>
    %142 = arith.divf %140, %141 : vector<1x128xf32>
    %143 = vector.extract_strided_slice %130 {offsets = [0, 256], sizes = [1, 128], strides = [1, 1]} : vector<1x512xf32> to vector<1x128xf32>
    %144 = math.tanh %143 : vector<1x128xf32>
    %145 = vector.extract_strided_slice %130 {offsets = [0, 384], sizes = [1, 128], strides = [1, 1]} : vector<1x512xf32> to vector<1x128xf32>
    %146 = arith.negf %145 : vector<1x128xf32>
    %147 = math.exp %146 : vector<1x128xf32>
    %cst_50 = arith.constant 1.000000e+00 : f32
    %148 = vector.broadcast %cst_50 : f32 to vector<1x128xf32>
    %149 = arith.addf %148, %147 : vector<1x128xf32>
    %150 = arith.divf %148, %149 : vector<1x128xf32>
    %151 = arith.mulf %142, %125 : vector<1x128xf32>
    %152 = arith.mulf %136, %144 : vector<1x128xf32>
    %153 = arith.addf %151, %152 : vector<1x128xf32>
    %154 = math.tanh %153 : vector<1x128xf32>
    %155 = arith.mulf %150, %154 : vector<1x128xf32>
    %cst_51 = arith.constant dense<0.000000e+00> : vector<1x512xf32>
    %156 = tpu.matmul %155, %41, %cst_51 {dimension_numbers = #tpu.dot_dimension_numbers<[1], [0], [0], [1], [0, 0, 1, 1], [], []>} : vector<1x128xf32>, vector<128x512xf32>, vector<1x512xf32> -> vector<1x512xf32>
    %157 = vector.extract_strided_slice %40 {offsets = [4, 0], sizes = [1, 512], strides = [1, 1]} : vector<8x512xf32> to vector<1x512xf32>
    %158 = arith.addf %156, %157 : vector<1x512xf32>
    %159 = vector.extract_strided_slice %158 {offsets = [0, 0], sizes = [1, 128], strides = [1, 1]} : vector<1x512xf32> to vector<1x128xf32>
    %160 = arith.negf %159 : vector<1x128xf32>
    %161 = math.exp %160 : vector<1x128xf32>
    %cst_52 = arith.constant 1.000000e+00 : f32
    %162 = vector.broadcast %cst_52 : f32 to vector<1x128xf32>
    %163 = arith.addf %162, %161 : vector<1x128xf32>
    %164 = arith.divf %162, %163 : vector<1x128xf32>
    %165 = vector.extract_strided_slice %158 {offsets = [0, 128], sizes = [1, 128], strides = [1, 1]} : vector<1x512xf32> to vector<1x128xf32>
    %166 = arith.negf %165 : vector<1x128xf32>
    %167 = math.exp %166 : vector<1x128xf32>
    %cst_53 = arith.constant 1.000000e+00 : f32
    %168 = vector.broadcast %cst_53 : f32 to vector<1x128xf32>
    %169 = arith.addf %168, %167 : vector<1x128xf32>
    %170 = arith.divf %168, %169 : vector<1x128xf32>
    %171 = vector.extract_strided_slice %158 {offsets = [0, 256], sizes = [1, 128], strides = [1, 1]} : vector<1x512xf32> to vector<1x128xf32>
    %172 = math.tanh %171 : vector<1x128xf32>
    %173 = vector.extract_strided_slice %158 {offsets = [0, 384], sizes = [1, 128], strides = [1, 1]} : vector<1x512xf32> to vector<1x128xf32>
    %174 = arith.negf %173 : vector<1x128xf32>
    %175 = math.exp %174 : vector<1x128xf32>
    %cst_54 = arith.constant 1.000000e+00 : f32
    %176 = vector.broadcast %cst_54 : f32 to vector<1x128xf32>
    %177 = arith.addf %176, %175 : vector<1x128xf32>
    %178 = arith.divf %176, %177 : vector<1x128xf32>
    %179 = arith.mulf %170, %153 : vector<1x128xf32>
    %180 = arith.mulf %164, %172 : vector<1x128xf32>
    %181 = arith.addf %179, %180 : vector<1x128xf32>
    %182 = math.tanh %181 : vector<1x128xf32>
    %183 = arith.mulf %178, %182 : vector<1x128xf32>
    %cst_55 = arith.constant dense<0.000000e+00> : vector<1x512xf32>
    %184 = tpu.matmul %183, %41, %cst_55 {dimension_numbers = #tpu.dot_dimension_numbers<[1], [0], [0], [1], [0, 0, 1, 1], [], []>} : vector<1x128xf32>, vector<128x512xf32>, vector<1x512xf32> -> vector<1x512xf32>
    %185 = vector.extract_strided_slice %40 {offsets = [5, 0], sizes = [1, 512], strides = [1, 1]} : vector<8x512xf32> to vector<1x512xf32>
    %186 = arith.addf %184, %185 : vector<1x512xf32>
    %187 = vector.extract_strided_slice %186 {offsets = [0, 0], sizes = [1, 128], strides = [1, 1]} : vector<1x512xf32> to vector<1x128xf32>
    %188 = arith.negf %187 : vector<1x128xf32>
    %189 = math.exp %188 : vector<1x128xf32>
    %cst_56 = arith.constant 1.000000e+00 : f32
    %190 = vector.broadcast %cst_56 : f32 to vector<1x128xf32>
    %191 = arith.addf %190, %189 : vector<1x128xf32>
    %192 = arith.divf %190, %191 : vector<1x128xf32>
    %193 = vector.extract_strided_slice %186 {offsets = [0, 128], sizes = [1, 128], strides = [1, 1]} : vector<1x512xf32> to vector<1x128xf32>
    %194 = arith.negf %193 : vector<1x128xf32>
    %195 = math.exp %194 : vector<1x128xf32>
    %cst_57 = arith.constant 1.000000e+00 : f32
    %196 = vector.broadcast %cst_57 : f32 to vector<1x128xf32>
    %197 = arith.addf %196, %195 : vector<1x128xf32>
    %198 = arith.divf %196, %197 : vector<1x128xf32>
    %199 = vector.extract_strided_slice %186 {offsets = [0, 256], sizes = [1, 128], strides = [1, 1]} : vector<1x512xf32> to vector<1x128xf32>
    %200 = math.tanh %199 : vector<1x128xf32>
    %201 = vector.extract_strided_slice %186 {offsets = [0, 384], sizes = [1, 128], strides = [1, 1]} : vector<1x512xf32> to vector<1x128xf32>
    %202 = arith.negf %201 : vector<1x128xf32>
    %203 = math.exp %202 : vector<1x128xf32>
    %cst_58 = arith.constant 1.000000e+00 : f32
    %204 = vector.broadcast %cst_58 : f32 to vector<1x128xf32>
    %205 = arith.addf %204, %203 : vector<1x128xf32>
    %206 = arith.divf %204, %205 : vector<1x128xf32>
    %207 = arith.mulf %198, %181 : vector<1x128xf32>
    %208 = arith.mulf %192, %200 : vector<1x128xf32>
    %209 = arith.addf %207, %208 : vector<1x128xf32>
    %210 = math.tanh %209 : vector<1x128xf32>
    %211 = arith.mulf %206, %210 : vector<1x128xf32>
    %cst_59 = arith.constant dense<0.000000e+00> : vector<1x512xf32>
    %212 = tpu.matmul %211, %41, %cst_59 {dimension_numbers = #tpu.dot_dimension_numbers<[1], [0], [0], [1], [0, 0, 1, 1], [], []>} : vector<1x128xf32>, vector<128x512xf32>, vector<1x512xf32> -> vector<1x512xf32>
    %213 = vector.extract_strided_slice %40 {offsets = [6, 0], sizes = [1, 512], strides = [1, 1]} : vector<8x512xf32> to vector<1x512xf32>
    %214 = arith.addf %212, %213 : vector<1x512xf32>
    %215 = vector.extract_strided_slice %214 {offsets = [0, 0], sizes = [1, 128], strides = [1, 1]} : vector<1x512xf32> to vector<1x128xf32>
    %216 = arith.negf %215 : vector<1x128xf32>
    %217 = math.exp %216 : vector<1x128xf32>
    %cst_60 = arith.constant 1.000000e+00 : f32
    %218 = vector.broadcast %cst_60 : f32 to vector<1x128xf32>
    %219 = arith.addf %218, %217 : vector<1x128xf32>
    %220 = arith.divf %218, %219 : vector<1x128xf32>
    %221 = vector.extract_strided_slice %214 {offsets = [0, 128], sizes = [1, 128], strides = [1, 1]} : vector<1x512xf32> to vector<1x128xf32>
    %222 = arith.negf %221 : vector<1x128xf32>
    %223 = math.exp %222 : vector<1x128xf32>
    %cst_61 = arith.constant 1.000000e+00 : f32
    %224 = vector.broadcast %cst_61 : f32 to vector<1x128xf32>
    %225 = arith.addf %224, %223 : vector<1x128xf32>
    %226 = arith.divf %224, %225 : vector<1x128xf32>
    %227 = vector.extract_strided_slice %214 {offsets = [0, 256], sizes = [1, 128], strides = [1, 1]} : vector<1x512xf32> to vector<1x128xf32>
    %228 = math.tanh %227 : vector<1x128xf32>
    %229 = vector.extract_strided_slice %214 {offsets = [0, 384], sizes = [1, 128], strides = [1, 1]} : vector<1x512xf32> to vector<1x128xf32>
    %230 = arith.negf %229 : vector<1x128xf32>
    %231 = math.exp %230 : vector<1x128xf32>
    %cst_62 = arith.constant 1.000000e+00 : f32
    %232 = vector.broadcast %cst_62 : f32 to vector<1x128xf32>
    %233 = arith.addf %232, %231 : vector<1x128xf32>
    %234 = arith.divf %232, %233 : vector<1x128xf32>
    %235 = arith.mulf %226, %209 : vector<1x128xf32>
    %236 = arith.mulf %220, %228 : vector<1x128xf32>
    %237 = arith.addf %235, %236 : vector<1x128xf32>
    %238 = math.tanh %237 : vector<1x128xf32>
    %239 = arith.mulf %234, %238 : vector<1x128xf32>
    %cst_63 = arith.constant dense<0.000000e+00> : vector<1x512xf32>
    %240 = tpu.matmul %239, %41, %cst_63 {dimension_numbers = #tpu.dot_dimension_numbers<[1], [0], [0], [1], [0, 0, 1, 1], [], []>} : vector<1x128xf32>, vector<128x512xf32>, vector<1x512xf32> -> vector<1x512xf32>
    %241 = vector.extract_strided_slice %40 {offsets = [7, 0], sizes = [1, 512], strides = [1, 1]} : vector<8x512xf32> to vector<1x512xf32>
    %242 = arith.addf %240, %241 : vector<1x512xf32>
    %243 = vector.extract_strided_slice %242 {offsets = [0, 0], sizes = [1, 128], strides = [1, 1]} : vector<1x512xf32> to vector<1x128xf32>
    %244 = arith.negf %243 : vector<1x128xf32>
    %245 = math.exp %244 : vector<1x128xf32>
    %cst_64 = arith.constant 1.000000e+00 : f32
    %246 = vector.broadcast %cst_64 : f32 to vector<1x128xf32>
    %247 = arith.addf %246, %245 : vector<1x128xf32>
    %248 = arith.divf %246, %247 : vector<1x128xf32>
    %249 = vector.extract_strided_slice %242 {offsets = [0, 128], sizes = [1, 128], strides = [1, 1]} : vector<1x512xf32> to vector<1x128xf32>
    %250 = arith.negf %249 : vector<1x128xf32>
    %251 = math.exp %250 : vector<1x128xf32>
    %cst_65 = arith.constant 1.000000e+00 : f32
    %252 = vector.broadcast %cst_65 : f32 to vector<1x128xf32>
    %253 = arith.addf %252, %251 : vector<1x128xf32>
    %254 = arith.divf %252, %253 : vector<1x128xf32>
    %255 = vector.extract_strided_slice %242 {offsets = [0, 256], sizes = [1, 128], strides = [1, 1]} : vector<1x512xf32> to vector<1x128xf32>
    %256 = math.tanh %255 : vector<1x128xf32>
    %257 = vector.extract_strided_slice %242 {offsets = [0, 384], sizes = [1, 128], strides = [1, 1]} : vector<1x512xf32> to vector<1x128xf32>
    %258 = arith.negf %257 : vector<1x128xf32>
    %259 = math.exp %258 : vector<1x128xf32>
    %cst_66 = arith.constant 1.000000e+00 : f32
    %260 = vector.broadcast %cst_66 : f32 to vector<1x128xf32>
    %261 = arith.addf %260, %259 : vector<1x128xf32>
    %262 = arith.divf %260, %261 : vector<1x128xf32>
    %263 = arith.mulf %254, %237 : vector<1x128xf32>
    %264 = arith.mulf %248, %256 : vector<1x128xf32>
    %265 = arith.addf %263, %264 : vector<1x128xf32>
    %266 = math.tanh %265 : vector<1x128xf32>
    %267 = arith.mulf %262, %266 : vector<1x128xf32>
    %268 = tpu.concatenate %71, %99, %127, %155, %183, %211, %239, %267 in 0 : vector<1x128xf32>, vector<1x128xf32>, vector<1x128xf32>, vector<1x128xf32>, vector<1x128xf32>, vector<1x128xf32>, vector<1x128xf32>, vector<1x128xf32> -> vector<8x128xf32>
    %269 = tpu.concatenate %267, %239, %211, %183, %155, %127, %99, %71 in 0 : vector<1x128xf32>, vector<1x128xf32>, vector<1x128xf32>, vector<1x128xf32>, vector<1x128xf32>, vector<1x128xf32>, vector<1x128xf32>, vector<1x128xf32> -> vector<8x128xf32>
    %c0_67 = arith.constant 0 : index
    %c0_68 = arith.constant 0 : index
    %270 = vector.load %arg12[%c0_67, %c0_68] : memref<128x128xf32, #tpu.memory_space<vmem>>, vector<128x128xf32>
    %cst_69 = arith.constant dense<0.000000e+00> : vector<8x128xf32>
    %271 = tpu.matmul %268, %270, %cst_69 {dimension_numbers = #tpu.dot_dimension_numbers<[1], [0], [0], [1], [0, 0, 1, 1], [], []>} : vector<8x128xf32>, vector<128x128xf32>, vector<8x128xf32> -> vector<8x128xf32>
    %c0_70 = arith.constant 0 : index
    %c0_71 = arith.constant 0 : index
    %272 = vector.load %arg13[%c0_70, %c0_71] : memref<128x128xf32, #tpu.memory_space<vmem>>, vector<128x128xf32>
    %cst_72 = arith.constant dense<0.000000e+00> : vector<8x128xf32>
    %273 = tpu.matmul %269, %272, %cst_72 {dimension_numbers = #tpu.dot_dimension_numbers<[1], [0], [0], [1], [0, 0, 1, 1], [], []>} : vector<8x128xf32>, vector<128x128xf32>, vector<8x128xf32> -> vector<8x128xf32>
    %274 = arith.addf %271, %273 : vector<8x128xf32>
    %c0_73 = arith.constant 0 : index
    %c0_74 = arith.constant 0 : index
    %275 = vector.load %arg14[%c0_73, %c0_74] : memref<1x128xf32, #tpu.memory_space<vmem>>, vector<1x128xf32>
    %276 = vector.broadcast %275 : vector<1x128xf32> to vector<8x128xf32>
    %277 = arith.addf %274, %276 : vector<8x128xf32>
    %cst_75 = arith.constant dense<0xFF800000> : vector<8xf32>
    %278 = vector.multi_reduction <maximumf>, %277, %cst_75 [1] : vector<8x128xf32> to vector<8xf32>
    %279 = vector.shape_cast %278 : vector<8xf32> to vector<8x1xf32>
    %280 = vector.broadcast %279 : vector<8x1xf32> to vector<8x128xf32>
    %281 = arith.subf %277, %280 : vector<8x128xf32>
    %282 = math.exp %281 : vector<8x128xf32>
    %cst_76 = arith.constant dense<0.000000e+00> : vector<8xf32>
    %283 = vector.multi_reduction <add>, %282, %cst_76 [1] : vector<8x128xf32> to vector<8xf32>
    %284 = vector.shape_cast %283 : vector<8xf32> to vector<8x1xf32>
    %285 = math.log %284 : vector<8x1xf32>
    %286 = arith.addf %285, %279 : vector<8x1xf32>
    %287 = vector.broadcast %286 : vector<8x1xf32> to vector<8x128xf32>
    %288 = arith.subf %277, %287 : vector<8x128xf32>
    %c0_77 = arith.constant 0 : index
    %c0_78 = arith.constant 0 : index
    %289 = vector.load %arg15[%c0_77, %c0_78] : memref<8x128xf32, #tpu.memory_space<vmem>>, vector<8x128xf32>
    tpu.vector_store %arg15[%c0_77, %c0_78], %288 {strides = array<i32>} : memref<8x128xf32, #tpu.memory_space<vmem>>, vector<8x128xf32>,
    return
  }
}

</mosaic_0001>

<llo_original>
// kernel: nn_model_forward.1
$region0: #{nn_model_forward.1}
  #allocation0 [shape = 'u32[]', space=smem, size = 0x4, offset = 0x4, fixed_abs, tag = 'smem constant byte address 0x4 - core index']
  #allocation1 [shape = 'u32[144,128]{1,0:T(1,128)}', space=vmem, size = 0x12000, scoped, tag = 'internal scratch']
  %s0 = inlined_call_operand.vmem [shape: s32[8,1], index: 0, kind: input, shape index: {}]
  %s1 = inlined_call_operand.vmem [shape: s32[8,1], index: 1, kind: input, shape index: {}]
  %s2 = inlined_call_operand.vmem [shape: f32[50,16], index: 2, kind: input, shape index: {}]
  %s3 = inlined_call_operand.vmem [shape: f32[12,16], index: 3, kind: input, shape index: {}]
  %s4 = inlined_call_operand.vmem [shape: f32[1,128], index: 4, kind: input, shape index: {}]
  %s5 = inlined_call_operand.vmem [shape: f32[1,128], index: 5, kind: input, shape index: {}]
  %s6 = inlined_call_operand.vmem [shape: f32[16,512], index: 6, kind: input, shape index: {}]
  %s7 = inlined_call_operand.vmem [shape: f32[16,512], index: 7, kind: input, shape index: {}]
  %s8 = inlined_call_operand.vmem [shape: f32[16,512], index: 8, kind: input, shape index: {}]
  %s9 = inlined_call_operand.vmem [shape: f32[16,512], index: 9, kind: input, shape index: {}]
  %s10 = inlined_call_operand.vmem [shape: f32[128,512], index: 10, kind: input, shape index: {}]
  %s11 = inlined_call_operand.vmem [shape: f32[1,512], index: 11, kind: input, shape index: {}]
  %s12 = inlined_call_operand.vmem [shape: f32[128,128], index: 12, kind: input, shape index: {}]
  %s13 = inlined_call_operand.vmem [shape: f32[128,128], index: 13, kind: input, shape index: {}]
  %s14 = inlined_call_operand.vmem [shape: f32[1,128], index: 14, kind: input, shape index: {}]
  %s15 = inlined_call_operand.hbm [shape: f32[8,128], index: 15, kind: output, shape index: {}]
  %s16 = sld [smem:[#allocation0]]
  $region70: #{nn_model_forward.1} parent=0
    _
  %s18 = ssub.s32 1, %s16
  %s19 = scalar_select 0, %s18, %s16
  $region1: #{nn_model_forward.1} parent=0
    #allocation2 [shape = 'u8[4096]{0}', space=vmem, size = 0x1000, scoped, tag = 'output window, operand 0, single buffered']
    #allocation3 [shape = 's32[1]{0}', space=sflag, size = 0x4, scoped, tag = 'scoped memory for nn_model_forward.1']
    %20 = vsyncpa [#allocation3], 0
    // Predicated region
    $region2: #{nn_model_forward.1} parent=1 // pred_check
      _
    $region3: #{nn_model_forward.1} parent=1 // pred_check_branch
      %22 = sbr.rel (0) target = $region5
    $region4: #{nn_model_forward.1} parent=1 // pred_region
      _
    $region5: #{nn_model_forward.1} parent=1 // pred_fallthru
      _
    // Predicated region
    $region6: #{nn_model_forward.1} parent=1 // pred_check
      _
    $region7: #{nn_model_forward.1} parent=1 // pred_check_branch
      %24 = sbr.rel (0) target = $region9
    $region8: #{nn_model_forward.1} parent=1 // pred_region
      _
    $region9: #{nn_model_forward.1} parent=1 // pred_fallthru
      _
    // Predicated region
    $region10: #{nn_model_forward.1} parent=1 // pred_check
      _
    $region11: #{nn_model_forward.1} parent=1 // pred_check_branch
      %26 = sbr.rel (0) target = $region13
    $region12: #{nn_model_forward.1} parent=1 // pred_region
      _
    $region13: #{nn_model_forward.1} parent=1 // pred_fallthru
      _
    // Predicated region
    $region14: #{nn_model_forward.1} parent=1 // pred_check
      _
    $region15: #{nn_model_forward.1} parent=1 // pred_check_branch
      %28 = sbr.rel (0) target = $region17
    $region16: #{nn_model_forward.1} parent=1 // pred_region
      _
    $region17: #{nn_model_forward.1} parent=1 // pred_fallthru
      _
    // Predicated region
    $region18: #{nn_model_forward.1} parent=1 // pred_check
      _
    $region19: #{nn_model_forward.1} parent=1 // pred_check_branch
      %30 = sbr.rel (0) target = $region21
    $region20: #{nn_model_forward.1} parent=1 // pred_region
      _
    $region21: #{nn_model_forward.1} parent=1 // pred_fallthru
      _
    // Predicated region
    $region22: #{nn_model_forward.1} parent=1 // pred_check
      _
    $region23: #{nn_model_forward.1} parent=1 // pred_check_branch
      %32 = sbr.rel (0) target = $region25
    $region24: #{nn_model_forward.1} parent=1 // pred_region
      _
    $region25: #{nn_model_forward.1} parent=1 // pred_fallthru
      _
    // Predicated region
    $region26: #{nn_model_forward.1} parent=1 // pred_check
      _
    $region27: #{nn_model_forward.1} parent=1 // pred_check_branch
      %34 = sbr.rel (0) target = $region29
    $region28: #{nn_model_forward.1} parent=1 // pred_region
      _
    $region29: #{nn_model_forward.1} parent=1 // pred_fallthru
      _
    // Predicated region
    $region30: #{nn_model_forward.1} parent=1 // pred_check
      _
    $region31: #{nn_model_forward.1} parent=1 // pred_check_branch
      %36 = sbr.rel (0) target = $region33
    $region32: #{nn_model_forward.1} parent=1 // pred_region
      _
    $region33: #{nn_model_forward.1} parent=1 // pred_fallthru
      _
    // Predicated region
    $region34: #{nn_model_forward.1} parent=1 // pred_check
      _
    $region35: #{nn_model_forward.1} parent=1 // pred_check_branch
      %38 = sbr.rel (0) target = $region37
    $region36: #{nn_model_forward.1} parent=1 // pred_region
      _
    $region37: #{nn_model_forward.1} parent=1 // pred_fallthru
      _
    // Predicated region
    $region38: #{nn_model_forward.1} parent=1 // pred_check
      _
    $region39: #{nn_model_forward.1} parent=1 // pred_check_branch
      %40 = sbr.rel (0) target = $region41
    $region40: #{nn_model_forward.1} parent=1 // pred_region
      _
    $region41: #{nn_model_forward.1} parent=1 // pred_fallthru
      _
    // Predicated region
    $region42: #{nn_model_forward.1} parent=1 // pred_check
      _
    $region43: #{nn_model_forward.1} parent=1 // pred_check_branch
      %42 = sbr.rel (0) target = $region45
    $region44: #{nn_model_forward.1} parent=1 // pred_region
      _
    $region45: #{nn_model_forward.1} parent=1 // pred_fallthru
      _
    // Predicated region
    $region46: #{nn_model_forward.1} parent=1 // pred_check
      _
    $region47: #{nn_model_forward.1} parent=1 // pred_check_branch
      %44 = sbr.rel (0) target = $region49
    $region48: #{nn_model_forward.1} parent=1 // pred_region
      _
    $region49: #{nn_model_forward.1} parent=1 // pred_fallthru
      _
    // Predicated region
    $region50: #{nn_model_forward.1} parent=1 // pred_check
      _
    $region51: #{nn_model_forward.1} parent=1 // pred_check_branch
      %46 = sbr.rel (0) target = $region53
    $region52: #{nn_model_forward.1} parent=1 // pred_region
      _
    $region53: #{nn_model_forward.1} parent=1 // pred_fallthru
      _
    // Predicated region
    $region54: #{nn_model_forward.1} parent=1 // pred_check
      _
    $region55: #{nn_model_forward.1} parent=1 // pred_check_branch
      %48 = sbr.rel (0) target = $region57
    $region56: #{nn_model_forward.1} parent=1 // pred_region
      _
    $region57: #{nn_model_forward.1} parent=1 // pred_fallthru
      _
    // Predicated region
    $region58: #{nn_model_forward.1} parent=1 // pred_check
      _
    $region59: #{nn_model_forward.1} parent=1 // pred_check_branch
      %50 = sbr.rel (0) target = $region61
    $region60: #{nn_model_forward.1} parent=1 // pred_region
      _
    $region61: #{nn_model_forward.1} parent=1 // pred_fallthru
      _
    %v51 = vld [vmem:[%s0] sm:$0xff]
    %v52 = vld [vmem:[%s1] sm:$0xff]
    %v53 = vlaneseq
    %v54 = vand.u32 %v53, 127
    %55 = vset.pattern.permute.xlu0 0
    %56 = vperm.xlu0 %55, %v51
    %v57 = vpop.permute.xlu0 %56
    %vm58 = vcmp.eq.s32.totalorder %v54, %v57
    %v59 = vsel %vm58, 1.0, 0.0
    %60 = vset.pattern.permute.xlu0 0
    %61 = vperm.xlu0 %60, %v52
    %v62 = vpop.permute.xlu0 %61
    %vm63 = vcmp.eq.s32.totalorder %v54, %v62
    %v64 = vsel %vm63, 1.0, 0.0
    %v65 = vld [vmem:[%s2] sm:$0xff]
    %v66 = vld [vmem:[%s2 + $0x8] sm:$0xff]
    %v67 = vld [vmem:[%s2 + $0x10] sm:$0xff]
    %v68 = vld [vmem:[%s2 + $0x18] sm:$0xff]
    %v69 = vld [vmem:[%s2 + $0x20] sm:$0xff]
    %v70 = vld [vmem:[%s2 + $0x28] sm:$0xff]
    %v71 = vld [vmem:[%s2 + $0x30] sm:$0x3]
    %vm72 = vcmask 408576
    %v74 = vsel %vm72, %v59, 0
    %vm76 = vcmask 1041408
    %v78 = vsel %vm76, %v71, 0
    %80 = vmatprep.subr.mxu0 0.0
    %81 = vmatpush1.msra.mxu0 %v65
    %82 = vmatprep.subr.mxu0 0.0
    %83 = vmatpush1.msra.mxu0 %v66
    %84 = vmatprep.subr.mxu0 0.0
    %85 = vmatpush1.msra.mxu0 %v67
    %86 = vmatprep.subr.mxu0 0.0
    %87 = vmatpush1.msra.mxu0 %v68
    %88 = vmatprep.subr.mxu0 0.0
    %89 = vmatpush1.msra.mxu0 %v69
    %90 = vmatprep.subr.mxu0 0.0
    %91 = vmatpush1.msra.mxu0 %v70
    %92 = vmatprep.subr.mxu0 0.0
    %93 = vmatpush1.msra.mxu0 %v78
    %94 = vmatprep.subr.mxu0 0.0
    %95 = vmatpush1.msra.mxu0 0.0
    %96 = vmatprep.subr.mxu0 0.0
    %97 = vmatpush1.msra.mxu0 0.0
    %98 = vmatprep.subr.mxu0 0.0
    %99 = vmatpush1.msra.mxu0 0.0
    %100 = vmatprep.subr.mxu0 0.0
    %101 = vmatpush1.msra.mxu0 0.0
    %102 = vmatprep.subr.mxu0 0.0
    %103 = vmatpush1.msra.mxu0 0.0
    %104 = vmatprep.subr.mxu0 0.0
    %105 = vmatpush1.msra.mxu0 0.0
    %106 = vmatprep.subr.mxu0 0.0
    %107 = vmatpush1.msra.mxu0 0.0
    %108 = vmatprep.subr.mxu0 0.0
    %109 = vmatpush1.msra.mxu0 0.0
    %110 = vmatprep.subr.mxu0 0.0
    %111 = vmatpush1.msra.mxu0 0.0
    %112 = vmatprep.subr.mxu0 0.0
    %113 = vmatpush1.msra.mxu0 0.0
    %114 = vmatprep.subr.mxu0 0.0
    %115 = vmatpush1.msra.mxu0 0.0
    %116 = vmatprep.subr.mxu0 0.0
    %117 = vmatpush1.msra.mxu0 0.0
    %118 = vmatprep.subr.mxu0 0.0
    %119 = vmatpush1.msra.mxu0 0.0
    %120 = vmatprep.subr.mxu0 0.0
    %121 = vmatpush1.msra.mxu0 0.0
    %122 = vmatprep.subr.mxu0 0.0
    %123 = vmatpush1.msra.mxu0 0.0
    %124 = vmatprep.subr.mxu0 0.0
    %125 = vmatpush1.msra.mxu0 0.0
    %126 = vmatprep.subr.mxu0 0.0
    %127 = vmatpush1.msra.mxu0 0.0
    %128 = vmatprep.subr.mxu0 0.0
    %129 = vmatpush1.msra.mxu0 0.0
    %130 = vmatprep.subr.mxu0 0.0
    %131 = vmatpush1.msra.mxu0 0.0
    %132 = vmatprep.subr.mxu0 0.0
    %133 = vmatpush1.msra.mxu0 0.0
    %134 = vmatprep.subr.mxu0 0.0
    %135 = vmatpush1.msra.mxu0 0.0
    %136 = vmatprep.subr.mxu0 0.0
    %137 = vmatpush1.msra.mxu0 0.0
    %138 = vmatprep.subr.mxu0 0.0
    %139 = vmatpush1.msra.mxu0 0.0
    %140 = vmatprep.subr.mxu0 0.0
    %141 = vmatpush1.msra.mxu0 0.0
    %142 = vmatprep.subr.mxu0 0.0
    %143 = vmatpush1.msra.mxu0 0.0
    %144 = vmatprep.mubr.f32.mxu0 0.0
    %145 = vmatmul.mubr.f32.gmra.mrb[0].mxu0 %v74
    %v146 = vpop.f32.mrb[0].mxu0
    %v147 = vadd.f32 0.0, %v146
    %v148 = vpop.f32.mrb[0].mxu0
    %149 = vdwg.mxu0
    %v150 = vld [vmem:[%s3] sm:$0xff]
    %v151 = vld [vmem:[%s3 + $0x8] sm:$0xf]
    %vm152 = vcmask 97280
    %v154 = vsel %vm152, %v64, 0
    %vm156 = vcmask 1043456
    %v158 = vsel %vm156, %v151, 0
    %160 = vmatprep.subr.mxu0 0.0
    %161 = vmatpush1.msra.mxu0 %v150
    %162 = vmatprep.subr.mxu0 0.0
    %163 = vmatpush1.msra.mxu0 %v158
    %164 = vmatprep.subr.mxu0 0.0
    %165 = vmatpush1.msra.mxu0 0.0
    %166 = vmatprep.subr.mxu0 0.0
    %167 = vmatpush1.msra.mxu0 0.0
    %168 = vmatprep.subr.mxu0 0.0
    %169 = vmatpush1.msra.mxu0 0.0
    %170 = vmatprep.subr.mxu0 0.0
    %171 = vmatpush1.msra.mxu0 0.0
    %172 = vmatprep.subr.mxu0 0.0
    %173 = vmatpush1.msra.mxu0 0.0
    %174 = vmatprep.subr.mxu0 0.0
    %175 = vmatpush1.msra.mxu0 0.0
    %176 = vmatprep.subr.mxu0 0.0
    %177 = vmatpush1.msra.mxu0 0.0
    %178 = vmatprep.subr.mxu0 0.0
    %179 = vmatpush1.msra.mxu0 0.0
    %180 = vmatprep.subr.mxu0 0.0
    %181 = vmatpush1.msra.mxu0 0.0
    %182 = vmatprep.subr.mxu0 0.0
    %183 = vmatpush1.msra.mxu0 0.0
    %184 = vmatprep.subr.mxu0 0.0
    %185 = vmatpush1.msra.mxu0 0.0
    %186 = vmatprep.subr.mxu0 0.0
    %187 = vmatpush1.msra.mxu0 0.0
    %188 = vmatprep.subr.mxu0 0.0
    %189 = vmatpush1.msra.mxu0 0.0
    %190 = vmatprep.subr.mxu0 0.0
    %191 = vmatpush1.msra.mxu0 0.0
    %192 = vmatprep.subr.mxu0 0.0
    %193 = vmatpush1.msra.mxu0 0.0
    %194 = vmatprep.subr.mxu0 0.0
    %195 = vmatpush1.msra.mxu0 0.0
    %196 = vmatprep.subr.mxu0 0.0
    %197 = vmatpush1.msra.mxu0 0.0
    %198 = vmatprep.subr.mxu0 0.0
    %199 = vmatpush1.msra.mxu0 0.0
    %200 = vmatprep.subr.mxu0 0.0
    %201 = vmatpush1.msra.mxu0 0.0
    %202 = vmatprep.subr.mxu0 0.0
    %203 = vmatpush1.msra.mxu0 0.0
    %204 = vmatprep.subr.mxu0 0.0
    %205 = vmatpush1.msra.mxu0 0.0
    %206 = vmatprep.subr.mxu0 0.0
    %207 = vmatpush1.msra.mxu0 0.0
    %208 = vmatprep.subr.mxu0 0.0
    %209 = vmatpush1.msra.mxu0 0.0
    %210 = vmatprep.subr.mxu0 0.0
    %211 = vmatpush1.msra.mxu0 0.0
    %212 = vmatprep.subr.mxu0 0.0
    %213 = vmatpush1.msra.mxu0 0.0
    %214 = vmatprep.subr.mxu0 0.0
    %215 = vmatpush1.msra.mxu0 0.0
    %216 = vmatprep.subr.mxu0 0.0
    %217 = vmatpush1.msra.mxu0 0.0
    %218 = vmatprep.subr.mxu0 0.0
    %219 = vmatpush1.msra.mxu0 0.0
    %220 = vmatprep.subr.mxu0 0.0
    %221 = vmatpush1.msra.mxu0 0.0
    %222 = vmatprep.subr.mxu0 0.0
    %223 = vmatpush1.msra.mxu0 0.0
    %224 = vmatprep.mubr.f32.mxu0 0.0
    %225 = vmatmul.mubr.f32.gmra.mrb[0].mxu0 %v154
    %v226 = vpop.f32.mrb[0].mxu0
    %v227 = vadd.f32 0.0, %v226
    %v228 = vpop.f32.mrb[0].mxu0
    %229 = vdwg.mxu0
    %v230 = vld [vmem:[%s6] sm:$0xff]
    %v231 = vld [vmem:[%s6 + $0x8] sm:$0xff]
    %v232 = vld [vmem:[%s6 + $0x10] sm:$0xff]
    %v233 = vld [vmem:[%s6 + $0x18] sm:$0xff]
    %v234 = vld [vmem:[%s6 + $0x20] sm:$0xff]
    %v235 = vld [vmem:[%s6 + $0x28] sm:$0xff]
    %v236 = vld [vmem:[%s6 + $0x30] sm:$0xff]
    %v237 = vld [vmem:[%s6 + $0x38] sm:$0xff]
    %v238 = vld [vmem:[%s7] sm:$0xff]
    %v239 = vld [vmem:[%s7 + $0x8] sm:$0xff]
    %v240 = vld [vmem:[%s7 + $0x10] sm:$0xff]
    %v241 = vld [vmem:[%s7 + $0x18] sm:$0xff]
    %v242 = vld [vmem:[%s7 + $0x20] sm:$0xff]
    %v243 = vld [vmem:[%s7 + $0x28] sm:$0xff]
    %v244 = vld [vmem:[%s7 + $0x30] sm:$0xff]
    %v245 = vld [vmem:[%s7 + $0x38] sm:$0xff]
    %vm246 = vcmask 130048
    %v248 = vsel %vm246, %v227, 0
    %250 = vmatprep.subr.mxu0 %v239
    %251 = vmatpush1.msra.mxu0 %v238
    %252 = vmatprep.subr.mxu0 %v243
    %253 = vmatpush1.msra.mxu0 %v242
    %254 = vmatprep.subr.mxu0 0.0
    %255 = vmatpush1.msra.mxu0 0.0
    %256 = vmatprep.subr.mxu0 0.0
    %257 = vmatpush1.msra.mxu0 0.0
    %258 = vmatprep.subr.mxu0 0.0
    %259 = vmatpush1.msra.mxu0 0.0
    %260 = vmatprep.subr.mxu0 0.0
    %261 = vmatpush1.msra.mxu0 0.0
    %262 = vmatprep.subr.mxu0 0.0
    %263 = vmatpush1.msra.mxu0 0.0
    %264 = vmatprep.subr.mxu0 0.0
    %265 = vmatpush1.msra.mxu0 0.0
    %266 = vmatprep.subr.mxu0 0.0
    %267 = vmatpush1.msra.mxu0 0.0
    %268 = vmatprep.subr.mxu0 0.0
    %269 = vmatpush1.msra.mxu0 0.0
    %270 = vmatprep.subr.mxu0 0.0
    %271 = vmatpush1.msra.mxu0 0.0
    %272 = vmatprep.subr.mxu0 0.0
    %273 = vmatpush1.msra.mxu0 0.0
    %274 = vmatprep.subr.mxu0 0.0
    %275 = vmatpush1.msra.mxu0 0.0
    %276 = vmatprep.subr.mxu0 0.0
    %277 = vmatpush1.msra.mxu0 0.0
    %278 = vmatprep.subr.mxu0 0.0
    %279 = vmatpush1.msra.mxu0 0.0
    %280 = vmatprep.subr.mxu0 0.0
    %281 = vmatpush1.msra.mxu0 0.0
    %282 = vmatprep.subr.mxu0 0.0
    %283 = vmatpush1.msra.mxu0 0.0
    %284 = vmatprep.subr.mxu0 0.0
    %285 = vmatpush1.msra.mxu0 0.0
    %286 = vmatprep.subr.mxu0 0.0
    %287 = vmatpush1.msra.mxu0 0.0
    %288 = vmatprep.subr.mxu0 0.0
    %289 = vmatpush1.msra.mxu0 0.0
    %290 = vmatprep.subr.mxu0 0.0
    %291 = vmatpush1.msra.mxu0 0.0
    %292 = vmatprep.subr.mxu0 0.0
    %293 = vmatpush1.msra.mxu0 0.0
    %294 = vmatprep.subr.mxu0 0.0
    %295 = vmatpush1.msra.mxu0 0.0
    %296 = vmatprep.subr.mxu0 0.0
    %297 = vmatpush1.msra.mxu0 0.0
    %298 = vmatprep.subr.mxu0 0.0
    %299 = vmatpush1.msra.mxu0 0.0
    %300 = vmatprep.subr.mxu0 0.0
    %301 = vmatpush1.msra.mxu0 0.0
    %302 = vmatprep.subr.mxu0 0.0
    %303 = vmatpush1.msra.mxu0 0.0
    %304 = vmatprep.subr.mxu0 0.0
    %305 = vmatpush1.msra.mxu0 0.0
    %306 = vmatprep.subr.mxu0 0.0
    %307 = vmatpush1.msra.mxu0 0.0
    %308 = vmatprep.subr.mxu0 0.0
    %309 = vmatpush1.msra.mxu0 0.0
    %310 = vmatprep.subr.mxu0 0.0
    %311 = vmatpush1.msra.mxu0 0.0
    %312 = vmatprep.subr.mxu0 0.0
    %313 = vmatpush1.msra.mxu0 0.0
    %314 = vmatprep.mubr.f32.mxu0 0.0
    %315 = vmatmul.mubr.f32.gmra.mrb[0].mxu0 %v248
    %v316 = vpop.f32.mrb[0].mxu0
    %v317 = vadd.f32 0.0, %v316
    %v318 = vpop.f32.mrb[0].mxu0
    %v319 = vadd.f32 0.0, %v318
    %320 = vdwg.mxu0
    %321 = vmatprep.subr.mxu0 %v241
    %322 = vmatpush1.msra.mxu0 %v240
    %323 = vmatprep.subr.mxu0 %v245
    %324 = vmatpush1.msra.mxu0 %v244
    %325 = vmatprep.subr.mxu0 0.0
    %326 = vmatpush1.msra.mxu0 0.0
    %327 = vmatprep.subr.mxu0 0.0
    %328 = vmatpush1.msra.mxu0 0.0
    %329 = vmatprep.subr.mxu0 0.0
    %330 = vmatpush1.msra.mxu0 0.0
    %331 = vmatprep.subr.mxu0 0.0
    %332 = vmatpush1.msra.mxu0 0.0
    %333 = vmatprep.subr.mxu0 0.0
    %334 = vmatpush1.msra.mxu0 0.0
    %335 = vmatprep.subr.mxu0 0.0
    %336 = vmatpush1.msra.mxu0 0.0
    %337 = vmatprep.subr.mxu0 0.0
    %338 = vmatpush1.msra.mxu0 0.0
    %339 = vmatprep.subr.mxu0 0.0
    %340 = vmatpush1.msra.mxu0 0.0
    %341 = vmatprep.subr.mxu0 0.0
    %342 = vmatpush1.msra.mxu0 0.0
    %343 = vmatprep.subr.mxu0 0.0
    %344 = vmatpush1.msra.mxu0 0.0
    %345 = vmatprep.subr.mxu0 0.0
    %346 = vmatpush1.msra.mxu0 0.0
    %347 = vmatprep.subr.mxu0 0.0
    %348 = vmatpush1.msra.mxu0 0.0
    %349 = vmatprep.subr.mxu0 0.0
    %350 = vmatpush1.msra.mxu0 0.0
    %351 = vmatprep.subr.mxu0 0.0
    %352 = vmatpush1.msra.mxu0 0.0
    %353 = vmatprep.subr.mxu0 0.0
    %354 = vmatpush1.msra.mxu0 0.0
    %355 = vmatprep.subr.mxu0 0.0
    %356 = vmatpush1.msra.mxu0 0.0
    %357 = vmatprep.subr.mxu0 0.0
    %358 = vmatpush1.msra.mxu0 0.0
    %359 = vmatprep.subr.mxu0 0.0
    %360 = vmatpush1.msra.mxu0 0.0
    %361 = vmatprep.subr.mxu0 0.0
    %362 = vmatpush1.msra.mxu0 0.0
    %363 = vmatprep.subr.mxu0 0.0
    %364 = vmatpush1.msra.mxu0 0.0
    %365 = vmatprep.subr.mxu0 0.0
    %366 = vmatpush1.msra.mxu0 0.0
    %367 = vmatprep.subr.mxu0 0.0
    %368 = vmatpush1.msra.mxu0 0.0
    %369 = vmatprep.subr.mxu0 0.0
    %370 = vmatpush1.msra.mxu0 0.0
    %371 = vmatprep.subr.mxu0 0.0
    %372 = vmatpush1.msra.mxu0 0.0
    %373 = vmatprep.subr.mxu0 0.0
    %374 = vmatpush1.msra.mxu0 0.0
    %375 = vmatprep.subr.mxu0 0.0
    %376 = vmatpush1.msra.mxu0 0.0
    %377 = vmatprep.subr.mxu0 0.0
    %378 = vmatpush1.msra.mxu0 0.0
    %379 = vmatprep.subr.mxu0 0.0
    %380 = vmatpush1.msra.mxu0 0.0
    %381 = vmatprep.subr.mxu0 0.0
    %382 = vmatpush1.msra.mxu0 0.0
    %383 = vmatprep.subr.mxu0 0.0
    %384 = vmatpush1.msra.mxu0 0.0
    %385 = vmatprep.mubr.f32.mxu0 0.0
    %386 = vmatmul.mubr.f32.gmra.mrb[0].mxu0 %v248
    %v387 = vpop.f32.mrb[0].mxu0
    %v388 = vadd.f32 0.0, %v387
    %v389 = vpop.f32.mrb[0].mxu0
    %v390 = vadd.f32 0.0, %v389
    %391 = vdwg.mxu0
    %v393 = vsel %vm246, %v147, 0
    %395 = vmatprep.subr.mxu0 %v231
    %396 = vmatpush1.msra.mxu0 %v230
    %397 = vmatprep.subr.mxu0 %v235
    %398 = vmatpush1.msra.mxu0 %v234
    %399 = vmatprep.subr.mxu0 0.0
    %400 = vmatpush1.msra.mxu0 0.0
    %401 = vmatprep.subr.mxu0 0.0
    %402 = vmatpush1.msra.mxu0 0.0
    %403 = vmatprep.subr.mxu0 0.0
    %404 = vmatpush1.msra.mxu0 0.0
    %405 = vmatprep.subr.mxu0 0.0
    %406 = vmatpush1.msra.mxu0 0.0
    %407 = vmatprep.subr.mxu0 0.0
    %408 = vmatpush1.msra.mxu0 0.0
    %409 = vmatprep.subr.mxu0 0.0
    %410 = vmatpush1.msra.mxu0 0.0
    %411 = vmatprep.subr.mxu0 0.0
    %412 = vmatpush1.msra.mxu0 0.0
    %413 = vmatprep.subr.mxu0 0.0
    %414 = vmatpush1.msra.mxu0 0.0
    %415 = vmatprep.subr.mxu0 0.0
    %416 = vmatpush1.msra.mxu0 0.0
    %417 = vmatprep.subr.mxu0 0.0
    %418 = vmatpush1.msra.mxu0 0.0
    %419 = vmatprep.subr.mxu0 0.0
    %420 = vmatpush1.msra.mxu0 0.0
    %421 = vmatprep.subr.mxu0 0.0
    %422 = vmatpush1.msra.mxu0 0.0
    %423 = vmatprep.subr.mxu0 0.0
    %424 = vmatpush1.msra.mxu0 0.0
    %425 = vmatprep.subr.mxu0 0.0
    %426 = vmatpush1.msra.mxu0 0.0
    %427 = vmatprep.subr.mxu0 0.0
    %428 = vmatpush1.msra.mxu0 0.0
    %429 = vmatprep.subr.mxu0 0.0
    %430 = vmatpush1.msra.mxu0 0.0
    %431 = vmatprep.subr.mxu0 0.0
    %432 = vmatpush1.msra.mxu0 0.0
    %433 = vmatprep.subr.mxu0 0.0
    %434 = vmatpush1.msra.mxu0 0.0
    %435 = vmatprep.subr.mxu0 0.0
    %436 = vmatpush1.msra.mxu0 0.0
    %437 = vmatprep.subr.mxu0 0.0
    %438 = vmatpush1.msra.mxu0 0.0
    %439 = vmatprep.subr.mxu0 0.0
    %440 = vmatpush1.msra.mxu0 0.0
    %441 = vmatprep.subr.mxu0 0.0
    %442 = vmatpush1.msra.mxu0 0.0
    %443 = vmatprep.subr.mxu0 0.0
    %444 = vmatpush1.msra.mxu0 0.0
    %445 = vmatprep.subr.mxu0 0.0
    %446 = vmatpush1.msra.mxu0 0.0
    %447 = vmatprep.subr.mxu0 0.0
    %448 = vmatpush1.msra.mxu0 0.0
    %449 = vmatprep.subr.mxu0 0.0
    %450 = vmatpush1.msra.mxu0 0.0
    %451 = vmatprep.subr.mxu0 0.0
    %452 = vmatpush1.msra.mxu0 0.0
    %453 = vmatprep.subr.mxu0 0.0
    %454 = vmatpush1.msra.mxu0 0.0
    %455 = vmatprep.subr.mxu0 0.0
    %456 = vmatpush1.msra.mxu0 0.0
    %457 = vmatprep.subr.mxu0 0.0
    %458 = vmatpush1.msra.mxu0 0.0
    %459 = vmatprep.mubr.f32.mxu0 0.0
    %460 = vmatmul.mubr.f32.gmra.mrb[0].mxu0 %v393
    %v461 = vpop.f32.mrb[0].mxu0
    %v462 = vadd.f32 %v317, %v461
    %v463 = vpop.f32.mrb[0].mxu0
    %v464 = vadd.f32 %v319, %v463
    %465 = vdwg.mxu0
    %466 = vmatprep.subr.mxu0 %v233
    %467 = vmatpush1.msra.mxu0 %v232
    %468 = vmatprep.subr.mxu0 %v237
    %469 = vmatpush1.msra.mxu0 %v236
    %470 = vmatprep.subr.mxu0 0.0
    %471 = vmatpush1.msra.mxu0 0.0
    %472 = vmatprep.subr.mxu0 0.0
    %473 = vmatpush1.msra.mxu0 0.0
    %474 = vmatprep.subr.mxu0 0.0
    %475 = vmatpush1.msra.mxu0 0.0
    %476 = vmatprep.subr.mxu0 0.0
    %477 = vmatpush1.msra.mxu0 0.0
    %478 = vmatprep.subr.mxu0 0.0
    %479 = vmatpush1.msra.mxu0 0.0
    %480 = vmatprep.subr.mxu0 0.0
    %481 = vmatpush1.msra.mxu0 0.0
    %482 = vmatprep.subr.mxu0 0.0
    %483 = vmatpush1.msra.mxu0 0.0
    %484 = vmatprep.subr.mxu0 0.0
    %485 = vmatpush1.msra.mxu0 0.0
    %486 = vmatprep.subr.mxu0 0.0
    %487 = vmatpush1.msra.mxu0 0.0
    %488 = vmatprep.subr.mxu0 0.0
    %489 = vmatpush1.msra.mxu0 0.0
    %490 = vmatprep.subr.mxu0 0.0
    %491 = vmatpush1.msra.mxu0 0.0
    %492 = vmatprep.subr.mxu0 0.0
    %493 = vmatpush1.msra.mxu0 0.0
    %494 = vmatprep.subr.mxu0 0.0
    %495 = vmatpush1.msra.mxu0 0.0
    %496 = vmatprep.subr.mxu0 0.0
    %497 = vmatpush1.msra.mxu0 0.0
    %498 = vmatprep.subr.mxu0 0.0
    %499 = vmatpush1.msra.mxu0 0.0
    %500 = vmatprep.subr.mxu0 0.0
    %501 = vmatpush1.msra.mxu0 0.0
    %502 = vmatprep.subr.mxu0 0.0
    %503 = vmatpush1.msra.mxu0 0.0
    %504 = vmatprep.subr.mxu0 0.0
    %505 = vmatpush1.msra.mxu0 0.0
    %506 = vmatprep.subr.mxu0 0.0
    %507 = vmatpush1.msra.mxu0 0.0
    %508 = vmatprep.subr.mxu0 0.0
    %509 = vmatpush1.msra.mxu0 0.0
    %510 = vmatprep.subr.mxu0 0.0
    %511 = vmatpush1.msra.mxu0 0.0
    %512 = vmatprep.subr.mxu0 0.0
    %513 = vmatpush1.msra.mxu0 0.0
    %514 = vmatprep.subr.mxu0 0.0
    %515 = vmatpush1.msra.mxu0 0.0
    %516 = vmatprep.subr.mxu0 0.0
    %517 = vmatpush1.msra.mxu0 0.0
    %518 = vmatprep.subr.mxu0 0.0
    %519 = vmatpush1.msra.mxu0 0.0
    %520 = vmatprep.subr.mxu0 0.0
    %521 = vmatpush1.msra.mxu0 0.0
    %522 = vmatprep.subr.mxu0 0.0
    %523 = vmatpush1.msra.mxu0 0.0
    %524 = vmatprep.subr.mxu0 0.0
    %525 = vmatpush1.msra.mxu0 0.0
    %526 = vmatprep.subr.mxu0 0.0
    %527 = vmatpush1.msra.mxu0 0.0
    %528 = vmatprep.subr.mxu0 0.0
    %529 = vmatpush1.msra.mxu0 0.0
    %530 = vmatprep.mubr.f32.mxu0 0.0
    %531 = vmatmul.mubr.f32.gmra.mrb[0].mxu0 %v393
    %v532 = vpop.f32.mrb[0].mxu0
    %v533 = vadd.f32 %v388, %v532
    %v534 = vpop.f32.mrb[0].mxu0
    %v535 = vadd.f32 %v390, %v534
    %536 = vdwg.mxu0
    %v537 = vld [vmem:[%s8] sm:$0xff]
    %v538 = vld [vmem:[%s8 + $0x8] sm:$0xff]
    %v539 = vld [vmem:[%s8 + $0x10] sm:$0xff]
    %v540 = vld [vmem:[%s8 + $0x18] sm:$0xff]
    %v541 = vld [vmem:[%s8 + $0x20] sm:$0xff]
    %v542 = vld [vmem:[%s8 + $0x28] sm:$0xff]
    %v543 = vld [vmem:[%s8 + $0x30] sm:$0xff]
    %v544 = vld [vmem:[%s8 + $0x38] sm:$0xff]
    %v545 = vld [vmem:[%s9] sm:$0xff]
    %v546 = vld [vmem:[%s9 + $0x8] sm:$0xff]
    %v547 = vld [vmem:[%s9 + $0x10] sm:$0xff]
    %v548 = vld [vmem:[%s9 + $0x18] sm:$0xff]
    %v549 = vld [vmem:[%s9 + $0x20] sm:$0xff]
    %v550 = vld [vmem:[%s9 + $0x28] sm:$0xff]
    %v551 = vld [vmem:[%s9 + $0x30] sm:$0xff]
    %v552 = vld [vmem:[%s9 + $0x38] sm:$0xff]
    %553 = vmatprep.subr.mxu0 %v546
    %554 = vmatpush1.msra.mxu0 %v545
    %555 = vmatprep.subr.mxu0 %v550
    %556 = vmatpush1.msra.mxu0 %v549
    %557 = vmatprep.subr.mxu0 0.0
    %558 = vmatpush1.msra.mxu0 0.0
    %559 = vmatprep.subr.mxu0 0.0
    %560 = vmatpush1.msra.mxu0 0.0
    %561 = vmatprep.subr.mxu0 0.0
    %562 = vmatpush1.msra.mxu0 0.0
    %563 = vmatprep.subr.mxu0 0.0
    %564 = vmatpush1.msra.mxu0 0.0
    %565 = vmatprep.subr.mxu0 0.0
    %566 = vmatpush1.msra.mxu0 0.0
    %567 = vmatprep.subr.mxu0 0.0
    %568 = vmatpush1.msra.mxu0 0.0
    %569 = vmatprep.subr.mxu0 0.0
    %570 = vmatpush1.msra.mxu0 0.0
    %571 = vmatprep.subr.mxu0 0.0
    %572 = vmatpush1.msra.mxu0 0.0
    %573 = vmatprep.subr.mxu0 0.0
    %574 = vmatpush1.msra.mxu0 0.0
    %575 = vmatprep.subr.mxu0 0.0
    %576 = vmatpush1.msra.mxu0 0.0
    %577 = vmatprep.subr.mxu0 0.0
    %578 = vmatpush1.msra.mxu0 0.0
    %579 = vmatprep.subr.mxu0 0.0
    %580 = vmatpush1.msra.mxu0 0.0
    %581 = vmatprep.subr.mxu0 0.0
    %582 = vmatpush1.msra.mxu0 0.0
    %583 = vmatprep.subr.mxu0 0.0
    %584 = vmatpush1.msra.mxu0 0.0
    %585 = vmatprep.subr.mxu0 0.0
    %586 = vmatpush1.msra.mxu0 0.0
    %587 = vmatprep.subr.mxu0 0.0
    %588 = vmatpush1.msra.mxu0 0.0
    %589 = vmatprep.subr.mxu0 0.0
    %590 = vmatpush1.msra.mxu0 0.0
    %591 = vmatprep.subr.mxu0 0.0
    %592 = vmatpush1.msra.mxu0 0.0
    %593 = vmatprep.subr.mxu0 0.0
    %594 = vmatpush1.msra.mxu0 0.0
    %595 = vmatprep.subr.mxu0 0.0
    %596 = vmatpush1.msra.mxu0 0.0
    %597 = vmatprep.subr.mxu0 0.0
    %598 = vmatpush1.msra.mxu0 0.0
    %599 = vmatprep.subr.mxu0 0.0
    %600 = vmatpush1.msra.mxu0 0.0
    %601 = vmatprep.subr.mxu0 0.0
    %602 = vmatpush1.msra.mxu0 0.0
    %603 = vmatprep.subr.mxu0 0.0
    %604 = vmatpush1.msra.mxu0 0.0
    %605 = vmatprep.subr.mxu0 0.0
    %606 = vmatpush1.msra.mxu0 0.0
    %607 = vmatprep.subr.mxu0 0.0
    %608 = vmatpush1.msra.mxu0 0.0
    %609 = vmatprep.subr.mxu0 0.0
    %610 = vmatpush1.msra.mxu0 0.0
    %611 = vmatprep.subr.mxu0 0.0
    %612 = vmatpush1.msra.mxu0 0.0
    %613 = vmatprep.subr.mxu0 0.0
    %614 = vmatpush1.msra.mxu0 0.0
    %615 = vmatprep.subr.mxu0 0.0
    %616 = vmatpush1.msra.mxu0 0.0
    %617 = vmatprep.mubr.f32.mxu0 0.0
    %618 = vmatmul.mubr.f32.gmra.mrb[0].mxu0 %v248
    %v619 = vpop.f32.mrb[0].mxu0
    %v620 = vadd.f32 0.0, %v619
    %v621 = vpop.f32.mrb[0].mxu0
    %v622 = vadd.f32 0.0, %v621
    %623 = vdwg.mxu0
    %624 = vmatprep.subr.mxu0 %v548
    %625 = vmatpush1.msra.mxu0 %v547
    %626 = vmatprep.subr.mxu0 %v552
    %627 = vmatpush1.msra.mxu0 %v551
    %628 = vmatprep.subr.mxu0 0.0
    %629 = vmatpush1.msra.mxu0 0.0
    %630 = vmatprep.subr.mxu0 0.0
    %631 = vmatpush1.msra.mxu0 0.0
    %632 = vmatprep.subr.mxu0 0.0
    %633 = vmatpush1.msra.mxu0 0.0
    %634 = vmatprep.subr.mxu0 0.0
    %635 = vmatpush1.msra.mxu0 0.0
    %636 = vmatprep.subr.mxu0 0.0
    %637 = vmatpush1.msra.mxu0 0.0
    %638 = vmatprep.subr.mxu0 0.0
    %639 = vmatpush1.msra.mxu0 0.0
    %640 = vmatprep.subr.mxu0 0.0
    %641 = vmatpush1.msra.mxu0 0.0
    %642 = vmatprep.subr.mxu0 0.0
    %643 = vmatpush1.msra.mxu0 0.0
    %644 = vmatprep.subr.mxu0 0.0
    %645 = vmatpush1.msra.mxu0 0.0
    %646 = vmatprep.subr.mxu0 0.0
    %647 = vmatpush1.msra.mxu0 0.0
    %648 = vmatprep.subr.mxu0 0.0
    %649 = vmatpush1.msra.mxu0 0.0
    %650 = vmatprep.subr.mxu0 0.0
    %651 = vmatpush1.msra.mxu0 0.0
    %652 = vmatprep.subr.mxu0 0.0
    %653 = vmatpush1.msra.mxu0 0.0
    %654 = vmatprep.subr.mxu0 0.0
    %655 = vmatpush1.msra.mxu0 0.0
    %656 = vmatprep.subr.mxu0 0.0
    %657 = vmatpush1.msra.mxu0 0.0
    %658 = vmatprep.subr.mxu0 0.0
    %659 = vmatpush1.msra.mxu0 0.0
    %660 = vmatprep.subr.mxu0 0.0
    %661 = vmatpush1.msra.mxu0 0.0
    %662 = vmatprep.subr.mxu0 0.0
    %663 = vmatpush1.msra.mxu0 0.0
    %664 = vmatprep.subr.mxu0 0.0
    %665 = vmatpush1.msra.mxu0 0.0
    %666 = vmatprep.subr.mxu0 0.0
    %667 = vmatpush1.msra.mxu0 0.0
    %668 = vmatprep.subr.mxu0 0.0
    %669 = vmatpush1.msra.mxu0 0.0
    %670 = vmatprep.subr.mxu0 0.0
    %671 = vmatpush1.msra.mxu0 0.0
    %672 = vmatprep.subr.mxu0 0.0
    %673 = vmatpush1.msra.mxu0 0.0
    %674 = vmatprep.subr.mxu0 0.0
    %675 = vmatpush1.msra.mxu0 0.0
    %676 = vmatprep.subr.mxu0 0.0
    %677 = vmatpush1.msra.mxu0 0.0
    %678 = vmatprep.subr.mxu0 0.0
    %679 = vmatpush1.msra.mxu0 0.0
    %680 = vmatprep.subr.mxu0 0.0
    %681 = vmatpush1.msra.mxu0 0.0
    %682 = vmatprep.subr.mxu0 0.0
    %683 = vmatpush1.msra.mxu0 0.0
    %684 = vmatprep.subr.mxu0 0.0
    %685 = vmatpush1.msra.mxu0 0.0
    %686 = vmatprep.subr.mxu0 0.0
    %687 = vmatpush1.msra.mxu0 0.0
    %688 = vmatprep.mubr.f32.mxu0 0.0
    %689 = vmatmul.mubr.f32.gmra.mrb[0].mxu0 %v248
    %v690 = vpop.f32.mrb[0].mxu0
    %v691 = vadd.f32 0.0, %v690
    %v692 = vpop.f32.mrb[0].mxu0
    %v693 = vadd.f32 0.0, %v692
    %694 = vdwg.mxu0
    %695 = vmatprep.subr.mxu0 %v538
    %696 = vmatpush1.msra.mxu0 %v537
    %697 = vmatprep.subr.mxu0 %v542
    %698 = vmatpush1.msra.mxu0 %v541
    %699 = vmatprep.subr.mxu0 0.0
    %700 = vmatpush1.msra.mxu0 0.0
    %701 = vmatprep.subr.mxu0 0.0
    %702 = vmatpush1.msra.mxu0 0.0
    %703 = vmatprep.subr.mxu0 0.0
    %704 = vmatpush1.msra.mxu0 0.0
    %705 = vmatprep.subr.mxu0 0.0
    %706 = vmatpush1.msra.mxu0 0.0
    %707 = vmatprep.subr.mxu0 0.0
    %708 = vmatpush1.msra.mxu0 0.0
    %709 = vmatprep.subr.mxu0 0.0
    %710 = vmatpush1.msra.mxu0 0.0
    %711 = vmatprep.subr.mxu0 0.0
    %712 = vmatpush1.msra.mxu0 0.0
    %713 = vmatprep.subr.mxu0 0.0
    %714 = vmatpush1.msra.mxu0 0.0
    %715 = vmatprep.subr.mxu0 0.0
    %716 = vmatpush1.msra.mxu0 0.0
    %717 = vmatprep.subr.mxu0 0.0
    %718 = vmatpush1.msra.mxu0 0.0
    %719 = vmatprep.subr.mxu0 0.0
    %720 = vmatpush1.msra.mxu0 0.0
    %721 = vmatprep.subr.mxu0 0.0
    %722 = vmatpush1.msra.mxu0 0.0
    %723 = vmatprep.subr.mxu0 0.0
    %724 = vmatpush1.msra.mxu0 0.0
    %725 = vmatprep.subr.mxu0 0.0
    %726 = vmatpush1.msra.mxu0 0.0
    %727 = vmatprep.subr.mxu0 0.0
    %728 = vmatpush1.msra.mxu0 0.0
    %729 = vmatprep.subr.mxu0 0.0
    %730 = vmatpush1.msra.mxu0 0.0
    %731 = vmatprep.subr.mxu0 0.0
    %732 = vmatpush1.msra.mxu0 0.0
    %733 = vmatprep.subr.mxu0 0.0
    %734 = vmatpush1.msra.mxu0 0.0
    %735 = vmatprep.subr.mxu0 0.0
    %736 = vmatpush1.msra.mxu0 0.0
    %737 = vmatprep.subr.mxu0 0.0
    %738 = vmatpush1.msra.mxu0 0.0
    %739 = vmatprep.subr.mxu0 0.0
    %740 = vmatpush1.msra.mxu0 0.0
    %741 = vmatprep.subr.mxu0 0.0
    %742 = vmatpush1.msra.mxu0 0.0
    %743 = vmatprep.subr.mxu0 0.0
    %744 = vmatpush1.msra.mxu0 0.0
    %745 = vmatprep.subr.mxu0 0.0
    %746 = vmatpush1.msra.mxu0 0.0
    %747 = vmatprep.subr.mxu0 0.0
    %748 = vmatpush1.msra.mxu0 0.0
    %749 = vmatprep.subr.mxu0 0.0
    %750 = vmatpush1.msra.mxu0 0.0
    %751 = vmatprep.subr.mxu0 0.0
    %752 = vmatpush1.msra.mxu0 0.0
    %753 = vmatprep.subr.mxu0 0.0
    %754 = vmatpush1.msra.mxu0 0.0
    %755 = vmatprep.subr.mxu0 0.0
    %756 = vmatpush1.msra.mxu0 0.0
    %757 = vmatprep.subr.mxu0 0.0
    %758 = vmatpush1.msra.mxu0 0.0
    %759 = vmatprep.mubr.f32.mxu0 0.0
    %760 = vmatmul.mubr.f32.gmra.mrb[0].mxu0 %v393
    %v761 = vpop.f32.mrb[0].mxu0
    %v762 = vadd.f32 %v620, %v761
    %v763 = vpop.f32.mrb[0].mxu0
    %v764 = vadd.f32 %v622, %v763
    %765 = vdwg.mxu0
    %766 = vmatprep.subr.mxu0 %v540
    %767 = vmatpush1.msra.mxu0 %v539
    %768 = vmatprep.subr.mxu0 %v544
    %769 = vmatpush1.msra.mxu0 %v543
    %770 = vmatprep.subr.mxu0 0.0
    %771 = vmatpush1.msra.mxu0 0.0
    %772 = vmatprep.subr.mxu0 0.0
    %773 = vmatpush1.msra.mxu0 0.0
    %774 = vmatprep.subr.mxu0 0.0
    %775 = vmatpush1.msra.mxu0 0.0
    %776 = vmatprep.subr.mxu0 0.0
    %777 = vmatpush1.msra.mxu0 0.0
    %778 = vmatprep.subr.mxu0 0.0
    %779 = vmatpush1.msra.mxu0 0.0
    %780 = vmatprep.subr.mxu0 0.0
    %781 = vmatpush1.msra.mxu0 0.0
    %782 = vmatprep.subr.mxu0 0.0
    %783 = vmatpush1.msra.mxu0 0.0
    %784 = vmatprep.subr.mxu0 0.0
    %785 = vmatpush1.msra.mxu0 0.0
    %786 = vmatprep.subr.mxu0 0.0
    %787 = vmatpush1.msra.mxu0 0.0
    %788 = vmatprep.subr.mxu0 0.0
    %789 = vmatpush1.msra.mxu0 0.0
    %790 = vmatprep.subr.mxu0 0.0
    %791 = vmatpush1.msra.mxu0 0.0
    %792 = vmatprep.subr.mxu0 0.0
    %793 = vmatpush1.msra.mxu0 0.0
    %794 = vmatprep.subr.mxu0 0.0
    %795 = vmatpush1.msra.mxu0 0.0
    %796 = vmatprep.subr.mxu0 0.0
    %797 = vmatpush1.msra.mxu0 0.0
    %798 = vmatprep.subr.mxu0 0.0
    %799 = vmatpush1.msra.mxu0 0.0
    %800 = vmatprep.subr.mxu0 0.0
    %801 = vmatpush1.msra.mxu0 0.0
    %802 = vmatprep.subr.mxu0 0.0
    %803 = vmatpush1.msra.mxu0 0.0
    %804 = vmatprep.subr.mxu0 0.0
    %805 = vmatpush1.msra.mxu0 0.0
    %806 = vmatprep.subr.mxu0 0.0
    %807 = vmatpush1.msra.mxu0 0.0
    %808 = vmatprep.subr.mxu0 0.0
    %809 = vmatpush1.msra.mxu0 0.0
    %810 = vmatprep.subr.mxu0 0.0
    %811 = vmatpush1.msra.mxu0 0.0
    %812 = vmatprep.subr.mxu0 0.0
    %813 = vmatpush1.msra.mxu0 0.0
    %814 = vmatprep.subr.mxu0 0.0
    %815 = vmatpush1.msra.mxu0 0.0
    %816 = vmatprep.subr.mxu0 0.0
    %817 = vmatpush1.msra.mxu0 0.0
    %818 = vmatprep.subr.mxu0 0.0
    %819 = vmatpush1.msra.mxu0 0.0
    %820 = vmatprep.subr.mxu0 0.0
    %821 = vmatpush1.msra.mxu0 0.0
    %822 = vmatprep.subr.mxu0 0.0
    %823 = vmatpush1.msra.mxu0 0.0
    %824 = vmatprep.subr.mxu0 0.0
    %825 = vmatpush1.msra.mxu0 0.0
    %826 = vmatprep.subr.mxu0 0.0
    %827 = vmatpush1.msra.mxu0 0.0
    %828 = vmatprep.subr.mxu0 0.0
    %829 = vmatpush1.msra.mxu0 0.0
    %830 = vmatprep.mubr.f32.mxu0 0.0
    %831 = vmatmul.mubr.f32.gmra.mrb[0].mxu0 %v393
    %v832 = vpop.f32.mrb[0].mxu0
    %v833 = vadd.f32 %v691, %v832
    %v834 = vpop.f32.mrb[0].mxu0
    %v835 = vadd.f32 %v693, %v834
    %836 = vdwg.mxu0
    %v837 = vlaneseq
    %v838 = vshrl.u32 %v837, 7
    %v839 = vadd.s32 %v838, %v54
    %vm840 = vcmp.eq.s32.totalorder %v839, 7
    %v841 = vsel %vm840, 1.0, 0.0
    %vm842 = vcmask 64512
    %v844 = vsel %vm842, %v841, 0
    %846 = vmatprep.subr.mxu0 %v764
    %847 = vmatpush1.msra.mxu0 %v762
    %848 = vmatprep.subr.mxu0 0.0
    %849 = vmatpush1.msra.mxu0 0.0
    %850 = vmatprep.subr.mxu0 0.0
    %851 = vmatpush1.msra.mxu0 0.0
    %852 = vmatprep.subr.mxu0 0.0
    %853 = vmatpush1.msra.mxu0 0.0
    %854 = vmatprep.subr.mxu0 0.0
    %855 = vmatpush1.msra.mxu0 0.0
    %856 = vmatprep.subr.mxu0 0.0
    %857 = vmatpush1.msra.mxu0 0.0
    %858 = vmatprep.subr.mxu0 0.0
    %859 = vmatpush1.msra.mxu0 0.0
    %860 = vmatprep.subr.mxu0 0.0
    %861 = vmatpush1.msra.mxu0 0.0
    %862 = vmatprep.subr.mxu0 0.0
    %863 = vmatpush1.msra.mxu0 0.0
    %864 = vmatprep.subr.mxu0 0.0
    %865 = vmatpush1.msra.mxu0 0.0
    %866 = vmatprep.subr.mxu0 0.0
    %867 = vmatpush1.msra.mxu0 0.0
    %868 = vmatprep.subr.mxu0 0.0
    %869 = vmatpush1.msra.mxu0 0.0
    %870 = vmatprep.subr.mxu0 0.0
    %871 = vmatpush1.msra.mxu0 0.0
    %872 = vmatprep.subr.mxu0 0.0
    %873 = vmatpush1.msra.mxu0 0.0
    %874 = vmatprep.subr.mxu0 0.0
    %875 = vmatpush1.msra.mxu0 0.0
    %876 = vmatprep.subr.mxu0 0.0
    %877 = vmatpush1.msra.mxu0 0.0
    %878 = vmatprep.subr.mxu0 0.0
    %879 = vmatpush1.msra.mxu0 0.0
    %880 = vmatprep.subr.mxu0 0.0
    %881 = vmatpush1.msra.mxu0 0.0
    %882 = vmatprep.subr.mxu0 0.0
    %883 = vmatpush1.msra.mxu0 0.0
    %884 = vmatprep.subr.mxu0 0.0
    %885 = vmatpush1.msra.mxu0 0.0
    %886 = vmatprep.subr.mxu0 0.0
    %887 = vmatpush1.msra.mxu0 0.0
    %888 = vmatprep.subr.mxu0 0.0
    %889 = vmatpush1.msra.mxu0 0.0
    %890 = vmatprep.subr.mxu0 0.0
    %891 = vmatpush1.msra.mxu0 0.0
    %892 = vmatprep.subr.mxu0 0.0
    %893 = vmatpush1.msra.mxu0 0.0
    %894 = vmatprep.subr.mxu0 0.0
    %895 = vmatpush1.msra.mxu0 0.0
    %896 = vmatprep.subr.mxu0 0.0
    %897 = vmatpush1.msra.mxu0 0.0
    %898 = vmatprep.subr.mxu0 0.0
    %899 = vmatpush1.msra.mxu0 0.0
    %900 = vmatprep.subr.mxu0 0.0
    %901 = vmatpush1.msra.mxu0 0.0
    %902 = vmatprep.subr.mxu0 0.0
    %903 = vmatpush1.msra.mxu0 0.0
    %904 = vmatprep.subr.mxu0 0.0
    %905 = vmatpush1.msra.mxu0 0.0
    %906 = vmatprep.subr.mxu0 0.0
    %907 = vmatpush1.msra.mxu0 0.0
    %908 = vmatprep.subr.mxu0 0.0
    %909 = vmatpush1.msra.mxu0 0.0
    %910 = vmatprep.mubr.f32.mxu0 0.0
    %911 = vmatmul.mubr.f32.gmra.mrb[0].mxu0 %v844
    %v912 = vpop.f32.mrb[0].mxu0
    %v913 = vadd.f32 0.0, %v912
    %v914 = vpop.f32.mrb[0].mxu0
    %v915 = vadd.f32 0.0, %v914
    %916 = vdwg.mxu0
    %917 = vmatprep.subr.mxu0 %v835
    %918 = vmatpush1.msra.mxu0 %v833
    %919 = vmatprep.subr.mxu0 0.0
    %920 = vmatpush1.msra.mxu0 0.0
    %921 = vmatprep.subr.mxu0 0.0
    %922 = vmatpush1.msra.mxu0 0.0
    %923 = vmatprep.subr.mxu0 0.0
    %924 = vmatpush1.msra.mxu0 0.0
    %925 = vmatprep.subr.mxu0 0.0
    %926 = vmatpush1.msra.mxu0 0.0
    %927 = vmatprep.subr.mxu0 0.0
    %928 = vmatpush1.msra.mxu0 0.0
    %929 = vmatprep.subr.mxu0 0.0
    %930 = vmatpush1.msra.mxu0 0.0
    %931 = vmatprep.subr.mxu0 0.0
    %932 = vmatpush1.msra.mxu0 0.0
    %933 = vmatprep.subr.mxu0 0.0
    %934 = vmatpush1.msra.mxu0 0.0
    %935 = vmatprep.subr.mxu0 0.0
    %936 = vmatpush1.msra.mxu0 0.0
    %937 = vmatprep.subr.mxu0 0.0
    %938 = vmatpush1.msra.mxu0 0.0
    %939 = vmatprep.subr.mxu0 0.0
    %940 = vmatpush1.msra.mxu0 0.0
    %941 = vmatprep.subr.mxu0 0.0
    %942 = vmatpush1.msra.mxu0 0.0
    %943 = vmatprep.subr.mxu0 0.0
    %944 = vmatpush1.msra.mxu0 0.0
    %945 = vmatprep.subr.mxu0 0.0
    %946 = vmatpush1.msra.mxu0 0.0
    %947 = vmatprep.subr.mxu0 0.0
    %948 = vmatpush1.msra.mxu0 0.0
    %949 = vmatprep.subr.mxu0 0.0
    %950 = vmatpush1.msra.mxu0 0.0
    %951 = vmatprep.subr.mxu0 0.0
    %952 = vmatpush1.msra.mxu0 0.0
    %953 = vmatprep.subr.mxu0 0.0
    %954 = vmatpush1.msra.mxu0 0.0
    %955 = vmatprep.subr.mxu0 0.0
    %956 = vmatpush1.msra.mxu0 0.0
    %957 = vmatprep.subr.mxu0 0.0
    %958 = vmatpush1.msra.mxu0 0.0
    %959 = vmatprep.subr.mxu0 0.0
    %960 = vmatpush1.msra.mxu0 0.0
    %961 = vmatprep.subr.mxu0 0.0
    %962 = vmatpush1.msra.mxu0 0.0
    %963 = vmatprep.subr.mxu0 0.0
    %964 = vmatpush1.msra.mxu0 0.0
    %965 = vmatprep.subr.mxu0 0.0
    %966 = vmatpush1.msra.mxu0 0.0
    %967 = vmatprep.subr.mxu0 0.0
    %968 = vmatpush1.msra.mxu0 0.0
    %969 = vmatprep.subr.mxu0 0.0
    %970 = vmatpush1.msra.mxu0 0.0
    %971 = vmatprep.subr.mxu0 0.0
    %972 = vmatpush1.msra.mxu0 0.0
    %973 = vmatprep.subr.mxu0 0.0
    %974 = vmatpush1.msra.mxu0 0.0
    %975 = vmatprep.subr.mxu0 0.0
    %976 = vmatpush1.msra.mxu0 0.0
    %977 = vmatprep.subr.mxu0 0.0
    %978 = vmatpush1.msra.mxu0 0.0
    %979 = vmatprep.subr.mxu0 0.0
    %980 = vmatpush1.msra.mxu0 0.0
    %981 = vmatprep.mubr.f32.mxu0 0.0
    %982 = vmatmul.mubr.f32.gmra.mrb[0].mxu0 %v844
    %v983 = vpop.f32.mrb[0].mxu0
    %v984 = vadd.f32 0.0, %v983
    %v985 = vpop.f32.mrb[0].mxu0
    %v986 = vadd.f32 0.0, %v985
    %987 = vdwg.mxu0
    %v988 = vadd.f32 %v462, %v913
    %v989 = vadd.f32 %v464, %v915
    %v990 = vadd.f32 %v533, %v984
    %v991 = vadd.f32 %v535, %v986
    %v992 = vld [vmem:[%s11] sm:$0xf]
    %v994 = vlaneseq
    %v995 = vshrl.u32 %v994, 7
    %v996 = vsub.s32 0, %v995
    %v997 = vrot.slane %v992, %v996
    %v998 = vlaneseq
    %v999 = vshrl.u32 %v998, 7
    %v1000 = vsub.s32 1, %v999
    %v1001 = vrot.slane %v992, %v1000
    %v1002 = vlaneseq
    %v1003 = vshrl.u32 %v1002, 7
    %v1004 = vsub.s32 2, %v1003
    %v1005 = vrot.slane %v992, %v1004
    %v1006 = vlaneseq
    %v1007 = vshrl.u32 %v1006, 7
    %v1008 = vsub.s32 3, %v1007
    %v1009 = vrot.slane %v992, %v1008
    %v1014 = vadd.f32 %v988, %v997
    %v1015 = vadd.f32 %v989, %v1001
    %v1016 = vadd.f32 %v990, %v1005
    %v1017 = vadd.f32 %v991, %v1009
    %v1018 = vld [vmem:[%s10] sm:$0xff]
    %v1019 = vld [vmem:[%s10 + $0x8] sm:$0xff]
    %v1020 = vld [vmem:[%s10 + $0x10] sm:$0xff]
    %v1021 = vld [vmem:[%s10 + $0x18] sm:$0xff]
    %v1022 = vld [vmem:[%s10 + $0x20] sm:$0xff]
    %v1023 = vld [vmem:[%s10 + $0x28] sm:$0xff]
    %v1024 = vld [vmem:[%s10 + $0x30] sm:$0xff]
    %v1025 = vld [vmem:[%s10 + $0x38] sm:$0xff]
    %v1026 = vld [vmem:[%s10 + $0x40] sm:$0xff]
    %v1027 = vld [vmem:[%s10 + $0x48] sm:$0xff]
    %v1028 = vld [vmem:[%s10 + $0x50] sm:$0xff]
    %v1029 = vld [vmem:[%s10 + $0x58] sm:$0xff]
    %v1030 = vld [vmem:[%s10 + $0x60] sm:$0xff]
    %v1031 = vld [vmem:[%s10 + $0x68] sm:$0xff]
    %v1032 = vld [vmem:[%s10 + $0x70] sm:$0xff]
    %v1033 = vld [vmem:[%s10 + $0x78] sm:$0xff]
    %v1034 = vld [vmem:[%s10 + $0x80] sm:$0xff]
    %v1035 = vld [vmem:[%s10 + $0x88] sm:$0xff]
    %v1036 = vld [vmem:[%s10 + $0x90] sm:$0xff]
    %v1037 = vld [vmem:[%s10 + $0x98] sm:$0xff]
    %v1038 = vld [vmem:[%s10 + $0xa0] sm:$0xff]
    %v1039 = vld [vmem:[%s10 + $0xa8] sm:$0xff]
    %v1040 = vld [vmem:[%s10 + $0xb0] sm:$0xff]
    %v1041 = vld [vmem:[%s10 + $0xb8] sm:$0xff]
    %v1042 = vld [vmem:[%s10 + $0xc0] sm:$0xff]
    %v1043 = vld [vmem:[%s10 + $0xc8] sm:$0xff]
    %v1044 = vld [vmem:[%s10 + $0xd0] sm:$0xff]
    %v1045 = vld [vmem:[%s10 + $0xd8] sm:$0xff]
    %v1046 = vld [vmem:[%s10 + $0xe0] sm:$0xff]
    %v1047 = vld [vmem:[%s10 + $0xe8] sm:$0xff]
    %v1048 = vld [vmem:[%s10 + $0xf0] sm:$0xff]
    %v1049 = vld [vmem:[%s10 + $0xf8] sm:$0xff]
    %v1050 = vld [vmem:[%s10 + $0x100] sm:$0xff]
    %v1051 = vld [vmem:[%s10 + $0x108] sm:$0xff]
    %v1052 = vld [vmem:[%s10 + $0x110] sm:$0xff]
    %v1053 = vld [vmem:[%s10 + $0x118] sm:$0xff]
    %v1054 = vld [vmem:[%s10 + $0x120] sm:$0xff]
    %v1055 = vld [vmem:[%s10 + $0x128] sm:$0xff]
    %v1056 = vld [vmem:[%s10 + $0x130] sm:$0xff]
    %v1057 = vld [vmem:[%s10 + $0x138] sm:$0xff]
    %v1058 = vld [vmem:[%s10 + $0x140] sm:$0xff]
    %v1059 = vld [vmem:[%s10 + $0x148] sm:$0xff]
    %v1060 = vld [vmem:[%s10 + $0x150] sm:$0xff]
    %v1061 = vld [vmem:[%s10 + $0x158] sm:$0xff]
    %v1062 = vld [vmem:[%s10 + $0x160] sm:$0xff]
    %v1063 = vld [vmem:[%s10 + $0x168] sm:$0xff]
    %v1064 = vld [vmem:[%s10 + $0x170] sm:$0xff]
    %v1065 = vld [vmem:[%s10 + $0x178] sm:$0xff]
    %v1066 = vld [vmem:[%s10 + $0x180] sm:$0xff]
    %v1067 = vld [vmem:[%s10 + $0x188] sm:$0xff]
    %v1068 = vld [vmem:[%s10 + $0x190] sm:$0xff]
    %v1069 = vld [vmem:[%s10 + $0x198] sm:$0xff]
    %v1070 = vld [vmem:[%s10 + $0x1a0] sm:$0xff]
    %v1071 = vld [vmem:[%s10 + $0x1a8] sm:$0xff]
    %v1072 = vld [vmem:[%s10 + $0x1b0] sm:$0xff]
    %v1073 = vld [vmem:[%s10 + $0x1b8] sm:$0xff]
    %v1074 = vld [vmem:[%s10 + $0x1c0] sm:$0xff]
    %v1075 = vld [vmem:[%s10 + $0x1c8] sm:$0xff]
    %v1076 = vld [vmem:[%s10 + $0x1d0] sm:$0xff]
    %v1077 = vld [vmem:[%s10 + $0x1d8] sm:$0xff]
    %v1078 = vld [vmem:[%s10 + $0x1e0] sm:$0xff]
    %v1079 = vld [vmem:[%s10 + $0x1e8] sm:$0xff]
    %v1080 = vld [vmem:[%s10 + $0x1f0] sm:$0xff]
    %v1081 = vld [vmem:[%s10 + $0x1f8] sm:$0xff]
    %v1082 = vld [vmem:[%s4] sm:$0x1]
    %v1083 = vld [vmem:[%s5] sm:$0x1]
    %1084 = vmatprep.subr.mxu0 %v1019
    %1085 = vmatpush1.msra.mxu0 %v1018
    %1086 = vmatprep.subr.mxu0 %v1023
    %1087 = vmatpush1.msra.mxu0 %v1022
    %1088 = vmatprep.subr.mxu0 %v1027
    %1089 = vmatpush1.msra.mxu0 %v1026
    %1090 = vmatprep.subr.mxu0 %v1031
    %1091 = vmatpush1.msra.mxu0 %v1030
    %1092 = vmatprep.subr.mxu0 %v1035
    %1093 = vmatpush1.msra.mxu0 %v1034
    %1094 = vmatprep.subr.mxu0 %v1039
    %1095 = vmatpush1.msra.mxu0 %v1038
    %1096 = vmatprep.subr.mxu0 %v1043
    %1097 = vmatpush1.msra.mxu0 %v1042
    %1098 = vmatprep.subr.mxu0 %v1047
    %1099 = vmatpush1.msra.mxu0 %v1046
    %1100 = vmatprep.subr.mxu0 %v1051
    %1101 = vmatpush1.msra.mxu0 %v1050
    %1102 = vmatprep.subr.mxu0 %v1055
    %1103 = vmatpush1.msra.mxu0 %v1054
    %1104 = vmatprep.subr.mxu0 %v1059
    %1105 = vmatpush1.msra.mxu0 %v1058
    %1106 = vmatprep.subr.mxu0 %v1063
    %1107 = vmatpush1.msra.mxu0 %v1062
    %1108 = vmatprep.subr.mxu0 %v1067
    %1109 = vmatpush1.msra.mxu0 %v1066
    %1110 = vmatprep.subr.mxu0 %v1071
    %1111 = vmatpush1.msra.mxu0 %v1070
    %1112 = vmatprep.subr.mxu0 %v1075
    %1113 = vmatpush1.msra.mxu0 %v1074
    %1114 = vmatprep.subr.mxu0 %v1079
    %1115 = vmatpush1.msra.mxu0 %v1078
    %1116 = vmatprep.subr.mxu0 0.0
    %1117 = vmatpush1.msra.mxu0 0.0
    %1118 = vmatprep.subr.mxu0 0.0
    %1119 = vmatpush1.msra.mxu0 0.0
    %1120 = vmatprep.subr.mxu0 0.0
    %1121 = vmatpush1.msra.mxu0 0.0
    %1122 = vmatprep.subr.mxu0 0.0
    %1123 = vmatpush1.msra.mxu0 0.0
    %1124 = vmatprep.subr.mxu0 0.0
    %1125 = vmatpush1.msra.mxu0 0.0
    %1126 = vmatprep.subr.mxu0 0.0
    %1127 = vmatpush1.msra.mxu0 0.0
    %1128 = vmatprep.subr.mxu0 0.0
    %1129 = vmatpush1.msra.mxu0 0.0
    %1130 = vmatprep.subr.mxu0 0.0
    %1131 = vmatpush1.msra.mxu0 0.0
    %1132 = vmatprep.subr.mxu0 0.0
    %1133 = vmatpush1.msra.mxu0 0.0
    %1134 = vmatprep.subr.mxu0 0.0
    %1135 = vmatpush1.msra.mxu0 0.0
    %1136 = vmatprep.subr.mxu0 0.0
    %1137 = vmatpush1.msra.mxu0 0.0
    %1138 = vmatprep.subr.mxu0 0.0
    %1139 = vmatpush1.msra.mxu0 0.0
    %1140 = vmatprep.subr.mxu0 0.0
    %1141 = vmatpush1.msra.mxu0 0.0
    %1142 = vmatprep.subr.mxu0 0.0
    %1143 = vmatpush1.msra.mxu0 0.0
    %1144 = vmatprep.subr.mxu0 0.0
    %1145 = vmatpush1.msra.mxu0 0.0
    %1146 = vmatprep.subr.mxu0 0.0
    %1147 = vmatpush1.msra.mxu0 0.0
    %1148 = vmatprep.mubr.f32.mxu0 0.0
    %1149 = vmatmul.mubr.f32.gmra.mrb[0].mxu0 %v1082
    %v1150 = vpop.f32.mrb[0].mxu0
    %v1151 = vadd.f32 %v1014, %v1150
    %v1152 = vpop.f32.mrb[0].mxu0
    %v1153 = vadd.f32 %v1015, %v1152
    %1154 = vdwg.mxu0
    %1155 = vmatprep.subr.mxu0 %v1021
    %1156 = vmatpush1.msra.mxu0 %v1020
    %1157 = vmatprep.subr.mxu0 %v1025
    %1158 = vmatpush1.msra.mxu0 %v1024
    %1159 = vmatprep.subr.mxu0 %v1029
    %1160 = vmatpush1.msra.mxu0 %v1028
    %1161 = vmatprep.subr.mxu0 %v1033
    %1162 = vmatpush1.msra.mxu0 %v1032
    %1163 = vmatprep.subr.mxu0 %v1037
    %1164 = vmatpush1.msra.mxu0 %v1036
    %1165 = vmatprep.subr.mxu0 %v1041
    %1166 = vmatpush1.msra.mxu0 %v1040
    %1167 = vmatprep.subr.mxu0 %v1045
    %1168 = vmatpush1.msra.mxu0 %v1044
    %1169 = vmatprep.subr.mxu0 %v1049
    %1170 = vmatpush1.msra.mxu0 %v1048
    %1171 = vmatprep.subr.mxu0 %v1053
    %1172 = vmatpush1.msra.mxu0 %v1052
    %1173 = vmatprep.subr.mxu0 %v1057
    %1174 = vmatpush1.msra.mxu0 %v1056
    %1175 = vmatprep.subr.mxu0 %v1061
    %1176 = vmatpush1.msra.mxu0 %v1060
    %1177 = vmatprep.subr.mxu0 %v1065
    %1178 = vmatpush1.msra.mxu0 %v1064
    %1179 = vmatprep.subr.mxu0 %v1069
    %1180 = vmatpush1.msra.mxu0 %v1068
    %1181 = vmatprep.subr.mxu0 %v1073
    %1182 = vmatpush1.msra.mxu0 %v1072
    %1183 = vmatprep.subr.mxu0 %v1077
    %1184 = vmatpush1.msra.mxu0 %v1076
    %1185 = vmatprep.subr.mxu0 %v1081
    %1186 = vmatpush1.msra.mxu0 %v1080
    %1187 = vmatprep.subr.mxu0 0.0
    %1188 = vmatpush1.msra.mxu0 0.0
    %1189 = vmatprep.subr.mxu0 0.0
    %1190 = vmatpush1.msra.mxu0 0.0
    %1191 = vmatprep.subr.mxu0 0.0
    %1192 = vmatpush1.msra.mxu0 0.0
    %1193 = vmatprep.subr.mxu0 0.0
    %1194 = vmatpush1.msra.mxu0 0.0
    %1195 = vmatprep.subr.mxu0 0.0
    %1196 = vmatpush1.msra.mxu0 0.0
    %1197 = vmatprep.subr.mxu0 0.0
    %1198 = vmatpush1.msra.mxu0 0.0
    %1199 = vmatprep.subr.mxu0 0.0
    %1200 = vmatpush1.msra.mxu0 0.0
    %1201 = vmatprep.subr.mxu0 0.0
    %1202 = vmatpush1.msra.mxu0 0.0
    %1203 = vmatprep.subr.mxu0 0.0
    %1204 = vmatpush1.msra.mxu0 0.0
    %1205 = vmatprep.subr.mxu0 0.0
    %1206 = vmatpush1.msra.mxu0 0.0
    %1207 = vmatprep.subr.mxu0 0.0
    %1208 = vmatpush1.msra.mxu0 0.0
    %1209 = vmatprep.subr.mxu0 0.0
    %1210 = vmatpush1.msra.mxu0 0.0
    %1211 = vmatprep.subr.mxu0 0.0
    %1212 = vmatpush1.msra.mxu0 0.0
    %1213 = vmatprep.subr.mxu0 0.0
    %1214 = vmatpush1.msra.mxu0 0.0
    %1215 = vmatprep.subr.mxu0 0.0
    %1216 = vmatpush1.msra.mxu0 0.0
    %1217 = vmatprep.subr.mxu0 0.0
    %1218 = vmatpush1.msra.mxu0 0.0
    %1219 = vmatprep.mubr.f32.mxu0 0.0
    %1220 = vmatmul.mubr.f32.gmra.mrb[0].mxu0 %v1082
    %v1221 = vpop.f32.mrb[0].mxu0
    %v1222 = vadd.f32 %v1016, %v1221
    %v1223 = vpop.f32.mrb[0].mxu0
    %v1224 = vadd.f32 %v1017, %v1223
    %1225 = vdwg.mxu0
    %v1226 = vxor.u32 %v1151, 2147483648
    %v1227 = vmul.f32 %v1226, 1.442695
    %v1228 = vpow.pop %v1227
    %v1229 = vadd.f32 %v1228, 1.0
    %v1230 = vrcp.pop %v1229
    %v1231 = vmul.f32 1.0, %v1230
    %v1232 = vxor.u32 %v1153, 2147483648
    %v1233 = vmul.f32 %v1232, 1.442695
    %v1234 = vpow.pop %v1233
    %v1235 = vadd.f32 %v1234, 1.0
    %v1236 = vrcp.pop %v1235
    %v1237 = vmul.f32 1.0, %v1236
    %v1238 = vtanh.pop %v1222
    %v1239 = vxor.u32 %v1224, 2147483648
    %v1240 = vmul.f32 %v1239, 1.442695
    %v1241 = vpow.pop %v1240
    %v1242 = vadd.f32 %v1241, 1.0
    %v1243 = vrcp.pop %v1242
    %v1244 = vmul.f32 1.0, %v1243
    %v1245 = vmul.f32 %v1237, %v1083
    %v1246 = vmul.f32 %v1231, %v1238
    %v1247 = vadd.f32 %v1245, %v1246
    %v1248 = vtanh.pop %v1247
    %v1249 = vmul.f32 %v1244, %v1248
    %v1254 = vrot.slane %v1014, 1
    %v1255 = vrot.slane %v1015, 1
    %v1256 = vrot.slane %v1016, 1
    %v1257 = vrot.slane %v1017, 1
    %1262 = vmatprep.subr.mxu0 %v1019
    %1263 = vmatpush1.msra.mxu0 %v1018
    %1264 = vmatprep.subr.mxu0 %v1023
    %1265 = vmatpush1.msra.mxu0 %v1022
    %1266 = vmatprep.subr.mxu0 %v1027
    %1267 = vmatpush1.msra.mxu0 %v1026
    %1268 = vmatprep.subr.mxu0 %v1031
    %1269 = vmatpush1.msra.mxu0 %v1030
    %1270 = vmatprep.subr.mxu0 %v1035
    %1271 = vmatpush1.msra.mxu0 %v1034
    %1272 = vmatprep.subr.mxu0 %v1039
    %1273 = vmatpush1.msra.mxu0 %v1038
    %1274 = vmatprep.subr.mxu0 %v1043
    %1275 = vmatpush1.msra.mxu0 %v1042
    %1276 = vmatprep.subr.mxu0 %v1047
    %1277 = vmatpush1.msra.mxu0 %v1046
    %1278 = vmatprep.subr.mxu0 %v1051
    %1279 = vmatpush1.msra.mxu0 %v1050
    %1280 = vmatprep.subr.mxu0 %v1055
    %1281 = vmatpush1.msra.mxu0 %v1054
    %1282 = vmatprep.subr.mxu0 %v1059
    %1283 = vmatpush1.msra.mxu0 %v1058
    %1284 = vmatprep.subr.mxu0 %v1063
    %1285 = vmatpush1.msra.mxu0 %v1062
    %1286 = vmatprep.subr.mxu0 %v1067
    %1287 = vmatpush1.msra.mxu0 %v1066
    %1288 = vmatprep.subr.mxu0 %v1071
    %1289 = vmatpush1.msra.mxu0 %v1070
    %1290 = vmatprep.subr.mxu0 %v1075
    %1291 = vmatpush1.msra.mxu0 %v1074
    %1292 = vmatprep.subr.mxu0 %v1079
    %1293 = vmatpush1.msra.mxu0 %v1078
    %1294 = vmatprep.subr.mxu0 0.0
    %1295 = vmatpush1.msra.mxu0 0.0
    %1296 = vmatprep.subr.mxu0 0.0
    %1297 = vmatpush1.msra.mxu0 0.0
    %1298 = vmatprep.subr.mxu0 0.0
    %1299 = vmatpush1.msra.mxu0 0.0
    %1300 = vmatprep.subr.mxu0 0.0
    %1301 = vmatpush1.msra.mxu0 0.0
    %1302 = vmatprep.subr.mxu0 0.0
    %1303 = vmatpush1.msra.mxu0 0.0
    %1304 = vmatprep.subr.mxu0 0.0
    %1305 = vmatpush1.msra.mxu0 0.0
    %1306 = vmatprep.subr.mxu0 0.0
    %1307 = vmatpush1.msra.mxu0 0.0
    %1308 = vmatprep.subr.mxu0 0.0
    %1309 = vmatpush1.msra.mxu0 0.0
    %1310 = vmatprep.subr.mxu0 0.0
    %1311 = vmatpush1.msra.mxu0 0.0
    %1312 = vmatprep.subr.mxu0 0.0
    %1313 = vmatpush1.msra.mxu0 0.0
    %1314 = vmatprep.subr.mxu0 0.0
    %1315 = vmatpush1.msra.mxu0 0.0
    %1316 = vmatprep.subr.mxu0 0.0
    %1317 = vmatpush1.msra.mxu0 0.0
    %1318 = vmatprep.subr.mxu0 0.0
    %1319 = vmatpush1.msra.mxu0 0.0
    %1320 = vmatprep.subr.mxu0 0.0
    %1321 = vmatpush1.msra.mxu0 0.0
    %1322 = vmatprep.subr.mxu0 0.0
    %1323 = vmatpush1.msra.mxu0 0.0
    %1324 = vmatprep.subr.mxu0 0.0
    %1325 = vmatpush1.msra.mxu0 0.0
    %1326 = vmatprep.mubr.f32.mxu0 0.0
    %1327 = vmatmul.mubr.f32.gmra.mrb[0].mxu0 %v1249
    %v1328 = vpop.f32.mrb[0].mxu0
    %v1329 = vadd.f32 %v1254, %v1328
    %v1330 = vpop.f32.mrb[0].mxu0
    %v1331 = vadd.f32 %v1255, %v1330
    %1332 = vdwg.mxu0
    %1333 = vmatprep.subr.mxu0 %v1021
    %1334 = vmatpush1.msra.mxu0 %v1020
    %1335 = vmatprep.subr.mxu0 %v1025
    %1336 = vmatpush1.msra.mxu0 %v1024
    %1337 = vmatprep.subr.mxu0 %v1029
    %1338 = vmatpush1.msra.mxu0 %v1028
    %1339 = vmatprep.subr.mxu0 %v1033
    %1340 = vmatpush1.msra.mxu0 %v1032
    %1341 = vmatprep.subr.mxu0 %v1037
    %1342 = vmatpush1.msra.mxu0 %v1036
    %1343 = vmatprep.subr.mxu0 %v1041
    %1344 = vmatpush1.msra.mxu0 %v1040
    %1345 = vmatprep.subr.mxu0 %v1045
    %1346 = vmatpush1.msra.mxu0 %v1044
    %1347 = vmatprep.subr.mxu0 %v1049
    %1348 = vmatpush1.msra.mxu0 %v1048
    %1349 = vmatprep.subr.mxu0 %v1053
    %1350 = vmatpush1.msra.mxu0 %v1052
    %1351 = vmatprep.subr.mxu0 %v1057
    %1352 = vmatpush1.msra.mxu0 %v1056
    %1353 = vmatprep.subr.mxu0 %v1061
    %1354 = vmatpush1.msra.mxu0 %v1060
    %1355 = vmatprep.subr.mxu0 %v1065
    %1356 = vmatpush1.msra.mxu0 %v1064
    %1357 = vmatprep.subr.mxu0 %v1069
    %1358 = vmatpush1.msra.mxu0 %v1068
    %1359 = vmatprep.subr.mxu0 %v1073
    %1360 = vmatpush1.msra.mxu0 %v1072
    %1361 = vmatprep.subr.mxu0 %v1077
    %1362 = vmatpush1.msra.mxu0 %v1076
    %1363 = vmatprep.subr.mxu0 %v1081
    %1364 = vmatpush1.msra.mxu0 %v1080
    %1365 = vmatprep.subr.mxu0 0.0
    %1366 = vmatpush1.msra.mxu0 0.0
    %1367 = vmatprep.subr.mxu0 0.0
    %1368 = vmatpush1.msra.mxu0 0.0
    %1369 = vmatprep.subr.mxu0 0.0
    %1370 = vmatpush1.msra.mxu0 0.0
    %1371 = vmatprep.subr.mxu0 0.0
    %1372 = vmatpush1.msra.mxu0 0.0
    %1373 = vmatprep.subr.mxu0 0.0
    %1374 = vmatpush1.msra.mxu0 0.0
    %1375 = vmatprep.subr.mxu0 0.0
    %1376 = vmatpush1.msra.mxu0 0.0
    %1377 = vmatprep.subr.mxu0 0.0
    %1378 = vmatpush1.msra.mxu0 0.0
    %1379 = vmatprep.subr.mxu0 0.0
    %1380 = vmatpush1.msra.mxu0 0.0
    %1381 = vmatprep.subr.mxu0 0.0
    %1382 = vmatpush1.msra.mxu0 0.0
    %1383 = vmatprep.subr.mxu0 0.0
    %1384 = vmatpush1.msra.mxu0 0.0
    %1385 = vmatprep.subr.mxu0 0.0
    %1386 = vmatpush1.msra.mxu0 0.0
    %1387 = vmatprep.subr.mxu0 0.0
    %1388 = vmatpush1.msra.mxu0 0.0
    %1389 = vmatprep.subr.mxu0 0.0
    %1390 = vmatpush1.msra.mxu0 0.0
    %1391 = vmatprep.subr.mxu0 0.0
    %1392 = vmatpush1.msra.mxu0 0.0
    %1393 = vmatprep.subr.mxu0 0.0
    %1394 = vmatpush1.msra.mxu0 0.0
    %1395 = vmatprep.subr.mxu0 0.0
    %1396 = vmatpush1.msra.mxu0 0.0
    %1397 = vmatprep.mubr.f32.mxu0 0.0
    %1398 = vmatmul.mubr.f32.gmra.mrb[0].mxu0 %v1249
    %v1399 = vpop.f32.mrb[0].mxu0
    %v1400 = vadd.f32 %v1256, %v1399
    %v1401 = vpop.f32.mrb[0].mxu0
    %v1402 = vadd.f32 %v1257, %v1401
    %1403 = vdwg.mxu0
    %v1404 = vxor.u32 %v1329, 2147483648
    %v1405 = vmul.f32 %v1404, 1.442695
    %v1406 = vpow.pop %v1405
    %v1407 = vadd.f32 %v1406, 1.0
    %v1408 = vrcp.pop %v1407
    %v1409 = vmul.f32 1.0, %v1408
    %v1410 = vxor.u32 %v1331, 2147483648
    %v1411 = vmul.f32 %v1410, 1.442695
    %v1412 = vpow.pop %v1411
    %v1413 = vadd.f32 %v1412, 1.0
    %v1414 = vrcp.pop %v1413
    %v1415 = vmul.f32 1.0, %v1414
    %v1416 = vtanh.pop %v1400
    %v1417 = vxor.u32 %v1402, 2147483648
    %v1418 = vmul.f32 %v1417, 1.442695
    %v1419 = vpow.pop %v1418
    %v1420 = vadd.f32 %v1419, 1.0
    %v1421 = vrcp.pop %v1420
    %v1422 = vmul.f32 1.0, %v1421
    %v1423 = vmul.f32 %v1415, %v1247
    %v1424 = vmul.f32 %v1409, %v1416
    %v1425 = vadd.f32 %v1423, %v1424
    %v1426 = vtanh.pop %v1425
    %v1427 = vmul.f32 %v1422, %v1426
    %v1428 = vrot.slane %v1014, 2
    %v1429 = vrot.slane %v1015, 2
    %v1430 = vrot.slane %v1016, 2
    %v1431 = vrot.slane %v1017, 2
    %1436 = vmatprep.subr.mxu0 %v1019
    %1437 = vmatpush1.msra.mxu0 %v1018
    %1438 = vmatprep.subr.mxu0 %v1023
    %1439 = vmatpush1.msra.mxu0 %v1022
    %1440 = vmatprep.subr.mxu0 %v1027
    %1441 = vmatpush1.msra.mxu0 %v1026
    %1442 = vmatprep.subr.mxu0 %v1031
    %1443 = vmatpush1.msra.mxu0 %v1030
    %1444 = vmatprep.subr.mxu0 %v1035
    %1445 = vmatpush1.msra.mxu0 %v1034
    %1446 = vmatprep.subr.mxu0 %v1039
    %1447 = vmatpush1.msra.mxu0 %v1038
    %1448 = vmatprep.subr.mxu0 %v1043
    %1449 = vmatpush1.msra.mxu0 %v1042
    %1450 = vmatprep.subr.mxu0 %v1047
    %1451 = vmatpush1.msra.mxu0 %v1046
    %1452 = vmatprep.subr.mxu0 %v1051
    %1453 = vmatpush1.msra.mxu0 %v1050
    %1454 = vmatprep.subr.mxu0 %v1055
    %1455 = vmatpush1.msra.mxu0 %v1054
    %1456 = vmatprep.subr.mxu0 %v1059
    %1457 = vmatpush1.msra.mxu0 %v1058
    %1458 = vmatprep.subr.mxu0 %v1063
    %1459 = vmatpush1.msra.mxu0 %v1062
    %1460 = vmatprep.subr.mxu0 %v1067
    %1461 = vmatpush1.msra.mxu0 %v1066
    %1462 = vmatprep.subr.mxu0 %v1071
    %1463 = vmatpush1.msra.mxu0 %v1070
    %1464 = vmatprep.subr.mxu0 %v1075
    %1465 = vmatpush1.msra.mxu0 %v1074
    %1466 = vmatprep.subr.mxu0 %v1079
    %1467 = vmatpush1.msra.mxu0 %v1078
    %1468 = vmatprep.subr.mxu0 0.0
    %1469 = vmatpush1.msra.mxu0 0.0
    %1470 = vmatprep.subr.mxu0 0.0
    %1471 = vmatpush1.msra.mxu0 0.0
    %1472 = vmatprep.subr.mxu0 0.0
    %1473 = vmatpush1.msra.mxu0 0.0
    %1474 = vmatprep.subr.mxu0 0.0
    %1475 = vmatpush1.msra.mxu0 0.0
    %1476 = vmatprep.subr.mxu0 0.0
    %1477 = vmatpush1.msra.mxu0 0.0
    %1478 = vmatprep.subr.mxu0 0.0
    %1479 = vmatpush1.msra.mxu0 0.0
    %1480 = vmatprep.subr.mxu0 0.0
    %1481 = vmatpush1.msra.mxu0 0.0
    %1482 = vmatprep.subr.mxu0 0.0
    %1483 = vmatpush1.msra.mxu0 0.0
    %1484 = vmatprep.subr.mxu0 0.0
    %1485 = vmatpush1.msra.mxu0 0.0
    %1486 = vmatprep.subr.mxu0 0.0
    %1487 = vmatpush1.msra.mxu0 0.0
    %1488 = vmatprep.subr.mxu0 0.0
    %1489 = vmatpush1.msra.mxu0 0.0
    %1490 = vmatprep.subr.mxu0 0.0
    %1491 = vmatpush1.msra.mxu0 0.0
    %1492 = vmatprep.subr.mxu0 0.0
    %1493 = vmatpush1.msra.mxu0 0.0
    %1494 = vmatprep.subr.mxu0 0.0
    %1495 = vmatpush1.msra.mxu0 0.0
    %1496 = vmatprep.subr.mxu0 0.0
    %1497 = vmatpush1.msra.mxu0 0.0
    %1498 = vmatprep.subr.mxu0 0.0
    %1499 = vmatpush1.msra.mxu0 0.0
    %1500 = vmatprep.mubr.f32.mxu0 0.0
    %1501 = vmatmul.mubr.f32.gmra.mrb[0].mxu0 %v1427
    %v1502 = vpop.f32.mrb[0].mxu0
    %v1503 = vadd.f32 %v1428, %v1502
    %v1504 = vpop.f32.mrb[0].mxu0
    %v1505 = vadd.f32 %v1429, %v1504
    %1506 = vdwg.mxu0
    %1507 = vmatprep.subr.mxu0 %v1021
    %1508 = vmatpush1.msra.mxu0 %v1020
    %1509 = vmatprep.subr.mxu0 %v1025
    %1510 = vmatpush1.msra.mxu0 %v1024
    %1511 = vmatprep.subr.mxu0 %v1029
    %1512 = vmatpush1.msra.mxu0 %v1028
    %1513 = vmatprep.subr.mxu0 %v1033
    %1514 = vmatpush1.msra.mxu0 %v1032
    %1515 = vmatprep.subr.mxu0 %v1037
    %1516 = vmatpush1.msra.mxu0 %v1036
    %1517 = vmatprep.subr.mxu0 %v1041
    %1518 = vmatpush1.msra.mxu0 %v1040
    %1519 = vmatprep.subr.mxu0 %v1045
    %1520 = vmatpush1.msra.mxu0 %v1044
    %1521 = vmatprep.subr.mxu0 %v1049
    %1522 = vmatpush1.msra.mxu0 %v1048
    %1523 = vmatprep.subr.mxu0 %v1053
    %1524 = vmatpush1.msra.mxu0 %v1052
    %1525 = vmatprep.subr.mxu0 %v1057
    %1526 = vmatpush1.msra.mxu0 %v1056
    %1527 = vmatprep.subr.mxu0 %v1061
    %1528 = vmatpush1.msra.mxu0 %v1060
    %1529 = vmatprep.subr.mxu0 %v1065
    %1530 = vmatpush1.msra.mxu0 %v1064
    %1531 = vmatprep.subr.mxu0 %v1069
    %1532 = vmatpush1.msra.mxu0 %v1068
    %1533 = vmatprep.subr.mxu0 %v1073
    %1534 = vmatpush1.msra.mxu0 %v1072
    %1535 = vmatprep.subr.mxu0 %v1077
    %1536 = vmatpush1.msra.mxu0 %v1076
    %1537 = vmatprep.subr.mxu0 %v1081
    %1538 = vmatpush1.msra.mxu0 %v1080
    %1539 = vmatprep.subr.mxu0 0.0
    %1540 = vmatpush1.msra.mxu0 0.0
    %1541 = vmatprep.subr.mxu0 0.0
    %1542 = vmatpush1.msra.mxu0 0.0
    %1543 = vmatprep.subr.mxu0 0.0
    %1544 = vmatpush1.msra.mxu0 0.0
    %1545 = vmatprep.subr.mxu0 0.0
    %1546 = vmatpush1.msra.mxu0 0.0
    %1547 = vmatprep.subr.mxu0 0.0
    %1548 = vmatpush1.msra.mxu0 0.0
    %1549 = vmatprep.subr.mxu0 0.0
    %1550 = vmatpush1.msra.mxu0 0.0
    %1551 = vmatprep.subr.mxu0 0.0
    %1552 = vmatpush1.msra.mxu0 0.0
    %1553 = vmatprep.subr.mxu0 0.0
    %1554 = vmatpush1.msra.mxu0 0.0
    %1555 = vmatprep.subr.mxu0 0.0
    %1556 = vmatpush1.msra.mxu0 0.0
    %1557 = vmatprep.subr.mxu0 0.0
    %1558 = vmatpush1.msra.mxu0 0.0
    %1559 = vmatprep.subr.mxu0 0.0
    %1560 = vmatpush1.msra.mxu0 0.0
    %1561 = vmatprep.subr.mxu0 0.0
    %1562 = vmatpush1.msra.mxu0 0.0
    %1563 = vmatprep.subr.mxu0 0.0
    %1564 = vmatpush1.msra.mxu0 0.0
    %1565 = vmatprep.subr.mxu0 0.0
    %1566 = vmatpush1.msra.mxu0 0.0
    %1567 = vmatprep.subr.mxu0 0.0
    %1568 = vmatpush1.msra.mxu0 0.0
    %1569 = vmatprep.subr.mxu0 0.0
    %1570 = vmatpush1.msra.mxu0 0.0
    %1571 = vmatprep.mubr.f32.mxu0 0.0
    %1572 = vmatmul.mubr.f32.gmra.mrb[0].mxu0 %v1427
    %v1573 = vpop.f32.mrb[0].mxu0
    %v1574 = vadd.f32 %v1430, %v1573
    %v1575 = vpop.f32.mrb[0].mxu0
    %v1576 = vadd.f32 %v1431, %v1575
    %1577 = vdwg.mxu0
    %v1578 = vxor.u32 %v1503, 2147483648
    %v1579 = vmul.f32 %v1578, 1.442695
    %v1580 = vpow.pop %v1579
    %v1581 = vadd.f32 %v1580, 1.0
    %v1582 = vrcp.pop %v1581
    %v1583 = vmul.f32 1.0, %v1582
    %v1584 = vxor.u32 %v1505, 2147483648
    %v1585 = vmul.f32 %v1584, 1.442695
    %v1586 = vpow.pop %v1585
    %v1587 = vadd.f32 %v1586, 1.0
    %v1588 = vrcp.pop %v1587
    %v1589 = vmul.f32 1.0, %v1588
    %v1590 = vtanh.pop %v1574
    %v1591 = vxor.u32 %v1576, 2147483648
    %v1592 = vmul.f32 %v1591, 1.442695
    %v1593 = vpow.pop %v1592
    %v1594 = vadd.f32 %v1593, 1.0
    %v1595 = vrcp.pop %v1594
    %v1596 = vmul.f32 1.0, %v1595
    %v1597 = vmul.f32 %v1589, %v1425
    %v1598 = vmul.f32 %v1583, %v1590
    %v1599 = vadd.f32 %v1597, %v1598
    %v1600 = vtanh.pop %v1599
    %v1601 = vmul.f32 %v1596, %v1600
    %v1602 = vrot.slane %v1014, 3
    %v1603 = vrot.slane %v1015, 3
    %v1604 = vrot.slane %v1016, 3
    %v1605 = vrot.slane %v1017, 3
    %1610 = vmatprep.subr.mxu0 %v1019
    %1611 = vmatpush1.msra.mxu0 %v1018
    %1612 = vmatprep.subr.mxu0 %v1023
    %1613 = vmatpush1.msra.mxu0 %v1022
    %1614 = vmatprep.subr.mxu0 %v1027
    %1615 = vmatpush1.msra.mxu0 %v1026
    %1616 = vmatprep.subr.mxu0 %v1031
    %1617 = vmatpush1.msra.mxu0 %v1030
    %1618 = vmatprep.subr.mxu0 %v1035
    %1619 = vmatpush1.msra.mxu0 %v1034
    %1620 = vmatprep.subr.mxu0 %v1039
    %1621 = vmatpush1.msra.mxu0 %v1038
    %1622 = vmatprep.subr.mxu0 %v1043
    %1623 = vmatpush1.msra.mxu0 %v1042
    %1624 = vmatprep.subr.mxu0 %v1047
    %1625 = vmatpush1.msra.mxu0 %v1046
    %1626 = vmatprep.subr.mxu0 %v1051
    %1627 = vmatpush1.msra.mxu0 %v1050
    %1628 = vmatprep.subr.mxu0 %v1055
    %1629 = vmatpush1.msra.mxu0 %v1054
    %1630 = vmatprep.subr.mxu0 %v1059
    %1631 = vmatpush1.msra.mxu0 %v1058
    %1632 = vmatprep.subr.mxu0 %v1063
    %1633 = vmatpush1.msra.mxu0 %v1062
    %1634 = vmatprep.subr.mxu0 %v1067
    %1635 = vmatpush1.msra.mxu0 %v1066
    %1636 = vmatprep.subr.mxu0 %v1071
    %1637 = vmatpush1.msra.mxu0 %v1070
    %1638 = vmatprep.subr.mxu0 %v1075
    %1639 = vmatpush1.msra.mxu0 %v1074
    %1640 = vmatprep.subr.mxu0 %v1079
    %1641 = vmatpush1.msra.mxu0 %v1078
    %1642 = vmatprep.subr.mxu0 0.0
    %1643 = vmatpush1.msra.mxu0 0.0
    %1644 = vmatprep.subr.mxu0 0.0
    %1645 = vmatpush1.msra.mxu0 0.0
    %1646 = vmatprep.subr.mxu0 0.0
    %1647 = vmatpush1.msra.mxu0 0.0
    %1648 = vmatprep.subr.mxu0 0.0
    %1649 = vmatpush1.msra.mxu0 0.0
    %1650 = vmatprep.subr.mxu0 0.0
    %1651 = vmatpush1.msra.mxu0 0.0
    %1652 = vmatprep.subr.mxu0 0.0
    %1653 = vmatpush1.msra.mxu0 0.0
    %1654 = vmatprep.subr.mxu0 0.0
    %1655 = vmatpush1.msra.mxu0 0.0
    %1656 = vmatprep.subr.mxu0 0.0
    %1657 = vmatpush1.msra.mxu0 0.0
    %1658 = vmatprep.subr.mxu0 0.0
    %1659 = vmatpush1.msra.mxu0 0.0
    %1660 = vmatprep.subr.mxu0 0.0
    %1661 = vmatpush1.msra.mxu0 0.0
    %1662 = vmatprep.subr.mxu0 0.0
    %1663 = vmatpush1.msra.mxu0 0.0
    %1664 = vmatprep.subr.mxu0 0.0
    %1665 = vmatpush1.msra.mxu0 0.0
    %1666 = vmatprep.subr.mxu0 0.0
    %1667 = vmatpush1.msra.mxu0 0.0
    %1668 = vmatprep.subr.mxu0 0.0
    %1669 = vmatpush1.msra.mxu0 0.0
    %1670 = vmatprep.subr.mxu0 0.0
    %1671 = vmatpush1.msra.mxu0 0.0
    %1672 = vmatprep.subr.mxu0 0.0
    %1673 = vmatpush1.msra.mxu0 0.0
    %1674 = vmatprep.mubr.f32.mxu0 0.0
    %1675 = vmatmul.mubr.f32.gmra.mrb[0].mxu0 %v1601
    %v1676 = vpop.f32.mrb[0].mxu0
    %v1677 = vadd.f32 %v1602, %v1676
    %v1678 = vpop.f32.mrb[0].mxu0
    %v1679 = vadd.f32 %v1603, %v1678
    %1680 = vdwg.mxu0
    %1681 = vmatprep.subr.mxu0 %v1021
    %1682 = vmatpush1.msra.mxu0 %v1020
    %1683 = vmatprep.subr.mxu0 %v1025
    %1684 = vmatpush1.msra.mxu0 %v1024
    %1685 = vmatprep.subr.mxu0 %v1029
    %1686 = vmatpush1.msra.mxu0 %v1028
    %1687 = vmatprep.subr.mxu0 %v1033
    %1688 = vmatpush1.msra.mxu0 %v1032
    %1689 = vmatprep.subr.mxu0 %v1037
    %1690 = vmatpush1.msra.mxu0 %v1036
    %1691 = vmatprep.subr.mxu0 %v1041
    %1692 = vmatpush1.msra.mxu0 %v1040
    %1693 = vmatprep.subr.mxu0 %v1045
    %1694 = vmatpush1.msra.mxu0 %v1044
    %1695 = vmatprep.subr.mxu0 %v1049
    %1696 = vmatpush1.msra.mxu0 %v1048
    %1697 = vmatprep.subr.mxu0 %v1053
    %1698 = vmatpush1.msra.mxu0 %v1052
    %1699 = vmatprep.subr.mxu0 %v1057
    %1700 = vmatpush1.msra.mxu0 %v1056
    %1701 = vmatprep.subr.mxu0 %v1061
    %1702 = vmatpush1.msra.mxu0 %v1060
    %1703 = vmatprep.subr.mxu0 %v1065
    %1704 = vmatpush1.msra.mxu0 %v1064
    %1705 = vmatprep.subr.mxu0 %v1069
    %1706 = vmatpush1.msra.mxu0 %v1068
    %1707 = vmatprep.subr.mxu0 %v1073
    %1708 = vmatpush1.msra.mxu0 %v1072
    %1709 = vmatprep.subr.mxu0 %v1077
    %1710 = vmatpush1.msra.mxu0 %v1076
    %1711 = vmatprep.subr.mxu0 %v1081
    %1712 = vmatpush1.msra.mxu0 %v1080
    %1713 = vmatprep.subr.mxu0 0.0
    %1714 = vmatpush1.msra.mxu0 0.0
    %1715 = vmatprep.subr.mxu0 0.0
    %1716 = vmatpush1.msra.mxu0 0.0
    %1717 = vmatprep.subr.mxu0 0.0
    %1718 = vmatpush1.msra.mxu0 0.0
    %1719 = vmatprep.subr.mxu0 0.0
    %1720 = vmatpush1.msra.mxu0 0.0
    %1721 = vmatprep.subr.mxu0 0.0
    %1722 = vmatpush1.msra.mxu0 0.0
    %1723 = vmatprep.subr.mxu0 0.0
    %1724 = vmatpush1.msra.mxu0 0.0
    %1725 = vmatprep.subr.mxu0 0.0
    %1726 = vmatpush1.msra.mxu0 0.0
    %1727 = vmatprep.subr.mxu0 0.0
    %1728 = vmatpush1.msra.mxu0 0.0
    %1729 = vmatprep.subr.mxu0 0.0
    %1730 = vmatpush1.msra.mxu0 0.0
    %1731 = vmatprep.subr.mxu0 0.0
    %1732 = vmatpush1.msra.mxu0 0.0
    %1733 = vmatprep.subr.mxu0 0.0
    %1734 = vmatpush1.msra.mxu0 0.0
    %1735 = vmatprep.subr.mxu0 0.0
    %1736 = vmatpush1.msra.mxu0 0.0
    %1737 = vmatprep.subr.mxu0 0.0
    %1738 = vmatpush1.msra.mxu0 0.0
    %1739 = vmatprep.subr.mxu0 0.0
    %1740 = vmatpush1.msra.mxu0 0.0
    %1741 = vmatprep.subr.mxu0 0.0
    %1742 = vmatpush1.msra.mxu0 0.0
    %1743 = vmatprep.subr.mxu0 0.0
    %1744 = vmatpush1.msra.mxu0 0.0
    %1745 = vmatprep.mubr.f32.mxu0 0.0
    %1746 = vmatmul.mubr.f32.gmra.mrb[0].mxu0 %v1601
    %v1747 = vpop.f32.mrb[0].mxu0
    %v1748 = vadd.f32 %v1604, %v1747
    %v1749 = vpop.f32.mrb[0].mxu0
    %v1750 = vadd.f32 %v1605, %v1749
    %1751 = vdwg.mxu0
    %v1752 = vxor.u32 %v1677, 2147483648
    %v1753 = vmul.f32 %v1752, 1.442695
    %v1754 = vpow.pop %v1753
    %v1755 = vadd.f32 %v1754, 1.0
    %v1756 = vrcp.pop %v1755
    %v1757 = vmul.f32 1.0, %v1756
    %v1758 = vxor.u32 %v1679, 2147483648
    %v1759 = vmul.f32 %v1758, 1.442695
    %v1760 = vpow.pop %v1759
    %v1761 = vadd.f32 %v1760, 1.0
    %v1762 = vrcp.pop %v1761
    %v1763 = vmul.f32 1.0, %v1762
    %v1764 = vtanh.pop %v1748
    %v1765 = vxor.u32 %v1750, 2147483648
    %v1766 = vmul.f32 %v1765, 1.442695
    %v1767 = vpow.pop %v1766
    %v1768 = vadd.f32 %v1767, 1.0
    %v1769 = vrcp.pop %v1768
    %v1770 = vmul.f32 1.0, %v1769
    %v1771 = vmul.f32 %v1763, %v1599
    %v1772 = vmul.f32 %v1757, %v1764
    %v1773 = vadd.f32 %v1771, %v1772
    %v1774 = vtanh.pop %v1773
    %v1775 = vmul.f32 %v1770, %v1774
    %v1776 = vrot.slane %v1014, 4
    %v1777 = vrot.slane %v1015, 4
    %v1778 = vrot.slane %v1016, 4
    %v1779 = vrot.slane %v1017, 4
    %1784 = vmatprep.subr.mxu0 %v1019
    %1785 = vmatpush1.msra.mxu0 %v1018
    %1786 = vmatprep.subr.mxu0 %v1023
    %1787 = vmatpush1.msra.mxu0 %v1022
    %1788 = vmatprep.subr.mxu0 %v1027
    %1789 = vmatpush1.msra.mxu0 %v1026
    %1790 = vmatprep.subr.mxu0 %v1031
    %1791 = vmatpush1.msra.mxu0 %v1030
    %1792 = vmatprep.subr.mxu0 %v1035
    %1793 = vmatpush1.msra.mxu0 %v1034
    %1794 = vmatprep.subr.mxu0 %v1039
    %1795 = vmatpush1.msra.mxu0 %v1038
    %1796 = vmatprep.subr.mxu0 %v1043
    %1797 = vmatpush1.msra.mxu0 %v1042
    %1798 = vmatprep.subr.mxu0 %v1047
    %1799 = vmatpush1.msra.mxu0 %v1046
    %1800 = vmatprep.subr.mxu0 %v1051
    %1801 = vmatpush1.msra.mxu0 %v1050
    %1802 = vmatprep.subr.mxu0 %v1055
    %1803 = vmatpush1.msra.mxu0 %v1054
    %1804 = vmatprep.subr.mxu0 %v1059
    %1805 = vmatpush1.msra.mxu0 %v1058
    %1806 = vmatprep.subr.mxu0 %v1063
    %1807 = vmatpush1.msra.mxu0 %v1062
    %1808 = vmatprep.subr.mxu0 %v1067
    %1809 = vmatpush1.msra.mxu0 %v1066
    %1810 = vmatprep.subr.mxu0 %v1071
    %1811 = vmatpush1.msra.mxu0 %v1070
    %1812 = vmatprep.subr.mxu0 %v1075
    %1813 = vmatpush1.msra.mxu0 %v1074
    %1814 = vmatprep.subr.mxu0 %v1079
    %1815 = vmatpush1.msra.mxu0 %v1078
    %1816 = vmatprep.subr.mxu0 0.0
    %1817 = vmatpush1.msra.mxu0 0.0
    %1818 = vmatprep.subr.mxu0 0.0
    %1819 = vmatpush1.msra.mxu0 0.0
    %1820 = vmatprep.subr.mxu0 0.0
    %1821 = vmatpush1.msra.mxu0 0.0
    %1822 = vmatprep.subr.mxu0 0.0
    %1823 = vmatpush1.msra.mxu0 0.0
    %1824 = vmatprep.subr.mxu0 0.0
    %1825 = vmatpush1.msra.mxu0 0.0
    %1826 = vmatprep.subr.mxu0 0.0
    %1827 = vmatpush1.msra.mxu0 0.0
    %1828 = vmatprep.subr.mxu0 0.0
    %1829 = vmatpush1.msra.mxu0 0.0
    %1830 = vmatprep.subr.mxu0 0.0
    %1831 = vmatpush1.msra.mxu0 0.0
    %1832 = vmatprep.subr.mxu0 0.0
    %1833 = vmatpush1.msra.mxu0 0.0
    %1834 = vmatprep.subr.mxu0 0.0
    %1835 = vmatpush1.msra.mxu0 0.0
    %1836 = vmatprep.subr.mxu0 0.0
    %1837 = vmatpush1.msra.mxu0 0.0
    %1838 = vmatprep.subr.mxu0 0.0
    %1839 = vmatpush1.msra.mxu0 0.0
    %1840 = vmatprep.subr.mxu0 0.0
    %1841 = vmatpush1.msra.mxu0 0.0
    %1842 = vmatprep.subr.mxu0 0.0
    %1843 = vmatpush1.msra.mxu0 0.0
    %1844 = vmatprep.subr.mxu0 0.0
    %1845 = vmatpush1.msra.mxu0 0.0
    %1846 = vmatprep.subr.mxu0 0.0
    %1847 = vmatpush1.msra.mxu0 0.0
    %1848 = vmatprep.mubr.f32.mxu0 0.0
    %1849 = vmatmul.mubr.f32.gmra.mrb[0].mxu0 %v1775
    %v1850 = vpop.f32.mrb[0].mxu0
    %v1851 = vadd.f32 %v1776, %v1850
    %v1852 = vpop.f32.mrb[0].mxu0
    %v1853 = vadd.f32 %v1777, %v1852
    %1854 = vdwg.mxu0
    %1855 = vmatprep.subr.mxu0 %v1021
    %1856 = vmatpush1.msra.mxu0 %v1020
    %1857 = vmatprep.subr.mxu0 %v1025
    %1858 = vmatpush1.msra.mxu0 %v1024
    %1859 = vmatprep.subr.mxu0 %v1029
    %1860 = vmatpush1.msra.mxu0 %v1028
    %1861 = vmatprep.subr.mxu0 %v1033
    %1862 = vmatpush1.msra.mxu0 %v1032
    %1863 = vmatprep.subr.mxu0 %v1037
    %1864 = vmatpush1.msra.mxu0 %v1036
    %1865 = vmatprep.subr.mxu0 %v1041
    %1866 = vmatpush1.msra.mxu0 %v1040
    %1867 = vmatprep.subr.mxu0 %v1045
    %1868 = vmatpush1.msra.mxu0 %v1044
    %1869 = vmatprep.subr.mxu0 %v1049
    %1870 = vmatpush1.msra.mxu0 %v1048
    %1871 = vmatprep.subr.mxu0 %v1053
    %1872 = vmatpush1.msra.mxu0 %v1052
    %1873 = vmatprep.subr.mxu0 %v1057
    %1874 = vmatpush1.msra.mxu0 %v1056
    %1875 = vmatprep.subr.mxu0 %v1061
    %1876 = vmatpush1.msra.mxu0 %v1060
    %1877 = vmatprep.subr.mxu0 %v1065
    %1878 = vmatpush1.msra.mxu0 %v1064
    %1879 = vmatprep.subr.mxu0 %v1069
    %1880 = vmatpush1.msra.mxu0 %v1068
    %1881 = vmatprep.subr.mxu0 %v1073
    %1882 = vmatpush1.msra.mxu0 %v1072
    %1883 = vmatprep.subr.mxu0 %v1077
    %1884 = vmatpush1.msra.mxu0 %v1076
    %1885 = vmatprep.subr.mxu0 %v1081
    %1886 = vmatpush1.msra.mxu0 %v1080
    %1887 = vmatprep.subr.mxu0 0.0
    %1888 = vmatpush1.msra.mxu0 0.0
    %1889 = vmatprep.subr.mxu0 0.0
    %1890 = vmatpush1.msra.mxu0 0.0
    %1891 = vmatprep.subr.mxu0 0.0
    %1892 = vmatpush1.msra.mxu0 0.0
    %1893 = vmatprep.subr.mxu0 0.0
    %1894 = vmatpush1.msra.mxu0 0.0
    %1895 = vmatprep.subr.mxu0 0.0
    %1896 = vmatpush1.msra.mxu0 0.0
    %1897 = vmatprep.subr.mxu0 0.0
    %1898 = vmatpush1.msra.mxu0 0.0
    %1899 = vmatprep.subr.mxu0 0.0
    %1900 = vmatpush1.msra.mxu0 0.0
    %1901 = vmatprep.subr.mxu0 0.0
    %1902 = vmatpush1.msra.mxu0 0.0
    %1903 = vmatprep.subr.mxu0 0.0
    %1904 = vmatpush1.msra.mxu0 0.0
    %1905 = vmatprep.subr.mxu0 0.0
    %1906 = vmatpush1.msra.mxu0 0.0
    %1907 = vmatprep.subr.mxu0 0.0
    %1908 = vmatpush1.msra.mxu0 0.0
    %1909 = vmatprep.subr.mxu0 0.0
    %1910 = vmatpush1.msra.mxu0 0.0
    %1911 = vmatprep.subr.mxu0 0.0
    %1912 = vmatpush1.msra.mxu0 0.0
    %1913 = vmatprep.subr.mxu0 0.0
    %1914 = vmatpush1.msra.mxu0 0.0
    %1915 = vmatprep.subr.mxu0 0.0
    %1916 = vmatpush1.msra.mxu0 0.0
    %1917 = vmatprep.subr.mxu0 0.0
    %1918 = vmatpush1.msra.mxu0 0.0
    %1919 = vmatprep.mubr.f32.mxu0 0.0
    %1920 = vmatmul.mubr.f32.gmra.mrb[0].mxu0 %v1775
    %v1921 = vpop.f32.mrb[0].mxu0
    %v1922 = vadd.f32 %v1778, %v1921
    %v1923 = vpop.f32.mrb[0].mxu0
    %v1924 = vadd.f32 %v1779, %v1923
    %1925 = vdwg.mxu0
    %v1926 = vxor.u32 %v1851, 2147483648
    %v1927 = vmul.f32 %v1926, 1.442695
    %v1928 = vpow.pop %v1927
    %v1929 = vadd.f32 %v1928, 1.0
    %v1930 = vrcp.pop %v1929
    %v1931 = vmul.f32 1.0, %v1930
    %v1932 = vxor.u32 %v1853, 2147483648
    %v1933 = vmul.f32 %v1932, 1.442695
    %v1934 = vpow.pop %v1933
    %v1935 = vadd.f32 %v1934, 1.0
    %v1936 = vrcp.pop %v1935
    %v1937 = vmul.f32 1.0, %v1936
    %v1938 = vtanh.pop %v1922
    %v1939 = vxor.u32 %v1924, 2147483648
    %v1940 = vmul.f32 %v1939, 1.442695
    %v1941 = vpow.pop %v1940
    %v1942 = vadd.f32 %v1941, 1.0
    %v1943 = vrcp.pop %v1942
    %v1944 = vmul.f32 1.0, %v1943
    %v1945 = vmul.f32 %v1937, %v1773
    %v1946 = vmul.f32 %v1931, %v1938
    %v1947 = vadd.f32 %v1945, %v1946
    %v1948 = vtanh.pop %v1947
    %v1949 = vmul.f32 %v1944, %v1948
    %v1950 = vrot.slane %v1014, 5
    %v1951 = vrot.slane %v1015, 5
    %v1952 = vrot.slane %v1016, 5
    %v1953 = vrot.slane %v1017, 5
    %1958 = vmatprep.subr.mxu0 %v1019
    %1959 = vmatpush1.msra.mxu0 %v1018
    %1960 = vmatprep.subr.mxu0 %v1023
    %1961 = vmatpush1.msra.mxu0 %v1022
    %1962 = vmatprep.subr.mxu0 %v1027
    %1963 = vmatpush1.msra.mxu0 %v1026
    %1964 = vmatprep.subr.mxu0 %v1031
    %1965 = vmatpush1.msra.mxu0 %v1030
    %1966 = vmatprep.subr.mxu0 %v1035
    %1967 = vmatpush1.msra.mxu0 %v1034
    %1968 = vmatprep.subr.mxu0 %v1039
    %1969 = vmatpush1.msra.mxu0 %v1038
    %1970 = vmatprep.subr.mxu0 %v1043
    %1971 = vmatpush1.msra.mxu0 %v1042
    %1972 = vmatprep.subr.mxu0 %v1047
    %1973 = vmatpush1.msra.mxu0 %v1046
    %1974 = vmatprep.subr.mxu0 %v1051
    %1975 = vmatpush1.msra.mxu0 %v1050
    %1976 = vmatprep.subr.mxu0 %v1055
    %1977 = vmatpush1.msra.mxu0 %v1054
    %1978 = vmatprep.subr.mxu0 %v1059
    %1979 = vmatpush1.msra.mxu0 %v1058
    %1980 = vmatprep.subr.mxu0 %v1063
    %1981 = vmatpush1.msra.mxu0 %v1062
    %1982 = vmatprep.subr.mxu0 %v1067
    %1983 = vmatpush1.msra.mxu0 %v1066
    %1984 = vmatprep.subr.mxu0 %v1071
    %1985 = vmatpush1.msra.mxu0 %v1070
    %1986 = vmatprep.subr.mxu0 %v1075
    %1987 = vmatpush1.msra.mxu0 %v1074
    %1988 = vmatprep.subr.mxu0 %v1079
    %1989 = vmatpush1.msra.mxu0 %v1078
    %1990 = vmatprep.subr.mxu0 0.0
    %1991 = vmatpush1.msra.mxu0 0.0
    %1992 = vmatprep.subr.mxu0 0.0
    %1993 = vmatpush1.msra.mxu0 0.0
    %1994 = vmatprep.subr.mxu0 0.0
    %1995 = vmatpush1.msra.mxu0 0.0
    %1996 = vmatprep.subr.mxu0 0.0
    %1997 = vmatpush1.msra.mxu0 0.0
    %1998 = vmatprep.subr.mxu0 0.0
    %1999 = vmatpush1.msra.mxu0 0.0
    %2000 = vmatprep.subr.mxu0 0.0
    %2001 = vmatpush1.msra.mxu0 0.0
    %2002 = vmatprep.subr.mxu0 0.0
    %2003 = vmatpush1.msra.mxu0 0.0
    %2004 = vmatprep.subr.mxu0 0.0
    %2005 = vmatpush1.msra.mxu0 0.0
    %2006 = vmatprep.subr.mxu0 0.0
    %2007 = vmatpush1.msra.mxu0 0.0
    %2008 = vmatprep.subr.mxu0 0.0
    %2009 = vmatpush1.msra.mxu0 0.0
    %2010 = vmatprep.subr.mxu0 0.0
    %2011 = vmatpush1.msra.mxu0 0.0
    %2012 = vmatprep.subr.mxu0 0.0
    %2013 = vmatpush1.msra.mxu0 0.0
    %2014 = vmatprep.subr.mxu0 0.0
    %2015 = vmatpush1.msra.mxu0 0.0
    %2016 = vmatprep.subr.mxu0 0.0
    %2017 = vmatpush1.msra.mxu0 0.0
    %2018 = vmatprep.subr.mxu0 0.0
    %2019 = vmatpush1.msra.mxu0 0.0
    %2020 = vmatprep.subr.mxu0 0.0
    %2021 = vmatpush1.msra.mxu0 0.0
    %2022 = vmatprep.mubr.f32.mxu0 0.0
    %2023 = vmatmul.mubr.f32.gmra.mrb[0].mxu0 %v1949
    %v2024 = vpop.f32.mrb[0].mxu0
    %v2025 = vadd.f32 %v1950, %v2024
    %v2026 = vpop.f32.mrb[0].mxu0
    %v2027 = vadd.f32 %v1951, %v2026
    %2028 = vdwg.mxu0
    %2029 = vmatprep.subr.mxu0 %v1021
    %2030 = vmatpush1.msra.mxu0 %v1020
    %2031 = vmatprep.subr.mxu0 %v1025
    %2032 = vmatpush1.msra.mxu0 %v1024
    %2033 = vmatprep.subr.mxu0 %v1029
    %2034 = vmatpush1.msra.mxu0 %v1028
    %2035 = vmatprep.subr.mxu0 %v1033
    %2036 = vmatpush1.msra.mxu0 %v1032
    %2037 = vmatprep.subr.mxu0 %v1037
    %2038 = vmatpush1.msra.mxu0 %v1036
    %2039 = vmatprep.subr.mxu0 %v1041
    %2040 = vmatpush1.msra.mxu0 %v1040
    %2041 = vmatprep.subr.mxu0 %v1045
    %2042 = vmatpush1.msra.mxu0 %v1044
    %2043 = vmatprep.subr.mxu0 %v1049
    %2044 = vmatpush1.msra.mxu0 %v1048
    %2045 = vmatprep.subr.mxu0 %v1053
    %2046 = vmatpush1.msra.mxu0 %v1052
    %2047 = vmatprep.subr.mxu0 %v1057
    %2048 = vmatpush1.msra.mxu0 %v1056
    %2049 = vmatprep.subr.mxu0 %v1061
    %2050 = vmatpush1.msra.mxu0 %v1060
    %2051 = vmatprep.subr.mxu0 %v1065
    %2052 = vmatpush1.msra.mxu0 %v1064
    %2053 = vmatprep.subr.mxu0 %v1069
    %2054 = vmatpush1.msra.mxu0 %v1068
    %2055 = vmatprep.subr.mxu0 %v1073
    %2056 = vmatpush1.msra.mxu0 %v1072
    %2057 = vmatprep.subr.mxu0 %v1077
    %2058 = vmatpush1.msra.mxu0 %v1076
    %2059 = vmatprep.subr.mxu0 %v1081
    %2060 = vmatpush1.msra.mxu0 %v1080
    %2061 = vmatprep.subr.mxu0 0.0
    %2062 = vmatpush1.msra.mxu0 0.0
    %2063 = vmatprep.subr.mxu0 0.0
    %2064 = vmatpush1.msra.mxu0 0.0
    %2065 = vmatprep.subr.mxu0 0.0
    %2066 = vmatpush1.msra.mxu0 0.0
    %2067 = vmatprep.subr.mxu0 0.0
    %2068 = vmatpush1.msra.mxu0 0.0
    %2069 = vmatprep.subr.mxu0 0.0
    %2070 = vmatpush1.msra.mxu0 0.0
    %2071 = vmatprep.subr.mxu0 0.0
    %2072 = vmatpush1.msra.mxu0 0.0
    %2073 = vmatprep.subr.mxu0 0.0
    %2074 = vmatpush1.msra.mxu0 0.0
    %2075 = vmatprep.subr.mxu0 0.0
    %2076 = vmatpush1.msra.mxu0 0.0
    %2077 = vmatprep.subr.mxu0 0.0
    %2078 = vmatpush1.msra.mxu0 0.0
    %2079 = vmatprep.subr.mxu0 0.0
    %2080 = vmatpush1.msra.mxu0 0.0
    %2081 = vmatprep.subr.mxu0 0.0
    %2082 = vmatpush1.msra.mxu0 0.0
    %2083 = vmatprep.subr.mxu0 0.0
    %2084 = vmatpush1.msra.mxu0 0.0
    %2085 = vmatprep.subr.mxu0 0.0
    %2086 = vmatpush1.msra.mxu0 0.0
    %2087 = vmatprep.subr.mxu0 0.0
    %2088 = vmatpush1.msra.mxu0 0.0
    %2089 = vmatprep.subr.mxu0 0.0
    %2090 = vmatpush1.msra.mxu0 0.0
    %2091 = vmatprep.subr.mxu0 0.0
    %2092 = vmatpush1.msra.mxu0 0.0
    %2093 = vmatprep.mubr.f32.mxu0 0.0
    %2094 = vmatmul.mubr.f32.gmra.mrb[0].mxu0 %v1949
    %v2095 = vpop.f32.mrb[0].mxu0
    %v2096 = vadd.f32 %v1952, %v2095
    %v2097 = vpop.f32.mrb[0].mxu0
    %v2098 = vadd.f32 %v1953, %v2097
    %2099 = vdwg.mxu0
    %v2100 = vxor.u32 %v2025, 2147483648
    %v2101 = vmul.f32 %v2100, 1.442695
    %v2102 = vpow.pop %v2101
    %v2103 = vadd.f32 %v2102, 1.0
    %v2104 = vrcp.pop %v2103
    %v2105 = vmul.f32 1.0, %v2104
    %v2106 = vxor.u32 %v2027, 2147483648
    %v2107 = vmul.f32 %v2106, 1.442695
    %v2108 = vpow.pop %v2107
    %v2109 = vadd.f32 %v2108, 1.0
    %v2110 = vrcp.pop %v2109
    %v2111 = vmul.f32 1.0, %v2110
    %v2112 = vtanh.pop %v2096
    %v2113 = vxor.u32 %v2098, 2147483648
    %v2114 = vmul.f32 %v2113, 1.442695
    %v2115 = vpow.pop %v2114
    %v2116 = vadd.f32 %v2115, 1.0
    %v2117 = vrcp.pop %v2116
    %v2118 = vmul.f32 1.0, %v2117
    %v2119 = vmul.f32 %v2111, %v1947
    %v2120 = vmul.f32 %v2105, %v2112
    %v2121 = vadd.f32 %v2119, %v2120
    %v2122 = vtanh.pop %v2121
    %v2123 = vmul.f32 %v2118, %v2122
    %v2124 = vrot.slane %v1014, 6
    %v2125 = vrot.slane %v1015, 6
    %v2126 = vrot.slane %v1016, 6
    %v2127 = vrot.slane %v1017, 6
    %2132 = vmatprep.subr.mxu0 %v1019
    %2133 = vmatpush1.msra.mxu0 %v1018
    %2134 = vmatprep.subr.mxu0 %v1023
    %2135 = vmatpush1.msra.mxu0 %v1022
    %2136 = vmatprep.subr.mxu0 %v1027
    %2137 = vmatpush1.msra.mxu0 %v1026
    %2138 = vmatprep.subr.mxu0 %v1031
    %2139 = vmatpush1.msra.mxu0 %v1030
    %2140 = vmatprep.subr.mxu0 %v1035
    %2141 = vmatpush1.msra.mxu0 %v1034
    %2142 = vmatprep.subr.mxu0 %v1039
    %2143 = vmatpush1.msra.mxu0 %v1038
    %2144 = vmatprep.subr.mxu0 %v1043
    %2145 = vmatpush1.msra.mxu0 %v1042
    %2146 = vmatprep.subr.mxu0 %v1047
    %2147 = vmatpush1.msra.mxu0 %v1046
    %2148 = vmatprep.subr.mxu0 %v1051
    %2149 = vmatpush1.msra.mxu0 %v1050
    %2150 = vmatprep.subr.mxu0 %v1055
    %2151 = vmatpush1.msra.mxu0 %v1054
    %2152 = vmatprep.subr.mxu0 %v1059
    %2153 = vmatpush1.msra.mxu0 %v1058
    %2154 = vmatprep.subr.mxu0 %v1063
    %2155 = vmatpush1.msra.mxu0 %v1062
    %2156 = vmatprep.subr.mxu0 %v1067
    %2157 = vmatpush1.msra.mxu0 %v1066
    %2158 = vmatprep.subr.mxu0 %v1071
    %2159 = vmatpush1.msra.mxu0 %v1070
    %2160 = vmatprep.subr.mxu0 %v1075
    %2161 = vmatpush1.msra.mxu0 %v1074
    %2162 = vmatprep.subr.mxu0 %v1079
    %2163 = vmatpush1.msra.mxu0 %v1078
    %2164 = vmatprep.subr.mxu0 0.0
    %2165 = vmatpush1.msra.mxu0 0.0
    %2166 = vmatprep.subr.mxu0 0.0
    %2167 = vmatpush1.msra.mxu0 0.0
    %2168 = vmatprep.subr.mxu0 0.0
    %2169 = vmatpush1.msra.mxu0 0.0
    %2170 = vmatprep.subr.mxu0 0.0
    %2171 = vmatpush1.msra.mxu0 0.0
    %2172 = vmatprep.subr.mxu0 0.0
    %2173 = vmatpush1.msra.mxu0 0.0
    %2174 = vmatprep.subr.mxu0 0.0
    %2175 = vmatpush1.msra.mxu0 0.0
    %2176 = vmatprep.subr.mxu0 0.0
    %2177 = vmatpush1.msra.mxu0 0.0
    %2178 = vmatprep.subr.mxu0 0.0
    %2179 = vmatpush1.msra.mxu0 0.0
    %2180 = vmatprep.subr.mxu0 0.0
    %2181 = vmatpush1.msra.mxu0 0.0
    %2182 = vmatprep.subr.mxu0 0.0
    %2183 = vmatpush1.msra.mxu0 0.0
    %2184 = vmatprep.subr.mxu0 0.0
    %2185 = vmatpush1.msra.mxu0 0.0
    %2186 = vmatprep.subr.mxu0 0.0
    %2187 = vmatpush1.msra.mxu0 0.0
    %2188 = vmatprep.subr.mxu0 0.0
    %2189 = vmatpush1.msra.mxu0 0.0
    %2190 = vmatprep.subr.mxu0 0.0
    %2191 = vmatpush1.msra.mxu0 0.0
    %2192 = vmatprep.subr.mxu0 0.0
    %2193 = vmatpush1.msra.mxu0 0.0
    %2194 = vmatprep.subr.mxu0 0.0
    %2195 = vmatpush1.msra.mxu0 0.0
    %2196 = vmatprep.mubr.f32.mxu0 0.0
    %2197 = vmatmul.mubr.f32.gmra.mrb[0].mxu0 %v2123
    %v2198 = vpop.f32.mrb[0].mxu0
    %v2199 = vadd.f32 %v2124, %v2198
    %v2200 = vpop.f32.mrb[0].mxu0
    %v2201 = vadd.f32 %v2125, %v2200
    %2202 = vdwg.mxu0
    %2203 = vmatprep.subr.mxu0 %v1021
    %2204 = vmatpush1.msra.mxu0 %v1020
    %2205 = vmatprep.subr.mxu0 %v1025
    %2206 = vmatpush1.msra.mxu0 %v1024
    %2207 = vmatprep.subr.mxu0 %v1029
    %2208 = vmatpush1.msra.mxu0 %v1028
    %2209 = vmatprep.subr.mxu0 %v1033
    %2210 = vmatpush1.msra.mxu0 %v1032
    %2211 = vmatprep.subr.mxu0 %v1037
    %2212 = vmatpush1.msra.mxu0 %v1036
    %2213 = vmatprep.subr.mxu0 %v1041
    %2214 = vmatpush1.msra.mxu0 %v1040
    %2215 = vmatprep.subr.mxu0 %v1045
    %2216 = vmatpush1.msra.mxu0 %v1044
    %2217 = vmatprep.subr.mxu0 %v1049
    %2218 = vmatpush1.msra.mxu0 %v1048
    %2219 = vmatprep.subr.mxu0 %v1053
    %2220 = vmatpush1.msra.mxu0 %v1052
    %2221 = vmatprep.subr.mxu0 %v1057
    %2222 = vmatpush1.msra.mxu0 %v1056
    %2223 = vmatprep.subr.mxu0 %v1061
    %2224 = vmatpush1.msra.mxu0 %v1060
    %2225 = vmatprep.subr.mxu0 %v1065
    %2226 = vmatpush1.msra.mxu0 %v1064
    %2227 = vmatprep.subr.mxu0 %v1069
    %2228 = vmatpush1.msra.mxu0 %v1068
    %2229 = vmatprep.subr.mxu0 %v1073
    %2230 = vmatpush1.msra.mxu0 %v1072
    %2231 = vmatprep.subr.mxu0 %v1077
    %2232 = vmatpush1.msra.mxu0 %v1076
    %2233 = vmatprep.subr.mxu0 %v1081
    %2234 = vmatpush1.msra.mxu0 %v1080
    %2235 = vmatprep.subr.mxu0 0.0
    %2236 = vmatpush1.msra.mxu0 0.0
    %2237 = vmatprep.subr.mxu0 0.0
    %2238 = vmatpush1.msra.mxu0 0.0
    %2239 = vmatprep.subr.mxu0 0.0
    %2240 = vmatpush1.msra.mxu0 0.0
    %2241 = vmatprep.subr.mxu0 0.0
    %2242 = vmatpush1.msra.mxu0 0.0
    %2243 = vmatprep.subr.mxu0 0.0
    %2244 = vmatpush1.msra.mxu0 0.0
    %2245 = vmatprep.subr.mxu0 0.0
    %2246 = vmatpush1.msra.mxu0 0.0
    %2247 = vmatprep.subr.mxu0 0.0
    %2248 = vmatpush1.msra.mxu0 0.0
    %2249 = vmatprep.subr.mxu0 0.0
    %2250 = vmatpush1.msra.mxu0 0.0
    %2251 = vmatprep.subr.mxu0 0.0
    %2252 = vmatpush1.msra.mxu0 0.0
    %2253 = vmatprep.subr.mxu0 0.0
    %2254 = vmatpush1.msra.mxu0 0.0
    %2255 = vmatprep.subr.mxu0 0.0
    %2256 = vmatpush1.msra.mxu0 0.0
    %2257 = vmatprep.subr.mxu0 0.0
    %2258 = vmatpush1.msra.mxu0 0.0
    %2259 = vmatprep.subr.mxu0 0.0
    %2260 = vmatpush1.msra.mxu0 0.0
    %2261 = vmatprep.subr.mxu0 0.0
    %2262 = vmatpush1.msra.mxu0 0.0
    %2263 = vmatprep.subr.mxu0 0.0
    %2264 = vmatpush1.msra.mxu0 0.0
    %2265 = vmatprep.subr.mxu0 0.0
    %2266 = vmatpush1.msra.mxu0 0.0
    %2267 = vmatprep.mubr.f32.mxu0 0.0
    %2268 = vmatmul.mubr.f32.gmra.mrb[0].mxu0 %v2123
    %v2269 = vpop.f32.mrb[0].mxu0
    %v2270 = vadd.f32 %v2126, %v2269
    %v2271 = vpop.f32.mrb[0].mxu0
    %v2272 = vadd.f32 %v2127, %v2271
    %2273 = vdwg.mxu0
    %v2274 = vxor.u32 %v2199, 2147483648
    %v2275 = vmul.f32 %v2274, 1.442695
    %v2276 = vpow.pop %v2275
    %v2277 = vadd.f32 %v2276, 1.0
    %v2278 = vrcp.pop %v2277
    %v2279 = vmul.f32 1.0, %v2278
    %v2280 = vxor.u32 %v2201, 2147483648
    %v2281 = vmul.f32 %v2280, 1.442695
    %v2282 = vpow.pop %v2281
    %v2283 = vadd.f32 %v2282, 1.0
    %v2284 = vrcp.pop %v2283
    %v2285 = vmul.f32 1.0, %v2284
    %v2286 = vtanh.pop %v2270
    %v2287 = vxor.u32 %v2272, 2147483648
    %v2288 = vmul.f32 %v2287, 1.442695
    %v2289 = vpow.pop %v2288
    %v2290 = vadd.f32 %v2289, 1.0
    %v2291 = vrcp.pop %v2290
    %v2292 = vmul.f32 1.0, %v2291
    %v2293 = vmul.f32 %v2285, %v2121
    %v2294 = vmul.f32 %v2279, %v2286
    %v2295 = vadd.f32 %v2293, %v2294
    %v2296 = vtanh.pop %v2295
    %v2297 = vmul.f32 %v2292, %v2296
    %v2298 = vrot.slane %v1014, 7
    %v2299 = vrot.slane %v1015, 7
    %v2300 = vrot.slane %v1016, 7
    %v2301 = vrot.slane %v1017, 7
    %2306 = vmatprep.subr.mxu0 %v1019
    %2307 = vmatpush1.msra.mxu0 %v1018
    %2308 = vmatprep.subr.mxu0 %v1023
    %2309 = vmatpush1.msra.mxu0 %v1022
    %2310 = vmatprep.subr.mxu0 %v1027
    %2311 = vmatpush1.msra.mxu0 %v1026
    %2312 = vmatprep.subr.mxu0 %v1031
    %2313 = vmatpush1.msra.mxu0 %v1030
    %2314 = vmatprep.subr.mxu0 %v1035
    %2315 = vmatpush1.msra.mxu0 %v1034
    %2316 = vmatprep.subr.mxu0 %v1039
    %2317 = vmatpush1.msra.mxu0 %v1038
    %2318 = vmatprep.subr.mxu0 %v1043
    %2319 = vmatpush1.msra.mxu0 %v1042
    %2320 = vmatprep.subr.mxu0 %v1047
    %2321 = vmatpush1.msra.mxu0 %v1046
    %2322 = vmatprep.subr.mxu0 %v1051
    %2323 = vmatpush1.msra.mxu0 %v1050
    %2324 = vmatprep.subr.mxu0 %v1055
    %2325 = vmatpush1.msra.mxu0 %v1054
    %2326 = vmatprep.subr.mxu0 %v1059
    %2327 = vmatpush1.msra.mxu0 %v1058
    %2328 = vmatprep.subr.mxu0 %v1063
    %2329 = vmatpush1.msra.mxu0 %v1062
    %2330 = vmatprep.subr.mxu0 %v1067
    %2331 = vmatpush1.msra.mxu0 %v1066
    %2332 = vmatprep.subr.mxu0 %v1071
    %2333 = vmatpush1.msra.mxu0 %v1070
    %2334 = vmatprep.subr.mxu0 %v1075
    %2335 = vmatpush1.msra.mxu0 %v1074
    %2336 = vmatprep.subr.mxu0 %v1079
    %2337 = vmatpush1.msra.mxu0 %v1078
    %2338 = vmatprep.subr.mxu0 0.0
    %2339 = vmatpush1.msra.mxu0 0.0
    %2340 = vmatprep.subr.mxu0 0.0
    %2341 = vmatpush1.msra.mxu0 0.0
    %2342 = vmatprep.subr.mxu0 0.0
    %2343 = vmatpush1.msra.mxu0 0.0
    %2344 = vmatprep.subr.mxu0 0.0
    %2345 = vmatpush1.msra.mxu0 0.0
    %2346 = vmatprep.subr.mxu0 0.0
    %2347 = vmatpush1.msra.mxu0 0.0
    %2348 = vmatprep.subr.mxu0 0.0
    %2349 = vmatpush1.msra.mxu0 0.0
    %2350 = vmatprep.subr.mxu0 0.0
    %2351 = vmatpush1.msra.mxu0 0.0
    %2352 = vmatprep.subr.mxu0 0.0
    %2353 = vmatpush1.msra.mxu0 0.0
    %2354 = vmatprep.subr.mxu0 0.0
    %2355 = vmatpush1.msra.mxu0 0.0
    %2356 = vmatprep.subr.mxu0 0.0
    %2357 = vmatpush1.msra.mxu0 0.0
    %2358 = vmatprep.subr.mxu0 0.0
    %2359 = vmatpush1.msra.mxu0 0.0
    %2360 = vmatprep.subr.mxu0 0.0
    %2361 = vmatpush1.msra.mxu0 0.0
    %2362 = vmatprep.subr.mxu0 0.0
    %2363 = vmatpush1.msra.mxu0 0.0
    %2364 = vmatprep.subr.mxu0 0.0
    %2365 = vmatpush1.msra.mxu0 0.0
    %2366 = vmatprep.subr.mxu0 0.0
    %2367 = vmatpush1.msra.mxu0 0.0
    %2368 = vmatprep.subr.mxu0 0.0
    %2369 = vmatpush1.msra.mxu0 0.0
    %2370 = vmatprep.mubr.f32.mxu0 0.0
    %2371 = vmatmul.mubr.f32.gmra.mrb[0].mxu0 %v2297
    %v2372 = vpop.f32.mrb[0].mxu0
    %v2373 = vadd.f32 %v2298, %v2372
    %v2374 = vpop.f32.mrb[0].mxu0
    %v2375 = vadd.f32 %v2299, %v2374
    %2376 = vdwg.mxu0
    %2377 = vmatprep.subr.mxu0 %v1021
    %2378 = vmatpush1.msra.mxu0 %v1020
    %2379 = vmatprep.subr.mxu0 %v1025
    %2380 = vmatpush1.msra.mxu0 %v1024
    %2381 = vmatprep.subr.mxu0 %v1029
    %2382 = vmatpush1.msra.mxu0 %v1028
    %2383 = vmatprep.subr.mxu0 %v1033
    %2384 = vmatpush1.msra.mxu0 %v1032
    %2385 = vmatprep.subr.mxu0 %v1037
    %2386 = vmatpush1.msra.mxu0 %v1036
    %2387 = vmatprep.subr.mxu0 %v1041
    %2388 = vmatpush1.msra.mxu0 %v1040
    %2389 = vmatprep.subr.mxu0 %v1045
    %2390 = vmatpush1.msra.mxu0 %v1044
    %2391 = vmatprep.subr.mxu0 %v1049
    %2392 = vmatpush1.msra.mxu0 %v1048
    %2393 = vmatprep.subr.mxu0 %v1053
    %2394 = vmatpush1.msra.mxu0 %v1052
    %2395 = vmatprep.subr.mxu0 %v1057
    %2396 = vmatpush1.msra.mxu0 %v1056
    %2397 = vmatprep.subr.mxu0 %v1061
    %2398 = vmatpush1.msra.mxu0 %v1060
    %2399 = vmatprep.subr.mxu0 %v1065
    %2400 = vmatpush1.msra.mxu0 %v1064
    %2401 = vmatprep.subr.mxu0 %v1069
    %2402 = vmatpush1.msra.mxu0 %v1068
    %2403 = vmatprep.subr.mxu0 %v1073
    %2404 = vmatpush1.msra.mxu0 %v1072
    %2405 = vmatprep.subr.mxu0 %v1077
    %2406 = vmatpush1.msra.mxu0 %v1076
    %2407 = vmatprep.subr.mxu0 %v1081
    %2408 = vmatpush1.msra.mxu0 %v1080
    %2409 = vmatprep.subr.mxu0 0.0
    %2410 = vmatpush1.msra.mxu0 0.0
    %2411 = vmatprep.subr.mxu0 0.0
    %2412 = vmatpush1.msra.mxu0 0.0
    %2413 = vmatprep.subr.mxu0 0.0
    %2414 = vmatpush1.msra.mxu0 0.0
    %2415 = vmatprep.subr.mxu0 0.0
    %2416 = vmatpush1.msra.mxu0 0.0
    %2417 = vmatprep.subr.mxu0 0.0
    %2418 = vmatpush1.msra.mxu0 0.0
    %2419 = vmatprep.subr.mxu0 0.0
    %2420 = vmatpush1.msra.mxu0 0.0
    %2421 = vmatprep.subr.mxu0 0.0
    %2422 = vmatpush1.msra.mxu0 0.0
    %2423 = vmatprep.subr.mxu0 0.0
    %2424 = vmatpush1.msra.mxu0 0.0
    %2425 = vmatprep.subr.mxu0 0.0
    %2426 = vmatpush1.msra.mxu0 0.0
    %2427 = vmatprep.subr.mxu0 0.0
    %2428 = vmatpush1.msra.mxu0 0.0
    %2429 = vmatprep.subr.mxu0 0.0
    %2430 = vmatpush1.msra.mxu0 0.0
    %2431 = vmatprep.subr.mxu0 0.0
    %2432 = vmatpush1.msra.mxu0 0.0
    %2433 = vmatprep.subr.mxu0 0.0
    %2434 = vmatpush1.msra.mxu0 0.0
    %2435 = vmatprep.subr.mxu0 0.0
    %2436 = vmatpush1.msra.mxu0 0.0
    %2437 = vmatprep.subr.mxu0 0.0
    %2438 = vmatpush1.msra.mxu0 0.0
    %2439 = vmatprep.subr.mxu0 0.0
    %2440 = vmatpush1.msra.mxu0 0.0
    %2441 = vmatprep.mubr.f32.mxu0 0.0
    %2442 = vmatmul.mubr.f32.gmra.mrb[0].mxu0 %v2297
    %v2443 = vpop.f32.mrb[0].mxu0
    %v2444 = vadd.f32 %v2300, %v2443
    %v2445 = vpop.f32.mrb[0].mxu0
    %v2446 = vadd.f32 %v2301, %v2445
    %2447 = vdwg.mxu0
    %v2448 = vxor.u32 %v2373, 2147483648
    %v2449 = vmul.f32 %v2448, 1.442695
    %v2450 = vpow.pop %v2449
    %v2451 = vadd.f32 %v2450, 1.0
    %v2452 = vrcp.pop %v2451
    %v2453 = vmul.f32 1.0, %v2452
    %v2454 = vxor.u32 %v2375, 2147483648
    %v2455 = vmul.f32 %v2454, 1.442695
    %v2456 = vpow.pop %v2455
    %v2457 = vadd.f32 %v2456, 1.0
    %v2458 = vrcp.pop %v2457
    %v2459 = vmul.f32 1.0, %v2458
    %v2460 = vtanh.pop %v2444
    %v2461 = vxor.u32 %v2446, 2147483648
    %v2462 = vmul.f32 %v2461, 1.442695
    %v2463 = vpow.pop %v2462
    %v2464 = vadd.f32 %v2463, 1.0
    %v2465 = vrcp.pop %v2464
    %v2466 = vmul.f32 1.0, %v2465
    %v2467 = vmul.f32 %v2459, %v2295
    %v2468 = vmul.f32 %v2453, %v2460
    %v2469 = vadd.f32 %v2467, %v2468
    %v2470 = vtanh.pop %v2469
    %v2471 = vmul.f32 %v2466, %v2470
    %v2473 = vrot.slane %v1427, 7
    %v2476 = vrot.slane %v1601, 6
    %v2479 = vrot.slane %v1775, 5
    %v2482 = vrot.slane %v1949, 4
    %v2485 = vrot.slane %v2123, 3
    %v2488 = vrot.slane %v2297, 2
    %v2491 = vrot.slane %v2471, 1
    %vm2493 = vcmask 1040384
    %v2494 = vsel %vm2493, %v1249, %v2473
    %v2495 = vsel %vm76, %v2494, %v2476
    %vm2496 = vcmask 1042432
    %v2497 = vsel %vm2496, %v2495, %v2479
    %v2498 = vsel %vm156, %v2497, %v2482
    %vm2499 = vcmask 1044480
    %v2500 = vsel %vm2499, %v2498, %v2485
    %vm2501 = vcmask 1045504
    %v2502 = vsel %vm2501, %v2500, %v2488
    %vm2503 = vcmask 1046528
    %v2504 = vsel %vm2503, %v2502, %v2491
    %v2505 = vrot.slane %v2297, 7
    %v2507 = vrot.slane %v2123, 6
    %v2509 = vrot.slane %v1949, 5
    %v2511 = vrot.slane %v1775, 4
    %v2513 = vrot.slane %v1601, 3
    %v2515 = vrot.slane %v1427, 2
    %v2518 = vrot.slane %v1249, 1
    %v2520 = vsel %vm2493, %v2471, %v2505
    %v2521 = vsel %vm76, %v2520, %v2507
    %v2522 = vsel %vm2496, %v2521, %v2509
    %v2523 = vsel %vm156, %v2522, %v2511
    %v2524 = vsel %vm2499, %v2523, %v2513
    %v2525 = vsel %vm2501, %v2524, %v2515
    %v2526 = vsel %vm2503, %v2525, %v2518
    %v2527 = vld [vmem:[%s12] sm:$0xff]
    %v2528 = vld [vmem:[%s12 + $0x8] sm:$0xff]
    %v2529 = vld [vmem:[%s12 + $0x10] sm:$0xff]
    %v2530 = vld [vmem:[%s12 + $0x18] sm:$0xff]
    %v2531 = vld [vmem:[%s12 + $0x20] sm:$0xff]
    %v2532 = vld [vmem:[%s12 + $0x28] sm:$0xff]
    %v2533 = vld [vmem:[%s12 + $0x30] sm:$0xff]
    %v2534 = vld [vmem:[%s12 + $0x38] sm:$0xff]
    %v2535 = vld [vmem:[%s12 + $0x40] sm:$0xff]
    %v2536 = vld [vmem:[%s12 + $0x48] sm:$0xff]
    %v2537 = vld [vmem:[%s12 + $0x50] sm:$0xff]
    %v2538 = vld [vmem:[%s12 + $0x58] sm:$0xff]
    %v2539 = vld [vmem:[%s12 + $0x60] sm:$0xff]
    %v2540 = vld [vmem:[%s12 + $0x68] sm:$0xff]
    %v2541 = vld [vmem:[%s12 + $0x70] sm:$0xff]
    %v2542 = vld [vmem:[%s12 + $0x78] sm:$0xff]
    %v2543 = vld [vmem:[%s13] sm:$0xff]
    %v2544 = vld [vmem:[%s13 + $0x8] sm:$0xff]
    %v2545 = vld [vmem:[%s13 + $0x10] sm:$0xff]
    %v2546 = vld [vmem:[%s13 + $0x18] sm:$0xff]
    %v2547 = vld [vmem:[%s13 + $0x20] sm:$0xff]
    %v2548 = vld [vmem:[%s13 + $0x28] sm:$0xff]
    %v2549 = vld [vmem:[%s13 + $0x30] sm:$0xff]
    %v2550 = vld [vmem:[%s13 + $0x38] sm:$0xff]
    %v2551 = vld [vmem:[%s13 + $0x40] sm:$0xff]
    %v2552 = vld [vmem:[%s13 + $0x48] sm:$0xff]
    %v2553 = vld [vmem:[%s13 + $0x50] sm:$0xff]
    %v2554 = vld [vmem:[%s13 + $0x58] sm:$0xff]
    %v2555 = vld [vmem:[%s13 + $0x60] sm:$0xff]
    %v2556 = vld [vmem:[%s13 + $0x68] sm:$0xff]
    %v2557 = vld [vmem:[%s13 + $0x70] sm:$0xff]
    %v2558 = vld [vmem:[%s13 + $0x78] sm:$0xff]
    %2559 = vmatprep.subr.mxu0 0.0
    %2560 = vmatpush1.msra.mxu0 %v2543
    %2561 = vmatprep.subr.mxu0 0.0
    %2562 = vmatpush1.msra.mxu0 %v2544
    %2563 = vmatprep.subr.mxu0 0.0
    %2564 = vmatpush1.msra.mxu0 %v2545
    %2565 = vmatprep.subr.mxu0 0.0
    %2566 = vmatpush1.msra.mxu0 %v2546
    %2567 = vmatprep.subr.mxu0 0.0
    %2568 = vmatpush1.msra.mxu0 %v2547
    %2569 = vmatprep.subr.mxu0 0.0
    %2570 = vmatpush1.msra.mxu0 %v2548
    %2571 = vmatprep.subr.mxu0 0.0
    %2572 = vmatpush1.msra.mxu0 %v2549
    %2573 = vmatprep.subr.mxu0 0.0
    %2574 = vmatpush1.msra.mxu0 %v2550
    %2575 = vmatprep.subr.mxu0 0.0
    %2576 = vmatpush1.msra.mxu0 %v2551
    %2577 = vmatprep.subr.mxu0 0.0
    %2578 = vmatpush1.msra.mxu0 %v2552
    %2579 = vmatprep.subr.mxu0 0.0
    %2580 = vmatpush1.msra.mxu0 %v2553
    %2581 = vmatprep.subr.mxu0 0.0
    %2582 = vmatpush1.msra.mxu0 %v2554
    %2583 = vmatprep.subr.mxu0 0.0
    %2584 = vmatpush1.msra.mxu0 %v2555
    %2585 = vmatprep.subr.mxu0 0.0
    %2586 = vmatpush1.msra.mxu0 %v2556
    %2587 = vmatprep.subr.mxu0 0.0
    %2588 = vmatpush1.msra.mxu0 %v2557
    %2589 = vmatprep.subr.mxu0 0.0
    %2590 = vmatpush1.msra.mxu0 %v2558
    %2591 = vmatprep.subr.mxu0 0.0
    %2592 = vmatpush1.msra.mxu0 0.0
    %2593 = vmatprep.subr.mxu0 0.0
    %2594 = vmatpush1.msra.mxu0 0.0
    %2595 = vmatprep.subr.mxu0 0.0
    %2596 = vmatpush1.msra.mxu0 0.0
    %2597 = vmatprep.subr.mxu0 0.0
    %2598 = vmatpush1.msra.mxu0 0.0
    %2599 = vmatprep.subr.mxu0 0.0
    %2600 = vmatpush1.msra.mxu0 0.0
    %2601 = vmatprep.subr.mxu0 0.0
    %2602 = vmatpush1.msra.mxu0 0.0
    %2603 = vmatprep.subr.mxu0 0.0
    %2604 = vmatpush1.msra.mxu0 0.0
    %2605 = vmatprep.subr.mxu0 0.0
    %2606 = vmatpush1.msra.mxu0 0.0
    %2607 = vmatprep.subr.mxu0 0.0
    %2608 = vmatpush1.msra.mxu0 0.0
    %2609 = vmatprep.subr.mxu0 0.0
    %2610 = vmatpush1.msra.mxu0 0.0
    %2611 = vmatprep.subr.mxu0 0.0
    %2612 = vmatpush1.msra.mxu0 0.0
    %2613 = vmatprep.subr.mxu0 0.0
    %2614 = vmatpush1.msra.mxu0 0.0
    %2615 = vmatprep.subr.mxu0 0.0
    %2616 = vmatpush1.msra.mxu0 0.0
    %2617 = vmatprep.subr.mxu0 0.0
    %2618 = vmatpush1.msra.mxu0 0.0
    %2619 = vmatprep.subr.mxu0 0.0
    %2620 = vmatpush1.msra.mxu0 0.0
    %2621 = vmatprep.subr.mxu0 0.0
    %2622 = vmatpush1.msra.mxu0 0.0
    %2623 = vmatprep.mubr.f32.mxu0 0.0
    %2624 = vmatmul.mubr.f32.gmra.mrb[0].mxu0 %v2526
    %v2625 = vpop.f32.mrb[0].mxu0
    %v2626 = vadd.f32 0.0, %v2625
    %v2627 = vpop.f32.mrb[0].mxu0
    %2628 = vdwg.mxu0
    %2629 = vmatprep.subr.mxu0 0.0
    %2630 = vmatpush1.msra.mxu0 %v2527
    %2631 = vmatprep.subr.mxu0 0.0
    %2632 = vmatpush1.msra.mxu0 %v2528
    %2633 = vmatprep.subr.mxu0 0.0
    %2634 = vmatpush1.msra.mxu0 %v2529
    %2635 = vmatprep.subr.mxu0 0.0
    %2636 = vmatpush1.msra.mxu0 %v2530
    %2637 = vmatprep.subr.mxu0 0.0
    %2638 = vmatpush1.msra.mxu0 %v2531
    %2639 = vmatprep.subr.mxu0 0.0
    %2640 = vmatpush1.msra.mxu0 %v2532
    %2641 = vmatprep.subr.mxu0 0.0
    %2642 = vmatpush1.msra.mxu0 %v2533
    %2643 = vmatprep.subr.mxu0 0.0
    %2644 = vmatpush1.msra.mxu0 %v2534
    %2645 = vmatprep.subr.mxu0 0.0
    %2646 = vmatpush1.msra.mxu0 %v2535
    %2647 = vmatprep.subr.mxu0 0.0
    %2648 = vmatpush1.msra.mxu0 %v2536
    %2649 = vmatprep.subr.mxu0 0.0
    %2650 = vmatpush1.msra.mxu0 %v2537
    %2651 = vmatprep.subr.mxu0 0.0
    %2652 = vmatpush1.msra.mxu0 %v2538
    %2653 = vmatprep.subr.mxu0 0.0
    %2654 = vmatpush1.msra.mxu0 %v2539
    %2655 = vmatprep.subr.mxu0 0.0
    %2656 = vmatpush1.msra.mxu0 %v2540
    %2657 = vmatprep.subr.mxu0 0.0
    %2658 = vmatpush1.msra.mxu0 %v2541
    %2659 = vmatprep.subr.mxu0 0.0
    %2660 = vmatpush1.msra.mxu0 %v2542
    %2661 = vmatprep.subr.mxu0 0.0
    %2662 = vmatpush1.msra.mxu0 0.0
    %2663 = vmatprep.subr.mxu0 0.0
    %2664 = vmatpush1.msra.mxu0 0.0
    %2665 = vmatprep.subr.mxu0 0.0
    %2666 = vmatpush1.msra.mxu0 0.0
    %2667 = vmatprep.subr.mxu0 0.0
    %2668 = vmatpush1.msra.mxu0 0.0
    %2669 = vmatprep.subr.mxu0 0.0
    %2670 = vmatpush1.msra.mxu0 0.0
    %2671 = vmatprep.subr.mxu0 0.0
    %2672 = vmatpush1.msra.mxu0 0.0
    %2673 = vmatprep.subr.mxu0 0.0
    %2674 = vmatpush1.msra.mxu0 0.0
    %2675 = vmatprep.subr.mxu0 0.0
    %2676 = vmatpush1.msra.mxu0 0.0
    %2677 = vmatprep.subr.mxu0 0.0
    %2678 = vmatpush1.msra.mxu0 0.0
    %2679 = vmatprep.subr.mxu0 0.0
    %2680 = vmatpush1.msra.mxu0 0.0
    %2681 = vmatprep.subr.mxu0 0.0
    %2682 = vmatpush1.msra.mxu0 0.0
    %2683 = vmatprep.subr.mxu0 0.0
    %2684 = vmatpush1.msra.mxu0 0.0
    %2685 = vmatprep.subr.mxu0 0.0
    %2686 = vmatpush1.msra.mxu0 0.0
    %2687 = vmatprep.subr.mxu0 0.0
    %2688 = vmatpush1.msra.mxu0 0.0
    %2689 = vmatprep.subr.mxu0 0.0
    %2690 = vmatpush1.msra.mxu0 0.0
    %2691 = vmatprep.subr.mxu0 0.0
    %2692 = vmatpush1.msra.mxu0 0.0
    %2693 = vmatprep.mubr.f32.mxu0 0.0
    %2694 = vmatmul.mubr.f32.gmra.mrb[0].mxu0 %v2504
    %v2695 = vpop.f32.mrb[0].mxu0
    %v2696 = vadd.f32 %v2626, %v2695
    %v2697 = vpop.f32.mrb[0].mxu0
    %2698 = vdwg.mxu0
    %v2699 = vld [vmem:[%s14] sm:$0x1]
    %v2701 = vlaneseq
    %v2702 = vshrl.u32 %v2701, 7
    %v2703 = vsub.s32 0, %v2702
    %v2704 = vrot.slane %v2699, %v2703
    %v2706 = vadd.f32 %v2696, %v2704
    %2707 = vmax.xlane.f32.xlu0 %v2706
    %v2708 = vpop.xlane.xlu0 %2707
    %v2709 = vsub.f32 %v2706, %v2708
    %v2710 = vmul.f32 %v2709, 1.442695
    %v2711 = vpow.pop %v2710
    %2712 = vadd.xlane.f32.xlu0 %v2711
    %v2713 = vpop.xlane.xlu0 %2712
    %v2714 = vlog2.pop %v2713
    %v2715 = vmul.f32 %v2714, 0.6931472
    %v2716 = vadd.f32 %v2715, %v2708
    %v2717 = vsub.f32 %v2706, %v2716
    %2718 = vst [vmem:[#allocation2] sm:$0xff] %v2717
    // Predicated region
    $region62: #{nn_model_forward.1} parent=1 // pred_check
      _
    $region63: #{nn_model_forward.1} parent=1 // pred_check_branch
      %2720 = sbr.rel (0) target = $region65
    $region64: #{nn_model_forward.1} parent=1 // pred_region
      %s2722 = ssub.s32 128, 128
      %2723 = vsyncadd [#allocation3], %s2722
      %s2725 = sshll.u32 [#allocation2], 4
      %s2726 = int_to_ptr.vmem [resolvable:$true] %s2725
      %2728 = dma.vmem_to_hbm [thread:$0]  %s2726, 128, %s15, [#allocation3]
    $region65: #{nn_model_forward.1} parent=1 // pred_fallthru
      _
    // Predicated region
    $region66: #{nn_model_forward.1} parent=1 // pred_check
      _
    $region67: #{nn_model_forward.1} parent=1 // pred_check_branch
      %2730 = sbr.rel (0) target = $region69
    $region68: #{nn_model_forward.1} parent=1 // pred_region
      %2731 = dma.done [#allocation3], 128
    $region69: #{nn_model_forward.1} parent=1 // pred_fallthru
      _
    %2732 = vsyncpa [#allocation3], 1

</llo_original>
